<compile_context>
chip_gen: v5e
topology: v5e:2x2
jax: 0.10.0
libtpu: 0.0.40
codegen_flags: <defaults>
</compile_context>

<pallas_src>
import functools

import jax
import jax.numpy as jnp
from jax import lax
from jax.experimental import pallas as pl
from jax.experimental.pallas import tpu as pltpu


# Conservative live-VMEM budget for tile sizing (double-buffered input blocks
# + output block + in-kernel temps).  ~12 MiB keeps comfortable headroom on
# v7x (64 MiB physical VMEM) and is far below v5e/v6e limits.
_VMEM_TILE_BUDGET = 12 * 1024 * 1024
# Raise the scoped VMEM limit above the 16/32 MiB defaults, but stay below
# v7x's 64 MiB physical VMEM.
_VMEM_LIMIT_BYTES = 48 * 1024 * 1024


def _pick_row_tile(h, bytes_per_row, budget=_VMEM_TILE_BUDGET):
    """Largest row tile dividing `h` whose pipelined working set fits the
    byte budget (review: size tiles from bytes, not divisibility)."""
    cap = max(1, int(budget // max(int(bytes_per_row), 1)))
    best = 1
    for th in range(1, h + 1):
        if h % th == 0 and th <= cap:
            best = th
    return best


# ----------------------------- Pallas kernels -----------------------------

def _upconv2x2_kernel(x_ref, w_ref, b_ref, o_ref, *, compute_dtype):
    # x_ref: (TH, W, Cin)        one row tile of one image (NHWC)
    # w_ref: (2, Cin, 2*Cout)    weights for dh=0,1; columns ordered (dw, co)
    # b_ref: (1, 2*Cout)         bias tiled per dw (f32)
    # o_ref: (TH, 2, W, 2*Cout)  rows interleave (h, dh); lane packs (dw, co)
    th, wdim, cin = x_ref.shape
    x2 = x_ref[...].reshape(th * wdim, cin).astype(compute_dtype)
    b = b_ref[...].astype(jnp.float32)
    for dh in range(2):
        y = jnp.dot(x2, w_ref[dh], preferred_element_type=jnp.float32) + b
        o_ref[:, dh:dh + 1, :, :] = y.reshape(th, 1, wdim, -1).astype(o_ref.dtype)


def _make_conv3x3_relu_kernel(th, width, cins, cout, compute_dtype):
    """Row-tiled 3x3 conv + bias + ReLU with in-kernel halos / zero padding.

    Multiple NHWC inputs are implicitly channel-concatenated (fuses torch.cat
    into the conv).  Each input arrives as (body, top-halo-row, bottom-halo-row)
    blocks; out-of-image halo rows and the 1-px zero border are synthesised in
    VMEM, so no wrapper-side jnp.pad HBM pass is needed.  The 9 taps are
    accumulated as separate MXU dots into an f32 accumulator — no 9x-wide
    im2col tap matrix is ever materialised.
    """
    n_in = len(cins)

    def kernel(*refs):
        x_refs = refs[:3 * n_in]          # (body, top, bot) per input
        w_ref = refs[3 * n_in]            # (9*sum(cins), cout), rows (input, kh, kw, ci)
        b_ref = refs[3 * n_in + 1]        # (1, cout) f32
        o_ref = refs[3 * n_in + 2]        # (th, width, cout)

        is_first = pl.program_id(1) == 0
        is_last = pl.program_id(1) == pl.num_programs(1) - 1

        acc = jnp.zeros((th * width, cout), jnp.float32)
        row_off = 0
        for i, cin in enumerate(cins):
            body_ref, top_ref, bot_ref = x_refs[3 * i:3 * i + 3]
            body = body_ref[...]                                   # (th, W, cin)
            top = top_ref[...]                                     # (1, W, cin)
            bot = bot_ref[...]                                     # (1, W, cin)
            # Halo rows read clamped in-image rows; zero them at the image edge.
            top = jnp.where(is_first, jnp.zeros_like(top), top)
            bot = jnp.where(is_last, jnp.zeros_like(bot), bot)
            rows = jnp.concatenate([top, body, bot], axis=0)       # (th+2, W, cin)
            zcol = jnp.zeros((th + 2, 1, cin), rows.dtype)
            xp = jnp.concatenate([zcol, rows, zcol], axis=1)       # (th+2, W+2, cin)
            xp = xp.astype(compute_dtype)
            for kh in range(3):
                for kw in range(3):
                    tap = xp[kh:kh + th, kw:kw + width, :].reshape(th * width, cin)
                    wsl = w_ref[row_off:row_off + cin, :]
                    acc = acc + jnp.dot(tap, wsl, preferred_element_type=jnp.float32)
                    row_off += cin

        out = jnp.maximum(acc + b_ref[...].astype(jnp.float32), 0.0)   # f32 epilogue
        o_ref[...] = out.reshape(th, width, cout).astype(o_ref.dtype)

    return kernel


# ----------------------------- wrappers -----------------------------------

def upconv2x2_s2(x_nhwc, w, b, *, compute_dtype=jnp.bfloat16, row_tile=None):
    """ConvTranspose2d(Cin, Cout, kernel_size=2, stride=2) on an NHWC input.

    Returns (N, 2H, 2W, Cout) in `compute_dtype`.  The kernel writes the
    spatially-interleaved (N, H, 2, W, 2*Cout) layout so the final reshape is
    metadata-only in row-major terms.
    """
    N, H, W, Cin = x_nhwc.shape
    Cout = w.shape[1]
    # torch weight (Cin, Cout, dh, dw) -> (dh, Cin, dw*Cout), columns (dw, co).
    w_dh = jnp.transpose(w, (2, 0, 3, 1)).reshape(2, Cin, 2 * Cout).astype(compute_dtype)
    b2 = jnp.tile(b, 2).reshape(1, 2 * Cout).astype(jnp.float32)

    in_it = jnp.dtype(x_nhwc.dtype).itemsize
    out_it = jnp.dtype(compute_dtype).itemsize
    # Per output-row live bytes: 2x-buffered x rows + 2x-buffered output rows
    # (2 spatial x 2*Cout lanes) + f32 matmul temps.
    bytes_per_row = W * (2 * Cin * in_it + 2 * 2 * 2 * Cout * out_it
                         + 2 * 2 * Cout * 4 + 2 * Cin)
    TH = row_tile if row_tile is not None else _pick_row_tile(H, bytes_per_row)
    assert H % TH == 0, (H, TH)

    up5 = pl.pallas_call(
        functools.partial(_upconv2x2_kernel, compute_dtype=compute_dtype),
        out_shape=jax.ShapeDtypeStruct((N, H, 2, W, 2 * Cout), compute_dtype),
        grid=(N, H // TH),                                         # (image, row tile)
        in_specs=[
            pl.BlockSpec((None, TH, W, Cin), lambda n, hi: (n, hi, 0, 0)),
            pl.BlockSpec((2, Cin, 2 * Cout), lambda n, hi: (0, 0, 0)),
            pl.BlockSpec((1, 2 * Cout), lambda n, hi: (0, 0)),
        ],
        out_specs=pl.BlockSpec((None, TH, 2, W, 2 * Cout),
                               lambda n, hi: (n, hi, 0, 0, 0)),
        compiler_params=pltpu.CompilerParams(
            dimension_semantics=("parallel", "parallel"),
            vmem_limit_bytes=_VMEM_LIMIT_BYTES),
    )(x_nhwc, w_dh, b2)
    # (N, H, 2, W, 2, Cout) -> (N, 2H, 2W, Cout): row-major metadata reshape.
    # TODO(synk): verify in HLO this stays a bitcast at production channel
    # counts; otherwise have conv1 consume the 5-D layout via its index_map.
    return up5.reshape(N, 2 * H, 2 * W, Cout)


def conv3x3_relu_fused(xs_nhwc, w_flat, b, *, out_dtype=None,
                       compute_dtype=jnp.bfloat16, row_tile=None):
    """ReLU(Conv2d(sum(Cin_i), Cout, 3, padding=1)) over channel-concatenated
    NHWC inputs, without materialising the concatenation or a padded copy."""
    N, H, W, _ = xs_nhwc[0].shape
    Cout = w_flat.shape[-1]
    cins = [int(x.shape[-1]) for x in xs_nhwc]
    K = 9 * sum(cins)
    assert w_flat.shape == (K, Cout), (w_flat.shape, K, Cout)
    out_dtype = out_dtype if out_dtype is not None else xs_nhwc[0].dtype

    w_flat = w_flat.astype(compute_dtype)
    b2 = b.reshape(1, Cout).astype(jnp.float32)

    # Per output-row live bytes: 2x-buffered (body + halo) rows per input plus
    # ~3 tile-sized f32 in-kernel temps, plus 2x-buffered output rows + f32 acc.
    itemsizes = [jnp.dtype(x.dtype).itemsize for x in xs_nhwc]
    per_row = sum(W * c * (2 * it + 3 * 4) for c, it in zip(cins, itemsizes))
    per_row += W * Cout * (2 * jnp.dtype(out_dtype).itemsize + 4)
    TH = row_tile if row_tile is not None else _pick_row_tile(H, per_row)
    assert H % TH == 0, (H, TH)
    n_tiles = H // TH

    kernel = _make_conv3x3_relu_kernel(TH, W, cins, Cout, compute_dtype)

    in_specs = []
    inputs = []
    for x, c in zip(xs_nhwc, cins):
        # body rows [hi*TH, hi*TH + TH)
        in_specs.append(pl.BlockSpec((None, TH, W, c),
                                     lambda n, hi: (n, hi, 0, 0)))
        # top halo: row hi*TH - 1 (block size 1 on H => element index);
        # clamped at the image edge and masked to zero in-kernel.
        in_specs.append(pl.BlockSpec(
            (None, 1, W, c),
            lambda n, hi, th=TH: (n, jnp.maximum(hi * th - 1, 0), 0, 0)))
        # bottom halo: row hi*TH + TH, clamped / masked at the last tile.
        in_specs.append(pl.BlockSpec(
            (None, 1, W, c),
            lambda n, hi, th=TH, h=H: (n, jnp.minimum(hi * th + th, h - 1), 0, 0)))
        inputs += [x, x, x]
    # TODO(synk): single-buffer this weight block (pipeline_mode=pl.Buffered(1))
    # for deep UNet stages on v7x; its block index is constant across the grid.
    in_specs.append(pl.BlockSpec((K, Cout), lambda n, hi: (0, 0)))
    in_specs.append(pl.BlockSpec((1, Cout), lambda n, hi: (0, 0)))

    return pl.pallas_call(
        kernel,
        out_shape=jax.ShapeDtypeStruct((N, H, W, Cout), out_dtype),
        grid=(N, n_tiles),                                         # (image, row tile)
        in_specs=in_specs,
        out_specs=pl.BlockSpec((None, TH, W, Cout), lambda n, hi: (n, hi, 0, 0)),
        compiler_params=pltpu.CompilerParams(
            dimension_semantics=("parallel", "parallel"),
            vmem_limit_bytes=_VMEM_LIMIT_BYTES),
    )(*inputs, w_flat, b2)


def _flatten_conv_w(w_oihw):
    # (Cout, Cin, 3, 3) -> (9*Cin, Cout), row order (kh, kw, ci)
    cout = w_oihw.shape[0]
    return jnp.transpose(w_oihw, (2, 3, 1, 0)).reshape(-1, cout)


def unet_up_block_forward_nhwc(params, x_nhwc, bridge_nhwc, *,
                               compute_dtype=jnp.bfloat16, row_tile=None):
    """UNetUpBlock.forward in NHWC (channels-last)."""
    out_dtype = x_nhwc.dtype

    # up = self.up(x): k=2, s=2 transposed conv; intermediate stored in
    # compute_dtype (bf16 halves HBM traffic; accumulation is f32 in-kernel).
    up = upconv2x2_s2(x_nhwc, params["up_w"], params["up_b"],
                      compute_dtype=compute_dtype, row_tile=row_tile)
    N, Hu, Wu, C_up = up.shape

    # crop1 = self.center_crop(bridge, up.shape[2:])
    # TODO(synk): express the crop window as a BlockSpec/DMA element offset in
    # conv1 (dy/dx are generally not row-tile multiples) to drop this slice.
    dy = (bridge_nhwc.shape[1] - Hu) // 2
    dx = (bridge_nhwc.shape[2] - Wu) // 2
    crop = bridge_nhwc[:, dy:dy + Hu, dx:dx + Wu, :]
    C_crop = crop.shape[-1]

    # out = conv_block(cat([up, crop], C)); the concat is fused into conv1 by
    # splitting its weight along Cin and passing up/crop as separate inputs.
    w1 = params["conv1_w"]
    w1_flat = jnp.concatenate(
        [_flatten_conv_w(w1[:, :C_up]),
         _flatten_conv_w(w1[:, C_up:C_up + C_crop])], axis=0)
    h1 = conv3x3_relu_fused([up, crop], w1_flat, params["conv1_b"],
                            out_dtype=compute_dtype, compute_dtype=compute_dtype,
                            row_tile=row_tile)

    w2_flat = _flatten_conv_w(params["conv2_w"])
    return conv3x3_relu_fused([h1], w2_flat, params["conv2_b"],
                              out_dtype=out_dtype, compute_dtype=compute_dtype,
                              row_tile=row_tile)


def unet_up_block_forward(params, x_nchw, bridge_nchw, *,
                          compute_dtype=jnp.bfloat16, row_tile=None):
    """NCHW wrapper matching the PyTorch interface (boundary glue only; keep a
    full model NHWC and call unet_up_block_forward_nhwc directly instead)."""
    x_nhwc = jnp.transpose(x_nchw, (0, 2, 3, 1))
    bridge_nhwc = jnp.transpose(bridge_nchw, (0, 2, 3, 1))
    out = unet_up_block_forward_nhwc(params, x_nhwc, bridge_nhwc,
                                     compute_dtype=compute_dtype,
                                     row_tile=row_tile)
    return jnp.transpose(out, (0, 3, 1, 2))


# ----------------------------- pure-JAX reference --------------------------

def _ref_forward(params, x, bridge):
    # transposed conv via einsum (k=2, s=2 -> no overlap)
    w, b = params["up_w"], params["up_b"]
    N, Cin, H, W = x.shape
    Cout = w.shape[1]
    y = jnp.einsum("ncij,cohw->noihjw", x, w).reshape(N, Cout, 2 * H, 2 * W)
    up = y + b[None, :, None, None]

    Hu, Wu = up.shape[2], up.shape[3]
    dy = (bridge.shape[2] - Hu) // 2
    dx = (bridge.shape[3] - Wu) // 2
    crop = bridge[:, :, dy:dy + Hu, dx:dx + Wu]
    cat = jnp.concatenate([up, crop], axis=1)

    def conv_relu(z, cw, cb):
        o = lax.conv_general_dilated(
            z, cw, window_strides=(1, 1), padding=((1, 1), (1, 1)),
            dimension_numbers=("NCHW", "OIHW", "NCHW"))
        return jnp.maximum(o + cb[None, :, None, None], 0.0)

    h1 = conv_relu(cat, params["conv1_w"], params["conv1_b"])
    return conv_relu(h1, params["conv2_w"], params["conv2_b"])


# ----------------------------- main ----------------------------------------

if __name__ == "__main__":
    # Module config: UNetUpBlock(in_size=8, out_size=4, up_mode='upconv',
    #                            padding=True, batch_norm=False)
    in_size, out_size = 8, 4
    N, H, W = 2, 8, 8            # x spatial; up -> 16x16
    Hb, Wb = 20, 20              # bridge spatial (exercises center_crop)

    keys = jax.random.split(jax.random.PRNGKey(0), 8)
    params = {
        "up_w": 0.1 * jax.random.normal(keys[0], (in_size, out_size, 2, 2), jnp.float32),
        "up_b": 0.1 * jax.random.normal(keys[1], (out_size,), jnp.float32),
        "conv1_w": 0.1 * jax.random.normal(keys[2], (out_size, in_size, 3, 3), jnp.float32),
        "conv1_b": 0.1 * jax.random.normal(keys[3], (out_size,), jnp.float32),
        "conv2_w": 0.1 * jax.random.normal(keys[4], (out_size, out_size, 3, 3), jnp.float32),
        "conv2_b": 0.1 * jax.random.normal(keys[5], (out_size,), jnp.float32),
    }
    x = jax.random.normal(keys[6], (N, in_size, H, W), jnp.float32)
    bridge = jax.random.normal(keys[7], (N, out_size, Hb, Wb), jnp.float32)

    ref = _ref_forward(params, x, bridge)

    # 1) f32 path with a forced small row tile: exercises the in-kernel halo /
    #    zero-padding logic across multiple row tiles at tight tolerance.
    f32_fwd = jax.jit(functools.partial(unet_up_block_forward,
                                        compute_dtype=jnp.float32, row_tile=4))
    out_f32 = jax.block_until_ready(f32_fwd(params, x, bridge))
    assert out_f32.shape == (N, out_size, 2 * H, 2 * W), out_f32.shape
    assert jnp.allclose(out_f32, ref, atol=1e-4, rtol=1e-4), \
        float(jnp.max(jnp.abs(out_f32 - ref)))

    # 2) default path: bf16 MXU operands / bf16 intermediates, f32 accumulation,
    #    auto byte-budget row tiles.
    bf16_fwd = jax.jit(unet_up_block_forward)
    out_bf16 = jax.block_until_ready(bf16_fwd(params, x, bridge))
    assert out_bf16.shape == (N, out_size, 2 * H, 2 * W), out_bf16.shape
    assert jnp.allclose(out_bf16, ref, atol=5e-2, rtol=5e-2), \
        float(jnp.max(jnp.abs(out_bf16 - ref)))

    print("KERNEL_OK")
</pallas_src>

<mosaic_0001>
module attributes {stable_mosaic.version = 11 : i64} {
  func.func @kernel(%arg0: i32, %arg1: i32, %arg2: memref<1x4x16x4xf32, #tpu.memory_space<vmem>>, %arg3: memref<1x1x16x4xf32, #tpu.memory_space<vmem>>, %arg4: memref<1x1x16x4xf32, #tpu.memory_space<vmem>>, %arg5: memref<1x4x16x4xf32, #tpu.memory_space<vmem>>, %arg6: memref<1x1x16x4xf32, #tpu.memory_space<vmem>>, %arg7: memref<1x1x16x4xf32, #tpu.memory_space<vmem>>, %arg8: memref<72x4xf32, #tpu.memory_space<vmem>>, %arg9: memref<1x4xf32, #tpu.memory_space<vmem>>, %arg10: memref<1x4x16x4xf32, #tpu.memory_space<vmem>>) attributes {dimension_semantics = [#tpu.dimension_semantics<parallel>, #tpu.dimension_semantics<parallel>], iteration_bounds = array<i64: 2, 4>, scalar_prefetch = 0 : i64, scratch_operands = 0 : i64, tpu.core_type = #tpu.core_type<tc>, window_params = [{transform_indices = @transform_0, window_bounds = array<i64: 1, 4, 16, 4>}, {transform_indices = @transform_1, window_bounds = array<i64: 1, 1, 16, 4>}, {transform_indices = @transform_2, window_bounds = array<i64: 1, 1, 16, 4>}, {transform_indices = @transform_3, window_bounds = array<i64: 1, 4, 16, 4>}, {transform_indices = @transform_4, window_bounds = array<i64: 1, 1, 16, 4>}, {transform_indices = @transform_5, window_bounds = array<i64: 1, 1, 16, 4>}, {pipeline_mode = #tpu.pipeline_mode<synchronous>, transform_indices = @transform_6, window_bounds = array<i64: 72, 4>}, {pipeline_mode = #tpu.pipeline_mode<synchronous>, transform_indices = @transform_7, window_bounds = array<i64: 1, 4>}, {transform_indices = @transform_8, window_bounds = array<i64: 1, 4, 16, 4>}]} {
    %c0_i32 = arith.constant 0 : i32
    %0 = arith.cmpi eq, %arg1, %c0_i32 : i32
    %c3_i32 = arith.constant 3 : i32
    %1 = arith.cmpi eq, %arg1, %c3_i32 : i32
    %cst = arith.constant 0.000000e+00 : f32
    %2 = vector.broadcast %cst : f32 to vector<64x4xf32>
    %c0 = arith.constant 0 : index
    %c0_0 = arith.constant 0 : index
    %c0_1 = arith.constant 0 : index
    %c0_2 = arith.constant 0 : index
    %3 = vector.load %arg2[%c0, %c0_0, %c0_1, %c0_2] : memref<1x4x16x4xf32, #tpu.memory_space<vmem>>, vector<1x4x16x4xf32>
    %4 = vector.shape_cast %3 : vector<1x4x16x4xf32> to vector<4x16x4xf32>
    %c0_3 = arith.constant 0 : index
    %c0_4 = arith.constant 0 : index
    %c0_5 = arith.constant 0 : index
    %c0_6 = arith.constant 0 : index
    %5 = vector.load %arg3[%c0_3, %c0_4, %c0_5, %c0_6] : memref<1x1x16x4xf32, #tpu.memory_space<vmem>>, vector<1x1x16x4xf32>
    %6 = vector.shape_cast %5 : vector<1x1x16x4xf32> to vector<1x16x4xf32>
    %c0_7 = arith.constant 0 : index
    %c0_8 = arith.constant 0 : index
    %c0_9 = arith.constant 0 : index
    %c0_10 = arith.constant 0 : index
    %7 = vector.load %arg4[%c0_7, %c0_8, %c0_9, %c0_10] : memref<1x1x16x4xf32, #tpu.memory_space<vmem>>, vector<1x1x16x4xf32>
    %8 = vector.shape_cast %7 : vector<1x1x16x4xf32> to vector<1x16x4xf32>
    %cst_11 = arith.constant 0.000000e+00 : f32
    %9 = vector.broadcast %cst_11 : f32 to vector<1x16x4xf32>
    %10 = arith.select %0, %9, %6 : vector<1x16x4xf32>
    %cst_12 = arith.constant 0.000000e+00 : f32
    %11 = vector.broadcast %cst_12 : f32 to vector<1x16x4xf32>
    %12 = arith.select %1, %11, %8 : vector<1x16x4xf32>
    %13 = tpu.concatenate %10, %4, %12 in 0 : vector<1x16x4xf32>, vector<4x16x4xf32>, vector<1x16x4xf32> -> vector<6x16x4xf32>
    %cst_13 = arith.constant 0.000000e+00 : f32
    %14 = vector.broadcast %cst_13 : f32 to vector<6x1x4xf32>
    %15 = tpu.concatenate %14, %13, %14 in 1 : vector<6x1x4xf32>, vector<6x16x4xf32>, vector<6x1x4xf32> -> vector<6x18x4xf32>
    %16 = vector.extract_strided_slice %15 {offsets = [0, 0, 0], sizes = [4, 16, 4], strides = [1, 1, 1]} : vector<6x18x4xf32> to vector<4x16x4xf32>
    %17 = vector.shape_cast %16 : vector<4x16x4xf32> to vector<64x4xf32>
    %c0_14 = arith.constant 0 : index
    %c0_15 = arith.constant 0 : index
    %18 = vector.load %arg8[%c0_14, %c0_15] : memref<72x4xf32, #tpu.memory_space<vmem>>, vector<4x4xf32>
    %cst_16 = arith.constant dense<0.000000e+00> : vector<64x4xf32>
    %19 = tpu.matmul %17, %18, %cst_16 {dimension_numbers = #tpu.dot_dimension_numbers<[1], [0], [0], [1], [0, 0, 1, 1], [], []>} : vector<64x4xf32>, vector<4x4xf32>, vector<64x4xf32> -> vector<64x4xf32>
    %20 = arith.addf %2, %19 : vector<64x4xf32>
    %21 = vector.extract_strided_slice %15 {offsets = [0, 1, 0], sizes = [4, 16, 4], strides = [1, 1, 1]} : vector<6x18x4xf32> to vector<4x16x4xf32>
    %22 = vector.shape_cast %21 : vector<4x16x4xf32> to vector<64x4xf32>
    %c4 = arith.constant 4 : index
    %c0_17 = arith.constant 0 : index
    %23 = vector.load %arg8[%c4, %c0_17] : memref<72x4xf32, #tpu.memory_space<vmem>>, vector<4x4xf32>
    %cst_18 = arith.constant dense<0.000000e+00> : vector<64x4xf32>
    %24 = tpu.matmul %22, %23, %cst_18 {dimension_numbers = #tpu.dot_dimension_numbers<[1], [0], [0], [1], [0, 0, 1, 1], [], []>} : vector<64x4xf32>, vector<4x4xf32>, vector<64x4xf32> -> vector<64x4xf32>
    %25 = arith.addf %20, %24 : vector<64x4xf32>
    %26 = vector.extract_strided_slice %15 {offsets = [0, 2, 0], sizes = [4, 16, 4], strides = [1, 1, 1]} : vector<6x18x4xf32> to vector<4x16x4xf32>
    %27 = vector.shape_cast %26 : vector<4x16x4xf32> to vector<64x4xf32>
    %c8 = arith.constant 8 : index
    %c0_19 = arith.constant 0 : index
    %28 = vector.load %arg8[%c8, %c0_19] : memref<72x4xf32, #tpu.memory_space<vmem>>, vector<4x4xf32>
    %cst_20 = arith.constant dense<0.000000e+00> : vector<64x4xf32>
    %29 = tpu.matmul %27, %28, %cst_20 {dimension_numbers = #tpu.dot_dimension_numbers<[1], [0], [0], [1], [0, 0, 1, 1], [], []>} : vector<64x4xf32>, vector<4x4xf32>, vector<64x4xf32> -> vector<64x4xf32>
    %30 = arith.addf %25, %29 : vector<64x4xf32>
    %31 = vector.extract_strided_slice %15 {offsets = [1, 0, 0], sizes = [4, 16, 4], strides = [1, 1, 1]} : vector<6x18x4xf32> to vector<4x16x4xf32>
    %32 = vector.shape_cast %31 : vector<4x16x4xf32> to vector<64x4xf32>
    %c12 = arith.constant 12 : index
    %c0_21 = arith.constant 0 : index
    %33 = vector.load %arg8[%c12, %c0_21] : memref<72x4xf32, #tpu.memory_space<vmem>>, vector<4x4xf32>
    %cst_22 = arith.constant dense<0.000000e+00> : vector<64x4xf32>
    %34 = tpu.matmul %32, %33, %cst_22 {dimension_numbers = #tpu.dot_dimension_numbers<[1], [0], [0], [1], [0, 0, 1, 1], [], []>} : vector<64x4xf32>, vector<4x4xf32>, vector<64x4xf32> -> vector<64x4xf32>
    %35 = arith.addf %30, %34 : vector<64x4xf32>
    %36 = vector.extract_strided_slice %15 {offsets = [1, 1, 0], sizes = [4, 16, 4], strides = [1, 1, 1]} : vector<6x18x4xf32> to vector<4x16x4xf32>
    %37 = vector.shape_cast %36 : vector<4x16x4xf32> to vector<64x4xf32>
    %c16 = arith.constant 16 : index
    %c0_23 = arith.constant 0 : index
    %38 = vector.load %arg8[%c16, %c0_23] : memref<72x4xf32, #tpu.memory_space<vmem>>, vector<4x4xf32>
    %cst_24 = arith.constant dense<0.000000e+00> : vector<64x4xf32>
    %39 = tpu.matmul %37, %38, %cst_24 {dimension_numbers = #tpu.dot_dimension_numbers<[1], [0], [0], [1], [0, 0, 1, 1], [], []>} : vector<64x4xf32>, vector<4x4xf32>, vector<64x4xf32> -> vector<64x4xf32>
    %40 = arith.addf %35, %39 : vector<64x4xf32>
    %41 = vector.extract_strided_slice %15 {offsets = [1, 2, 0], sizes = [4, 16, 4], strides = [1, 1, 1]} : vector<6x18x4xf32> to vector<4x16x4xf32>
    %42 = vector.shape_cast %41 : vector<4x16x4xf32> to vector<64x4xf32>
    %c20 = arith.constant 20 : index
    %c0_25 = arith.constant 0 : index
    %43 = vector.load %arg8[%c20, %c0_25] : memref<72x4xf32, #tpu.memory_space<vmem>>, vector<4x4xf32>
    %cst_26 = arith.constant dense<0.000000e+00> : vector<64x4xf32>
    %44 = tpu.matmul %42, %43, %cst_26 {dimension_numbers = #tpu.dot_dimension_numbers<[1], [0], [0], [1], [0, 0, 1, 1], [], []>} : vector<64x4xf32>, vector<4x4xf32>, vector<64x4xf32> -> vector<64x4xf32>
    %45 = arith.addf %40, %44 : vector<64x4xf32>
    %46 = vector.extract_strided_slice %15 {offsets = [2, 0, 0], sizes = [4, 16, 4], strides = [1, 1, 1]} : vector<6x18x4xf32> to vector<4x16x4xf32>
    %47 = vector.shape_cast %46 : vector<4x16x4xf32> to vector<64x4xf32>
    %c24 = arith.constant 24 : index
    %c0_27 = arith.constant 0 : index
    %48 = vector.load %arg8[%c24, %c0_27] : memref<72x4xf32, #tpu.memory_space<vmem>>, vector<4x4xf32>
    %cst_28 = arith.constant dense<0.000000e+00> : vector<64x4xf32>
    %49 = tpu.matmul %47, %48, %cst_28 {dimension_numbers = #tpu.dot_dimension_numbers<[1], [0], [0], [1], [0, 0, 1, 1], [], []>} : vector<64x4xf32>, vector<4x4xf32>, vector<64x4xf32> -> vector<64x4xf32>
    %50 = arith.addf %45, %49 : vector<64x4xf32>
    %51 = vector.extract_strided_slice %15 {offsets = [2, 1, 0], sizes = [4, 16, 4], strides = [1, 1, 1]} : vector<6x18x4xf32> to vector<4x16x4xf32>
    %52 = vector.shape_cast %51 : vector<4x16x4xf32> to vector<64x4xf32>
    %c28 = arith.constant 28 : index
    %c0_29 = arith.constant 0 : index
    %53 = vector.load %arg8[%c28, %c0_29] : memref<72x4xf32, #tpu.memory_space<vmem>>, vector<4x4xf32>
    %cst_30 = arith.constant dense<0.000000e+00> : vector<64x4xf32>
    %54 = tpu.matmul %52, %53, %cst_30 {dimension_numbers = #tpu.dot_dimension_numbers<[1], [0], [0], [1], [0, 0, 1, 1], [], []>} : vector<64x4xf32>, vector<4x4xf32>, vector<64x4xf32> -> vector<64x4xf32>
    %55 = arith.addf %50, %54 : vector<64x4xf32>
    %56 = vector.extract_strided_slice %15 {offsets = [2, 2, 0], sizes = [4, 16, 4], strides = [1, 1, 1]} : vector<6x18x4xf32> to vector<4x16x4xf32>
    %57 = vector.shape_cast %56 : vector<4x16x4xf32> to vector<64x4xf32>
    %c32 = arith.constant 32 : index
    %c0_31 = arith.constant 0 : index
    %58 = vector.load %arg8[%c32, %c0_31] : memref<72x4xf32, #tpu.memory_space<vmem>>, vector<4x4xf32>
    %cst_32 = arith.constant dense<0.000000e+00> : vector<64x4xf32>
    %59 = tpu.matmul %57, %58, %cst_32 {dimension_numbers = #tpu.dot_dimension_numbers<[1], [0], [0], [1], [0, 0, 1, 1], [], []>} : vector<64x4xf32>, vector<4x4xf32>, vector<64x4xf32> -> vector<64x4xf32>
    %60 = arith.addf %55, %59 : vector<64x4xf32>
    %c0_33 = arith.constant 0 : index
    %c0_34 = arith.constant 0 : index
    %c0_35 = arith.constant 0 : index
    %c0_36 = arith.constant 0 : index
    %61 = vector.load %arg5[%c0_33, %c0_34, %c0_35, %c0_36] : memref<1x4x16x4xf32, #tpu.memory_space<vmem>>, vector<1x4x16x4xf32>
    %62 = vector.shape_cast %61 : vector<1x4x16x4xf32> to vector<4x16x4xf32>
    %c0_37 = arith.constant 0 : index
    %c0_38 = arith.constant 0 : index
    %c0_39 = arith.constant 0 : index
    %c0_40 = arith.constant 0 : index
    %63 = vector.load %arg6[%c0_37, %c0_38, %c0_39, %c0_40] : memref<1x1x16x4xf32, #tpu.memory_space<vmem>>, vector<1x1x16x4xf32>
    %64 = vector.shape_cast %63 : vector<1x1x16x4xf32> to vector<1x16x4xf32>
    %c0_41 = arith.constant 0 : index
    %c0_42 = arith.constant 0 : index
    %c0_43 = arith.constant 0 : index
    %c0_44 = arith.constant 0 : index
    %65 = vector.load %arg7[%c0_41, %c0_42, %c0_43, %c0_44] : memref<1x1x16x4xf32, #tpu.memory_space<vmem>>, vector<1x1x16x4xf32>
    %66 = vector.shape_cast %65 : vector<1x1x16x4xf32> to vector<1x16x4xf32>
    %cst_45 = arith.constant 0.000000e+00 : f32
    %67 = vector.broadcast %cst_45 : f32 to vector<1x16x4xf32>
    %68 = arith.select %0, %67, %64 : vector<1x16x4xf32>
    %cst_46 = arith.constant 0.000000e+00 : f32
    %69 = vector.broadcast %cst_46 : f32 to vector<1x16x4xf32>
    %70 = arith.select %1, %69, %66 : vector<1x16x4xf32>
    %71 = tpu.concatenate %68, %62, %70 in 0 : vector<1x16x4xf32>, vector<4x16x4xf32>, vector<1x16x4xf32> -> vector<6x16x4xf32>
    %cst_47 = arith.constant 0.000000e+00 : f32
    %72 = vector.broadcast %cst_47 : f32 to vector<6x1x4xf32>
    %73 = tpu.concatenate %72, %71, %72 in 1 : vector<6x1x4xf32>, vector<6x16x4xf32>, vector<6x1x4xf32> -> vector<6x18x4xf32>
    %74 = vector.extract_strided_slice %73 {offsets = [0, 0, 0], sizes = [4, 16, 4], strides = [1, 1, 1]} : vector<6x18x4xf32> to vector<4x16x4xf32>
    %75 = vector.shape_cast %74 : vector<4x16x4xf32> to vector<64x4xf32>
    %c36 = arith.constant 36 : index
    %c0_48 = arith.constant 0 : index
    %76 = vector.load %arg8[%c36, %c0_48] : memref<72x4xf32, #tpu.memory_space<vmem>>, vector<4x4xf32>
    %cst_49 = arith.constant dense<0.000000e+00> : vector<64x4xf32>
    %77 = tpu.matmul %75, %76, %cst_49 {dimension_numbers = #tpu.dot_dimension_numbers<[1], [0], [0], [1], [0, 0, 1, 1], [], []>} : vector<64x4xf32>, vector<4x4xf32>, vector<64x4xf32> -> vector<64x4xf32>
    %78 = arith.addf %60, %77 : vector<64x4xf32>
    %79 = vector.extract_strided_slice %73 {offsets = [0, 1, 0], sizes = [4, 16, 4], strides = [1, 1, 1]} : vector<6x18x4xf32> to vector<4x16x4xf32>
    %80 = vector.shape_cast %79 : vector<4x16x4xf32> to vector<64x4xf32>
    %c40 = arith.constant 40 : index
    %c0_50 = arith.constant 0 : index
    %81 = vector.load %arg8[%c40, %c0_50] : memref<72x4xf32, #tpu.memory_space<vmem>>, vector<4x4xf32>
    %cst_51 = arith.constant dense<0.000000e+00> : vector<64x4xf32>
    %82 = tpu.matmul %80, %81, %cst_51 {dimension_numbers = #tpu.dot_dimension_numbers<[1], [0], [0], [1], [0, 0, 1, 1], [], []>} : vector<64x4xf32>, vector<4x4xf32>, vector<64x4xf32> -> vector<64x4xf32>
    %83 = arith.addf %78, %82 : vector<64x4xf32>
    %84 = vector.extract_strided_slice %73 {offsets = [0, 2, 0], sizes = [4, 16, 4], strides = [1, 1, 1]} : vector<6x18x4xf32> to vector<4x16x4xf32>
    %85 = vector.shape_cast %84 : vector<4x16x4xf32> to vector<64x4xf32>
    %c44 = arith.constant 44 : index
    %c0_52 = arith.constant 0 : index
    %86 = vector.load %arg8[%c44, %c0_52] : memref<72x4xf32, #tpu.memory_space<vmem>>, vector<4x4xf32>
    %cst_53 = arith.constant dense<0.000000e+00> : vector<64x4xf32>
    %87 = tpu.matmul %85, %86, %cst_53 {dimension_numbers = #tpu.dot_dimension_numbers<[1], [0], [0], [1], [0, 0, 1, 1], [], []>} : vector<64x4xf32>, vector<4x4xf32>, vector<64x4xf32> -> vector<64x4xf32>
    %88 = arith.addf %83, %87 : vector<64x4xf32>
    %89 = vector.extract_strided_slice %73 {offsets = [1, 0, 0], sizes = [4, 16, 4], strides = [1, 1, 1]} : vector<6x18x4xf32> to vector<4x16x4xf32>
    %90 = vector.shape_cast %89 : vector<4x16x4xf32> to vector<64x4xf32>
    %c48 = arith.constant 48 : index
    %c0_54 = arith.constant 0 : index
    %91 = vector.load %arg8[%c48, %c0_54] : memref<72x4xf32, #tpu.memory_space<vmem>>, vector<4x4xf32>
    %cst_55 = arith.constant dense<0.000000e+00> : vector<64x4xf32>
    %92 = tpu.matmul %90, %91, %cst_55 {dimension_numbers = #tpu.dot_dimension_numbers<[1], [0], [0], [1], [0, 0, 1, 1], [], []>} : vector<64x4xf32>, vector<4x4xf32>, vector<64x4xf32> -> vector<64x4xf32>
    %93 = arith.addf %88, %92 : vector<64x4xf32>
    %94 = vector.extract_strided_slice %73 {offsets = [1, 1, 0], sizes = [4, 16, 4], strides = [1, 1, 1]} : vector<6x18x4xf32> to vector<4x16x4xf32>
    %95 = vector.shape_cast %94 : vector<4x16x4xf32> to vector<64x4xf32>
    %c52 = arith.constant 52 : index
    %c0_56 = arith.constant 0 : index
    %96 = vector.load %arg8[%c52, %c0_56] : memref<72x4xf32, #tpu.memory_space<vmem>>, vector<4x4xf32>
    %cst_57 = arith.constant dense<0.000000e+00> : vector<64x4xf32>
    %97 = tpu.matmul %95, %96, %cst_57 {dimension_numbers = #tpu.dot_dimension_numbers<[1], [0], [0], [1], [0, 0, 1, 1], [], []>} : vector<64x4xf32>, vector<4x4xf32>, vector<64x4xf32> -> vector<64x4xf32>
    %98 = arith.addf %93, %97 : vector<64x4xf32>
    %99 = vector.extract_strided_slice %73 {offsets = [1, 2, 0], sizes = [4, 16, 4], strides = [1, 1, 1]} : vector<6x18x4xf32> to vector<4x16x4xf32>
    %100 = vector.shape_cast %99 : vector<4x16x4xf32> to vector<64x4xf32>
    %c56 = arith.constant 56 : index
    %c0_58 = arith.constant 0 : index
    %101 = vector.load %arg8[%c56, %c0_58] : memref<72x4xf32, #tpu.memory_space<vmem>>, vector<4x4xf32>
    %cst_59 = arith.constant dense<0.000000e+00> : vector<64x4xf32>
    %102 = tpu.matmul %100, %101, %cst_59 {dimension_numbers = #tpu.dot_dimension_numbers<[1], [0], [0], [1], [0, 0, 1, 1], [], []>} : vector<64x4xf32>, vector<4x4xf32>, vector<64x4xf32> -> vector<64x4xf32>
    %103 = arith.addf %98, %102 : vector<64x4xf32>
    %104 = vector.extract_strided_slice %73 {offsets = [2, 0, 0], sizes = [4, 16, 4], strides = [1, 1, 1]} : vector<6x18x4xf32> to vector<4x16x4xf32>
    %105 = vector.shape_cast %104 : vector<4x16x4xf32> to vector<64x4xf32>
    %c60 = arith.constant 60 : index
    %c0_60 = arith.constant 0 : index
    %106 = vector.load %arg8[%c60, %c0_60] : memref<72x4xf32, #tpu.memory_space<vmem>>, vector<4x4xf32>
    %cst_61 = arith.constant dense<0.000000e+00> : vector<64x4xf32>
    %107 = tpu.matmul %105, %106, %cst_61 {dimension_numbers = #tpu.dot_dimension_numbers<[1], [0], [0], [1], [0, 0, 1, 1], [], []>} : vector<64x4xf32>, vector<4x4xf32>, vector<64x4xf32> -> vector<64x4xf32>
    %108 = arith.addf %103, %107 : vector<64x4xf32>
    %109 = vector.extract_strided_slice %73 {offsets = [2, 1, 0], sizes = [4, 16, 4], strides = [1, 1, 1]} : vector<6x18x4xf32> to vector<4x16x4xf32>
    %110 = vector.shape_cast %109 : vector<4x16x4xf32> to vector<64x4xf32>
    %c64 = arith.constant 64 : index
    %c0_62 = arith.constant 0 : index
    %111 = vector.load %arg8[%c64, %c0_62] : memref<72x4xf32, #tpu.memory_space<vmem>>, vector<4x4xf32>
    %cst_63 = arith.constant dense<0.000000e+00> : vector<64x4xf32>
    %112 = tpu.matmul %110, %111, %cst_63 {dimension_numbers = #tpu.dot_dimension_numbers<[1], [0], [0], [1], [0, 0, 1, 1], [], []>} : vector<64x4xf32>, vector<4x4xf32>, vector<64x4xf32> -> vector<64x4xf32>
    %113 = arith.addf %108, %112 : vector<64x4xf32>
    %114 = vector.extract_strided_slice %73 {offsets = [2, 2, 0], sizes = [4, 16, 4], strides = [1, 1, 1]} : vector<6x18x4xf32> to vector<4x16x4xf32>
    %115 = vector.shape_cast %114 : vector<4x16x4xf32> to vector<64x4xf32>
    %c68 = arith.constant 68 : index
    %c0_64 = arith.constant 0 : index
    %116 = vector.load %arg8[%c68, %c0_64] : memref<72x4xf32, #tpu.memory_space<vmem>>, vector<4x4xf32>
    %cst_65 = arith.constant dense<0.000000e+00> : vector<64x4xf32>
    %117 = tpu.matmul %115, %116, %cst_65 {dimension_numbers = #tpu.dot_dimension_numbers<[1], [0], [0], [1], [0, 0, 1, 1], [], []>} : vector<64x4xf32>, vector<4x4xf32>, vector<64x4xf32> -> vector<64x4xf32>
    %118 = arith.addf %113, %117 : vector<64x4xf32>
    %c0_66 = arith.constant 0 : index
    %c0_67 = arith.constant 0 : index
    %119 = vector.load %arg9[%c0_66, %c0_67] : memref<1x4xf32, #tpu.memory_space<vmem>>, vector<1x4xf32>
    %120 = vector.broadcast %119 : vector<1x4xf32> to vector<64x4xf32>
    %121 = arith.addf %118, %120 : vector<64x4xf32>
    %cst_68 = arith.constant 0.000000e+00 : f32
    %122 = vector.broadcast %cst_68 : f32 to vector<64x4xf32>
    %123 = arith.maximumf %121, %122 : vector<64x4xf32>
    %124 = vector.shape_cast %123 : vector<64x4xf32> to vector<4x16x4xf32>
    %c0_69 = arith.constant 0 : index
    %c0_70 = arith.constant 0 : index
    %c0_71 = arith.constant 0 : index
    %c0_72 = arith.constant 0 : index
    %125 = vector.load %arg10[%c0_69, %c0_70, %c0_71, %c0_72] : memref<1x4x16x4xf32, #tpu.memory_space<vmem>>, vector<1x4x16x4xf32>
    %126 = vector.shape_cast %125 : vector<1x4x16x4xf32> to vector<4x16x4xf32>
    %127 = vector.shape_cast %124 : vector<4x16x4xf32> to vector<1x4x16x4xf32>
    tpu.vector_store %arg10[%c0_69, %c0_70, %c0_71, %c0_72], %127 {strides = array<i32>} : memref<1x4x16x4xf32, #tpu.memory_space<vmem>>, vector<1x4x16x4xf32>,
    return
  }
  func.func @transform_0(%arg0: i32, %arg1: i32) -> (i32, i32, i32, i32) {
    %c0_i32 = arith.constant 0 : i32
    %c0_i32_0 = arith.constant 0 : i32
    %c0_i32_1 = arith.constant 0 : i32
    return %arg0, %arg1, %c0_i32, %c0_i32_0 : i32, i32, i32, i32
  }
  func.func @transform_1(%arg0: i32, %arg1: i32) -> (i32, i32, i32, i32) {
    %c4_i32 = arith.constant 4 : i32
    %0 = arith.muli %arg1, %c4_i32 : i32
    %c1_i32 = arith.constant 1 : i32
    %1 = arith.subi %0, %c1_i32 : i32
    %c0_i32 = arith.constant 0 : i32
    %2 = arith.maxsi %1, %c0_i32 : i32
    %c0_i32_0 = arith.constant 0 : i32
    %c0_i32_1 = arith.constant 0 : i32
    %c0_i32_2 = arith.constant 0 : i32
    return %arg0, %2, %c0_i32_0, %c0_i32_1 : i32, i32, i32, i32
  }
  func.func @transform_2(%arg0: i32, %arg1: i32) -> (i32, i32, i32, i32) {
    %c4_i32 = arith.constant 4 : i32
    %0 = arith.muli %arg1, %c4_i32 : i32
    %c4_i32_0 = arith.constant 4 : i32
    %1 = arith.addi %0, %c4_i32_0 : i32
    %c15_i32 = arith.constant 15 : i32
    %2 = arith.minsi %1, %c15_i32 : i32
    %c0_i32 = arith.constant 0 : i32
    %c0_i32_1 = arith.constant 0 : i32
    %c0_i32_2 = arith.constant 0 : i32
    return %arg0, %2, %c0_i32, %c0_i32_1 : i32, i32, i32, i32
  }
  func.func @transform_3(%arg0: i32, %arg1: i32) -> (i32, i32, i32, i32) {
    %c0_i32 = arith.constant 0 : i32
    %c0_i32_0 = arith.constant 0 : i32
    %c0_i32_1 = arith.constant 0 : i32
    return %arg0, %arg1, %c0_i32, %c0_i32_0 : i32, i32, i32, i32
  }
  func.func @transform_4(%arg0: i32, %arg1: i32) -> (i32, i32, i32, i32) {
    %c4_i32 = arith.constant 4 : i32
    %0 = arith.muli %arg1, %c4_i32 : i32
    %c1_i32 = arith.constant 1 : i32
    %1 = arith.subi %0, %c1_i32 : i32
    %c0_i32 = arith.constant 0 : i32
    %2 = arith.maxsi %1, %c0_i32 : i32
    %c0_i32_0 = arith.constant 0 : i32
    %c0_i32_1 = arith.constant 0 : i32
    %c0_i32_2 = arith.constant 0 : i32
    return %arg0, %2, %c0_i32_0, %c0_i32_1 : i32, i32, i32, i32
  }
  func.func @transform_5(%arg0: i32, %arg1: i32) -> (i32, i32, i32, i32) {
    %c4_i32 = arith.constant 4 : i32
    %0 = arith.muli %arg1, %c4_i32 : i32
    %c4_i32_0 = arith.constant 4 : i32
    %1 = arith.addi %0, %c4_i32_0 : i32
    %c15_i32 = arith.constant 15 : i32
    %2 = arith.minsi %1, %c15_i32 : i32
    %c0_i32 = arith.constant 0 : i32
    %c0_i32_1 = arith.constant 0 : i32
    %c0_i32_2 = arith.constant 0 : i32
    return %arg0, %2, %c0_i32, %c0_i32_1 : i32, i32, i32, i32
  }
  func.func @transform_6(%arg0: i32, %arg1: i32) -> (i32, i32) {
    %c0_i32 = arith.constant 0 : i32
    %c0_i32_0 = arith.constant 0 : i32
    %c0_i32_1 = arith.constant 0 : i32
    return %c0_i32, %c0_i32_0 : i32, i32
  }
  func.func @transform_7(%arg0: i32, %arg1: i32) -> (i32, i32) {
    %c0_i32 = arith.constant 0 : i32
    %c0_i32_0 = arith.constant 0 : i32
    %c0_i32_1 = arith.constant 0 : i32
    return %c0_i32, %c0_i32_0 : i32, i32
  }
  func.func @transform_8(%arg0: i32, %arg1: i32) -> (i32, i32, i32, i32) {
    %c0_i32 = arith.constant 0 : i32
    %c0_i32_0 = arith.constant 0 : i32
    %c0_i32_1 = arith.constant 0 : i32
    return %arg0, %arg1, %c0_i32, %c0_i32_0 : i32, i32, i32, i32
  }
}

module attributes {stable_mosaic.version = 11 : i64} {
  func.func @_upconv2x2_kernel(%arg0: i32, %arg1: i32, %arg2: memref<1x4x8x8xf32, #tpu.memory_space<vmem>>, %arg3: memref<2x8x8xf32, #tpu.memory_space<vmem>>, %arg4: memref<1x8xf32, #tpu.memory_space<vmem>>, %arg5: memref<1x4x2x8x8xf32, #tpu.memory_space<vmem>>) attributes {dimension_semantics = [#tpu.dimension_semantics<parallel>, #tpu.dimension_semantics<parallel>], iteration_bounds = array<i64: 2, 2>, scalar_prefetch = 0 : i64, scratch_operands = 0 : i64, tpu.core_type = #tpu.core_type<tc>, window_params = [{transform_indices = @transform_0, window_bounds = array<i64: 1, 4, 8, 8>}, {pipeline_mode = #tpu.pipeline_mode<synchronous>, transform_indices = @transform_1, window_bounds = array<i64: 2, 8, 8>}, {pipeline_mode = #tpu.pipeline_mode<synchronous>, transform_indices = @transform_2, window_bounds = array<i64: 1, 8>}, {transform_indices = @transform_3, window_bounds = array<i64: 1, 4, 2, 8, 8>}]} {
    %c0 = arith.constant 0 : index
    %c0_0 = arith.constant 0 : index
    %c0_1 = arith.constant 0 : index
    %c0_2 = arith.constant 0 : index
    %0 = vector.load %arg2[%c0, %c0_0, %c0_1, %c0_2] : memref<1x4x8x8xf32, #tpu.memory_space<vmem>>, vector<1x4x8x8xf32>
    %1 = vector.shape_cast %0 : vector<1x4x8x8xf32> to vector<4x8x8xf32>
    %2 = vector.shape_cast %1 : vector<4x8x8xf32> to vector<32x8xf32>
    %c0_3 = arith.constant 0 : index
    %c0_4 = arith.constant 0 : index
    %3 = vector.load %arg4[%c0_3, %c0_4] : memref<1x8xf32, #tpu.memory_space<vmem>>, vector<1x8xf32>
    %c0_5 = arith.constant 0 : index
    %c0_6 = arith.constant 0 : index
    %c0_7 = arith.constant 0 : index
    %4 = vector.load %arg3[%c0_5, %c0_6, %c0_7] : memref<2x8x8xf32, #tpu.memory_space<vmem>>, vector<1x8x8xf32>
    %5 = vector.shape_cast %4 : vector<1x8x8xf32> to vector<8x8xf32>
    %cst = arith.constant dense<0.000000e+00> : vector<32x8xf32>
    %6 = tpu.matmul %2, %5, %cst {dimension_numbers = #tpu.dot_dimension_numbers<[1], [0], [0], [1], [0, 0, 1, 1], [], []>} : vector<32x8xf32>, vector<8x8xf32>, vector<32x8xf32> -> vector<32x8xf32>
    %7 = vector.broadcast %3 : vector<1x8xf32> to vector<32x8xf32>
    %8 = arith.addf %6, %7 : vector<32x8xf32>
    %9 = vector.shape_cast %8 : vector<32x8xf32> to vector<4x1x8x8xf32>
    %c0_8 = arith.constant 0 : index
    %c0_9 = arith.constant 0 : index
    %c0_10 = arith.constant 0 : index
    %c0_11 = arith.constant 0 : index
    %c0_12 = arith.constant 0 : index
    %10 = vector.load %arg5[%c0_8, %c0_9, %c0_10, %c0_11, %c0_12] : memref<1x4x2x8x8xf32, #tpu.memory_space<vmem>>, vector<1x4x1x8x8xf32>
    %11 = vector.shape_cast %10 : vector<1x4x1x8x8xf32> to vector<4x1x8x8xf32>
    %12 = vector.shape_cast %9 : vector<4x1x8x8xf32> to vector<1x4x1x8x8xf32>
    tpu.vector_store %arg5[%c0_8, %c0_9, %c0_10, %c0_11, %c0_12], %12 {strides = array<i32>} : memref<1x4x2x8x8xf32, #tpu.memory_space<vmem>>, vector<1x4x1x8x8xf32>,
    %c1 = arith.constant 1 : index
    %c0_13 = arith.constant 0 : index
    %c0_14 = arith.constant 0 : index
    %13 = vector.load %arg3[%c1, %c0_13, %c0_14] : memref<2x8x8xf32, #tpu.memory_space<vmem>>, vector<1x8x8xf32>
    %14 = vector.shape_cast %13 : vector<1x8x8xf32> to vector<8x8xf32>
    %cst_15 = arith.constant dense<0.000000e+00> : vector<32x8xf32>
    %15 = tpu.matmul %2, %14, %cst_15 {dimension_numbers = #tpu.dot_dimension_numbers<[1], [0], [0], [1], [0, 0, 1, 1], [], []>} : vector<32x8xf32>, vector<8x8xf32>, vector<32x8xf32> -> vector<32x8xf32>
    %16 = vector.broadcast %3 : vector<1x8xf32> to vector<32x8xf32>
    %17 = arith.addf %15, %16 : vector<32x8xf32>
    %18 = vector.shape_cast %17 : vector<32x8xf32> to vector<4x1x8x8xf32>
    %c0_16 = arith.constant 0 : index
    %c0_17 = arith.constant 0 : index
    %c1_18 = arith.constant 1 : index
    %c0_19 = arith.constant 0 : index
    %c0_20 = arith.constant 0 : index
    %19 = vector.load %arg5[%c0_16, %c0_17, %c1_18, %c0_19, %c0_20] : memref<1x4x2x8x8xf32, #tpu.memory_space<vmem>>, vector<1x4x1x8x8xf32>
    %20 = vector.shape_cast %19 : vector<1x4x1x8x8xf32> to vector<4x1x8x8xf32>
    %21 = vector.shape_cast %18 : vector<4x1x8x8xf32> to vector<1x4x1x8x8xf32>
    tpu.vector_store %arg5[%c0_16, %c0_17, %c1_18, %c0_19, %c0_20], %21 {strides = array<i32>} : memref<1x4x2x8x8xf32, #tpu.memory_space<vmem>>, vector<1x4x1x8x8xf32>,
    return
  }
  func.func @transform_0(%arg0: i32, %arg1: i32) -> (i32, i32, i32, i32) {
    %c0_i32 = arith.constant 0 : i32
    %c0_i32_0 = arith.constant 0 : i32
    %c0_i32_1 = arith.constant 0 : i32
    return %arg0, %arg1, %c0_i32, %c0_i32_0 : i32, i32, i32, i32
  }
  func.func @transform_1(%arg0: i32, %arg1: i32) -> (i32, i32, i32) {
    %c0_i32 = arith.constant 0 : i32
    %c0_i32_0 = arith.constant 0 : i32
    %c0_i32_1 = arith.constant 0 : i32
    %c0_i32_2 = arith.constant 0 : i32
    return %c0_i32, %c0_i32_0, %c0_i32_1 : i32, i32, i32
  }
  func.func @transform_2(%arg0: i32, %arg1: i32) -> (i32, i32) {
    %c0_i32 = arith.constant 0 : i32
    %c0_i32_0 = arith.constant 0 : i32
    %c0_i32_1 = arith.constant 0 : i32
    return %c0_i32, %c0_i32_0 : i32, i32
  }
  func.func @transform_3(%arg0: i32, %arg1: i32) -> (i32, i32, i32, i32, i32) {
    %c0_i32 = arith.constant 0 : i32
    %c0_i32_0 = arith.constant 0 : i32
    %c0_i32_1 = arith.constant 0 : i32
    %c0_i32_2 = arith.constant 0 : i32
    return %arg0, %arg1, %c0_i32, %c0_i32_0, %c0_i32_1 : i32, i32, i32, i32, i32
  }
}

module attributes {stable_mosaic.version = 11 : i64} {
  func.func @kernel(%arg0: i32, %arg1: i32, %arg2: memref<1x4x16x4xf32, #tpu.memory_space<vmem>>, %arg3: memref<1x1x16x4xf32, #tpu.memory_space<vmem>>, %arg4: memref<1x1x16x4xf32, #tpu.memory_space<vmem>>, %arg5: memref<36x4xf32, #tpu.memory_space<vmem>>, %arg6: memref<1x4xf32, #tpu.memory_space<vmem>>, %arg7: memref<1x4x16x4xf32, #tpu.memory_space<vmem>>) attributes {dimension_semantics = [#tpu.dimension_semantics<parallel>, #tpu.dimension_semantics<parallel>], iteration_bounds = array<i64: 2, 4>, scalar_prefetch = 0 : i64, scratch_operands = 0 : i64, tpu.core_type = #tpu.core_type<tc>, window_params = [{transform_indices = @transform_0, window_bounds = array<i64: 1, 4, 16, 4>}, {transform_indices = @transform_1, window_bounds = array<i64: 1, 1, 16, 4>}, {transform_indices = @transform_2, window_bounds = array<i64: 1, 1, 16, 4>}, {pipeline_mode = #tpu.pipeline_mode<synchronous>, transform_indices = @transform_3, window_bounds = array<i64: 36, 4>}, {pipeline_mode = #tpu.pipeline_mode<synchronous>, transform_indices = @transform_4, window_bounds = array<i64: 1, 4>}, {transform_indices = @transform_5, window_bounds = array<i64: 1, 4, 16, 4>}]} {
    %c0_i32 = arith.constant 0 : i32
    %0 = arith.cmpi eq, %arg1, %c0_i32 : i32
    %c3_i32 = arith.constant 3 : i32
    %1 = arith.cmpi eq, %arg1, %c3_i32 : i32
    %cst = arith.constant 0.000000e+00 : f32
    %2 = vector.broadcast %cst : f32 to vector<64x4xf32>
    %c0 = arith.constant 0 : index
    %c0_0 = arith.constant 0 : index
    %c0_1 = arith.constant 0 : index
    %c0_2 = arith.constant 0 : index
    %3 = vector.load %arg2[%c0, %c0_0, %c0_1, %c0_2] : memref<1x4x16x4xf32, #tpu.memory_space<vmem>>, vector<1x4x16x4xf32>
    %4 = vector.shape_cast %3 : vector<1x4x16x4xf32> to vector<4x16x4xf32>
    %c0_3 = arith.constant 0 : index
    %c0_4 = arith.constant 0 : index
    %c0_5 = arith.constant 0 : index
    %c0_6 = arith.constant 0 : index
    %5 = vector.load %arg3[%c0_3, %c0_4, %c0_5, %c0_6] : memref<1x1x16x4xf32, #tpu.memory_space<vmem>>, vector<1x1x16x4xf32>
    %6 = vector.shape_cast %5 : vector<1x1x16x4xf32> to vector<1x16x4xf32>
    %c0_7 = arith.constant 0 : index
    %c0_8 = arith.constant 0 : index
    %c0_9 = arith.constant 0 : index
    %c0_10 = arith.constant 0 : index
    %7 = vector.load %arg4[%c0_7, %c0_8, %c0_9, %c0_10] : memref<1x1x16x4xf32, #tpu.memory_space<vmem>>, vector<1x1x16x4xf32>
    %8 = vector.shape_cast %7 : vector<1x1x16x4xf32> to vector<1x16x4xf32>
    %cst_11 = arith.constant 0.000000e+00 : f32
    %9 = vector.broadcast %cst_11 : f32 to vector<1x16x4xf32>
    %10 = arith.select %0, %9, %6 : vector<1x16x4xf32>
    %cst_12 = arith.constant 0.000000e+00 : f32
    %11 = vector.broadcast %cst_12 : f32 to vector<1x16x4xf32>
    %12 = arith.select %1, %11, %8 : vector<1x16x4xf32>
    %13 = tpu.concatenate %10, %4, %12 in 0 : vector<1x16x4xf32>, vector<4x16x4xf32>, vector<1x16x4xf32> -> vector<6x16x4xf32>
    %cst_13 = arith.constant 0.000000e+00 : f32
    %14 = vector.broadcast %cst_13 : f32 to vector<6x1x4xf32>
    %15 = tpu.concatenate %14, %13, %14 in 1 : vector<6x1x4xf32>, vector<6x16x4xf32>, vector<6x1x4xf32> -> vector<6x18x4xf32>
    %16 = vector.extract_strided_slice %15 {offsets = [0, 0, 0], sizes = [4, 16, 4], strides = [1, 1, 1]} : vector<6x18x4xf32> to vector<4x16x4xf32>
    %17 = vector.shape_cast %16 : vector<4x16x4xf32> to vector<64x4xf32>
    %c0_14 = arith.constant 0 : index
    %c0_15 = arith.constant 0 : index
    %18 = vector.load %arg5[%c0_14, %c0_15] : memref<36x4xf32, #tpu.memory_space<vmem>>, vector<4x4xf32>
    %cst_16 = arith.constant dense<0.000000e+00> : vector<64x4xf32>
    %19 = tpu.matmul %17, %18, %cst_16 {dimension_numbers = #tpu.dot_dimension_numbers<[1], [0], [0], [1], [0, 0, 1, 1], [], []>} : vector<64x4xf32>, vector<4x4xf32>, vector<64x4xf32> -> vector<64x4xf32>
    %20 = arith.addf %2, %19 : vector<64x4xf32>
    %21 = vector.extract_strided_slice %15 {offsets = [0, 1, 0], sizes = [4, 16, 4], strides = [1, 1, 1]} : vector<6x18x4xf32> to vector<4x16x4xf32>
    %22 = vector.shape_cast %21 : vector<4x16x4xf32> to vector<64x4xf32>
    %c4 = arith.constant 4 : index
    %c0_17 = arith.constant 0 : index
    %23 = vector.load %arg5[%c4, %c0_17] : memref<36x4xf32, #tpu.memory_space<vmem>>, vector<4x4xf32>
    %cst_18 = arith.constant dense<0.000000e+00> : vector<64x4xf32>
    %24 = tpu.matmul %22, %23, %cst_18 {dimension_numbers = #tpu.dot_dimension_numbers<[1], [0], [0], [1], [0, 0, 1, 1], [], []>} : vector<64x4xf32>, vector<4x4xf32>, vector<64x4xf32> -> vector<64x4xf32>
    %25 = arith.addf %20, %24 : vector<64x4xf32>
    %26 = vector.extract_strided_slice %15 {offsets = [0, 2, 0], sizes = [4, 16, 4], strides = [1, 1, 1]} : vector<6x18x4xf32> to vector<4x16x4xf32>
    %27 = vector.shape_cast %26 : vector<4x16x4xf32> to vector<64x4xf32>
    %c8 = arith.constant 8 : index
    %c0_19 = arith.constant 0 : index
    %28 = vector.load %arg5[%c8, %c0_19] : memref<36x4xf32, #tpu.memory_space<vmem>>, vector<4x4xf32>
    %cst_20 = arith.constant dense<0.000000e+00> : vector<64x4xf32>
    %29 = tpu.matmul %27, %28, %cst_20 {dimension_numbers = #tpu.dot_dimension_numbers<[1], [0], [0], [1], [0, 0, 1, 1], [], []>} : vector<64x4xf32>, vector<4x4xf32>, vector<64x4xf32> -> vector<64x4xf32>
    %30 = arith.addf %25, %29 : vector<64x4xf32>
    %31 = vector.extract_strided_slice %15 {offsets = [1, 0, 0], sizes = [4, 16, 4], strides = [1, 1, 1]} : vector<6x18x4xf32> to vector<4x16x4xf32>
    %32 = vector.shape_cast %31 : vector<4x16x4xf32> to vector<64x4xf32>
    %c12 = arith.constant 12 : index
    %c0_21 = arith.constant 0 : index
    %33 = vector.load %arg5[%c12, %c0_21] : memref<36x4xf32, #tpu.memory_space<vmem>>, vector<4x4xf32>
    %cst_22 = arith.constant dense<0.000000e+00> : vector<64x4xf32>
    %34 = tpu.matmul %32, %33, %cst_22 {dimension_numbers = #tpu.dot_dimension_numbers<[1], [0], [0], [1], [0, 0, 1, 1], [], []>} : vector<64x4xf32>, vector<4x4xf32>, vector<64x4xf32> -> vector<64x4xf32>
    %35 = arith.addf %30, %34 : vector<64x4xf32>
    %36 = vector.extract_strided_slice %15 {offsets = [1, 1, 0], sizes = [4, 16, 4], strides = [1, 1, 1]} : vector<6x18x4xf32> to vector<4x16x4xf32>
    %37 = vector.shape_cast %36 : vector<4x16x4xf32> to vector<64x4xf32>
    %c16 = arith.constant 16 : index
    %c0_23 = arith.constant 0 : index
    %38 = vector.load %arg5[%c16, %c0_23] : memref<36x4xf32, #tpu.memory_space<vmem>>, vector<4x4xf32>
    %cst_24 = arith.constant dense<0.000000e+00> : vector<64x4xf32>
    %39 = tpu.matmul %37, %38, %cst_24 {dimension_numbers = #tpu.dot_dimension_numbers<[1], [0], [0], [1], [0, 0, 1, 1], [], []>} : vector<64x4xf32>, vector<4x4xf32>, vector<64x4xf32> -> vector<64x4xf32>
    %40 = arith.addf %35, %39 : vector<64x4xf32>
    %41 = vector.extract_strided_slice %15 {offsets = [1, 2, 0], sizes = [4, 16, 4], strides = [1, 1, 1]} : vector<6x18x4xf32> to vector<4x16x4xf32>
    %42 = vector.shape_cast %41 : vector<4x16x4xf32> to vector<64x4xf32>
    %c20 = arith.constant 20 : index
    %c0_25 = arith.constant 0 : index
    %43 = vector.load %arg5[%c20, %c0_25] : memref<36x4xf32, #tpu.memory_space<vmem>>, vector<4x4xf32>
    %cst_26 = arith.constant dense<0.000000e+00> : vector<64x4xf32>
    %44 = tpu.matmul %42, %43, %cst_26 {dimension_numbers = #tpu.dot_dimension_numbers<[1], [0], [0], [1], [0, 0, 1, 1], [], []>} : vector<64x4xf32>, vector<4x4xf32>, vector<64x4xf32> -> vector<64x4xf32>
    %45 = arith.addf %40, %44 : vector<64x4xf32>
    %46 = vector.extract_strided_slice %15 {offsets = [2, 0, 0], sizes = [4, 16, 4], strides = [1, 1, 1]} : vector<6x18x4xf32> to vector<4x16x4xf32>
    %47 = vector.shape_cast %46 : vector<4x16x4xf32> to vector<64x4xf32>
    %c24 = arith.constant 24 : index
    %c0_27 = arith.constant 0 : index
    %48 = vector.load %arg5[%c24, %c0_27] : memref<36x4xf32, #tpu.memory_space<vmem>>, vector<4x4xf32>
    %cst_28 = arith.constant dense<0.000000e+00> : vector<64x4xf32>
    %49 = tpu.matmul %47, %48, %cst_28 {dimension_numbers = #tpu.dot_dimension_numbers<[1], [0], [0], [1], [0, 0, 1, 1], [], []>} : vector<64x4xf32>, vector<4x4xf32>, vector<64x4xf32> -> vector<64x4xf32>
    %50 = arith.addf %45, %49 : vector<64x4xf32>
    %51 = vector.extract_strided_slice %15 {offsets = [2, 1, 0], sizes = [4, 16, 4], strides = [1, 1, 1]} : vector<6x18x4xf32> to vector<4x16x4xf32>
    %52 = vector.shape_cast %51 : vector<4x16x4xf32> to vector<64x4xf32>
    %c28 = arith.constant 28 : index
    %c0_29 = arith.constant 0 : index
    %53 = vector.load %arg5[%c28, %c0_29] : memref<36x4xf32, #tpu.memory_space<vmem>>, vector<4x4xf32>
    %cst_30 = arith.constant dense<0.000000e+00> : vector<64x4xf32>
    %54 = tpu.matmul %52, %53, %cst_30 {dimension_numbers = #tpu.dot_dimension_numbers<[1], [0], [0], [1], [0, 0, 1, 1], [], []>} : vector<64x4xf32>, vector<4x4xf32>, vector<64x4xf32> -> vector<64x4xf32>
    %55 = arith.addf %50, %54 : vector<64x4xf32>
    %56 = vector.extract_strided_slice %15 {offsets = [2, 2, 0], sizes = [4, 16, 4], strides = [1, 1, 1]} : vector<6x18x4xf32> to vector<4x16x4xf32>
    %57 = vector.shape_cast %56 : vector<4x16x4xf32> to vector<64x4xf32>
    %c32 = arith.constant 32 : index
    %c0_31 = arith.constant 0 : index
    %58 = vector.load %arg5[%c32, %c0_31] : memref<36x4xf32, #tpu.memory_space<vmem>>, vector<4x4xf32>
    %cst_32 = arith.constant dense<0.000000e+00> : vector<64x4xf32>
    %59 = tpu.matmul %57, %58, %cst_32 {dimension_numbers = #tpu.dot_dimension_numbers<[1], [0], [0], [1], [0, 0, 1, 1], [], []>} : vector<64x4xf32>, vector<4x4xf32>, vector<64x4xf32> -> vector<64x4xf32>
    %60 = arith.addf %55, %59 : vector<64x4xf32>
    %c0_33 = arith.constant 0 : index
    %c0_34 = arith.constant 0 : index
    %61 = vector.load %arg6[%c0_33, %c0_34] : memref<1x4xf32, #tpu.memory_space<vmem>>, vector<1x4xf32>
    %62 = vector.broadcast %61 : vector<1x4xf32> to vector<64x4xf32>
    %63 = arith.addf %60, %62 : vector<64x4xf32>
    %cst_35 = arith.constant 0.000000e+00 : f32
    %64 = vector.broadcast %cst_35 : f32 to vector<64x4xf32>
    %65 = arith.maximumf %63, %64 : vector<64x4xf32>
    %66 = vector.shape_cast %65 : vector<64x4xf32> to vector<4x16x4xf32>
    %c0_36 = arith.constant 0 : index
    %c0_37 = arith.constant 0 : index
    %c0_38 = arith.constant 0 : index
    %c0_39 = arith.constant 0 : index
    %67 = vector.load %arg7[%c0_36, %c0_37, %c0_38, %c0_39] : memref<1x4x16x4xf32, #tpu.memory_space<vmem>>, vector<1x4x16x4xf32>
    %68 = vector.shape_cast %67 : vector<1x4x16x4xf32> to vector<4x16x4xf32>
    %69 = vector.shape_cast %66 : vector<4x16x4xf32> to vector<1x4x16x4xf32>
    tpu.vector_store %arg7[%c0_36, %c0_37, %c0_38, %c0_39], %69 {strides = array<i32>} : memref<1x4x16x4xf32, #tpu.memory_space<vmem>>, vector<1x4x16x4xf32>,
    return
  }
  func.func @transform_0(%arg0: i32, %arg1: i32) -> (i32, i32, i32, i32) {
    %c0_i32 = arith.constant 0 : i32
    %c0_i32_0 = arith.constant 0 : i32
    %c0_i32_1 = arith.constant 0 : i32
    return %arg0, %arg1, %c0_i32, %c0_i32_0 : i32, i32, i32, i32
  }
  func.func @transform_1(%arg0: i32, %arg1: i32) -> (i32, i32, i32, i32) {
    %c4_i32 = arith.constant 4 : i32
    %0 = arith.muli %arg1, %c4_i32 : i32
    %c1_i32 = arith.constant 1 : i32
    %1 = arith.subi %0, %c1_i32 : i32
    %c0_i32 = arith.constant 0 : i32
    %2 = arith.maxsi %1, %c0_i32 : i32
    %c0_i32_0 = arith.constant 0 : i32
    %c0_i32_1 = arith.constant 0 : i32
    %c0_i32_2 = arith.constant 0 : i32
    return %arg0, %2, %c0_i32_0, %c0_i32_1 : i32, i32, i32, i32
  }
  func.func @transform_2(%arg0: i32, %arg1: i32) -> (i32, i32, i32, i32) {
    %c4_i32 = arith.constant 4 : i32
    %0 = arith.muli %arg1, %c4_i32 : i32
    %c4_i32_0 = arith.constant 4 : i32
    %1 = arith.addi %0, %c4_i32_0 : i32
    %c15_i32 = arith.constant 15 : i32
    %2 = arith.minsi %1, %c15_i32 : i32
    %c0_i32 = arith.constant 0 : i32
    %c0_i32_1 = arith.constant 0 : i32
    %c0_i32_2 = arith.constant 0 : i32
    return %arg0, %2, %c0_i32, %c0_i32_1 : i32, i32, i32, i32
  }
  func.func @transform_3(%arg0: i32, %arg1: i32) -> (i32, i32) {
    %c0_i32 = arith.constant 0 : i32
    %c0_i32_0 = arith.constant 0 : i32
    %c0_i32_1 = arith.constant 0 : i32
    return %c0_i32, %c0_i32_0 : i32, i32
  }
  func.func @transform_4(%arg0: i32, %arg1: i32) -> (i32, i32) {
    %c0_i32 = arith.constant 0 : i32
    %c0_i32_0 = arith.constant 0 : i32
    %c0_i32_1 = arith.constant 0 : i32
    return %c0_i32, %c0_i32_0 : i32, i32
  }
  func.func @transform_5(%arg0: i32, %arg1: i32) -> (i32, i32, i32, i32) {
    %c0_i32 = arith.constant 0 : i32
    %c0_i32_0 = arith.constant 0 : i32
    %c0_i32_1 = arith.constant 0 : i32
    return %arg0, %arg1, %c0_i32, %c0_i32_0 : i32, i32, i32, i32
  }
}

</mosaic_0001>

<llo_original>
// kernel: tile.8
$region0: #{tile.8}
  #allocation0 [shape = 's32[1]{0}', space=sflag, size = 0x4, scoped, tag = 'scoped memory for tile.8']
  %s0 = inlined_call_operand.vmem [shape: f32[4], index: 0, kind: input, shape index: {}]
  %s1 = inlined_call_operand.vmem [shape: f32[2,4], index: 1, kind: output, shape index: {}]
  // Predicated region
  $region2: #{tile.8} parent=0 // pred_check
    _
  $region3: #{tile.8} parent=0 // pred_check_branch
    %3 = sbr.rel (0) target = $region5
  $region4: #{tile.8} parent=0 // pred_region
    _
  $region5: #{tile.8} parent=0 // pred_fallthru
    _
  %v4 = vld [vmem:[%s0] ss:$0 sm:$0xff]
  %5 = vst [vmem:[%s1] sm:$0x3] %v4

// kernel: tile.9
$region0: #{tile.9}
  %s0 = inlined_call_operand.vmem [shape: f32[2,4], index: 0, kind: input, shape index: {}]
  %s1 = inlined_call_operand.vmem [shape: f32[1,8], index: 1, kind: output, shape index: {}]
  $region1: #{tile.9} parent=0
    #allocation0 [shape = 'u8[4096]{0}', space=vmem, size = 0x1000, scoped, tag = 'scoped mem for output reshape']
    #allocation1 [shape = 'u8[4096]{0}', space=vmem, size = 0x1000, scoped, tag = 'scoped mem for input reshape']
    %s3 = ssub.s32 4, 1
    %v4 = vld [vmem:[%s0] sm:%s3]
    %5 = vst [vmem:[#allocation1] sm:%s3] %v4
    %v6 = vld [vmem:[#allocation1] sm:$0x1]
    %vm7 = vcmask 31744
    %8 = vst.msk [vmem:[#allocation0] sm:$0x1] %vm7, %v6
    %s9 = scalar_lea.vmem [#allocation1], 1
    %v10 = vld [vmem:[%s9] sm:$0x1]
    %11 = vrot.lane.b32.xlu0 %v10, 4
    %v12 = vpop.permute.xlu0 %11
    %vm13 = vcmask 64544
    %14 = vst.msk [vmem:[#allocation0] sm:$0x1] %vm13, %v12
    %s16 = ssub.s32 2, 1
    %v17 = vld [vmem:[#allocation0] sm:%s16]
    %s19 = ssub.s32 2, 1
    %20 = vst [vmem:[%s1] sm:%s19] %v17

// kernel: unet_up_block_forward.3
$region0: #{unet_up_block_forward.3}
  #allocation0 [shape = 'u32[]', space=smem, size = 0x4, offset = 0x4, fixed_abs, tag = 'smem constant byte address 0x4 - core index']
  #allocation1 [shape = 'u32[72,128]{1,0:T(1,128)}', space=vmem, size = 0x9000, scoped, tag = 'internal scratch']
  %s0 = inlined_call_operand.vmem [shape: f32[2,8,8,8], index: 0, kind: input, shape index: {}]
  %s1 = inlined_call_operand.vmem [shape: f32[2,8,8], index: 1, kind: input, shape index: {}]
  %s2 = inlined_call_operand.vmem [shape: f32[1,8], index: 2, kind: input, shape index: {}]
  %s3 = inlined_call_operand.vmem [shape: f32[2,8,2,8,8], index: 3, kind: output, shape index: {}]
  %s4 = sld [smem:[#allocation0]]
  $region45: #{unet_up_block_forward.3} parent=0
    _
  %s6 = ssub.s32 1, %s4
  %s7 = scalar_select 0, %s6, %s4
  loop: start=0, step=1, limit=6
  $region2: #{unet_up_block_forward.3} parent=0 // loop_pre_header
    _
  $region3: #{unet_up_block_forward.3} parent=0 // loop_header
    %s9 = sphi 0, %s13
    %p10 = scmp.ge.s32.totalorder %s9, 6
    %s16 = sphi 0, %s28
    %s17 = sphi 0, %s24
    %s18 = sphi 0, %s16
    %s19 = sphi 0, %s17
    %s20 = sphi 0, %s18
    %s21 = sphi 0, %s19
    %s33 = sphi 0, %s35
    %s36 = sphi 0, %s33
    %s37 = sphi 0, %s36
    %s53 = sphi 0, %s37
    %s57 = sphi 0, %s57
    %s59 = sphi 0, %s57
    %s60 = sphi 0, %s59
    %s74 = sphi 0, %s60
    %s78 = sphi 0, %s78
    %s80 = sphi 0, %s78
    %s81 = sphi 0, %s80
    %s95 = sphi 0, %s81
    %s103 = sphi 0, %s105
    %s106 = sphi 0, %s103
    %s107 = sphi 0, %s106
    %s123 = sphi 0, %s107
  $region4: #{unet_up_block_forward.3} parent=0 // loop_header_branch
    %12 = sbr.rel (%p10) target = $region8
  $region5: #{unet_up_block_forward.3} parent=0 // loop_body
    %s14 = ssub.s32 %s9, 1
    %s15 = ssub.s32 %s9, 2
    %s22 = sadd.s32 1, %s17
    %p23 = scmp.ge.s32.totalorder %s22, 2
    %s24 = scalar_select %p23, 0, %s22
    %s25 = sadd.s32 1, %s16
    %s26 = scalar_select %p23, %s25, %s16
    %p27 = scmp.ge.s32.totalorder %s26, 2
    %s28 = scalar_select %p27, 0, %s26
    %s29 = ssub.s32 %s16, %s28
    %s30 = ssub.s32 %s17, %s24
    %s31 = sor.u32 %s29, %s30
    %p32 = scmp.eq.s32.totalorder %s31, 0
    %s34 = sadd.s32 %s33, 1
    %s35 = scalar_select %p32, %s33, %s34
    %p38 = pneg %p32
    %p39 = scmp.eq.s32.totalorder %s9, 3
    %p40 = por %p38, %p39
    %p41 = scmp.ne.s32.totalorder %s33, %s36
    %p42 = scmp.eq.s32.totalorder %s9, 0
    %p43 = por %p41, %p42
    %p44 = scmp.ne.s32.totalorder %s33, %s36
    %p45 = scmp.eq.s32.totalorder %s14, 3
    %p46 = por %p44, %p45
    %p47 = scmp.ne.s32.totalorder %s36, %s37
    %p48 = scmp.eq.s32.totalorder %s14, 0
    %p49 = por %p47, %p48
    %p50 = scmp.ne.s32.totalorder %s36, %s37
    %p51 = scmp.eq.s32.totalorder %s15, 3
    %p52 = por %p50, %p51
    %p54 = scmp.ne.s32.totalorder %s37, %s53
    %p55 = scmp.eq.s32.totalorder %s15, 0
    %p56 = por %p54, %p55
    %s58 = sadd.s32 %s57, 1
    %p61 = scmp.eq.s32.totalorder %s9, 3
    %p62 = scmp.ne.s32.totalorder %s57, %s59
    %p63 = scmp.eq.s32.totalorder %s9, 0
    %p64 = por %p62, %p63
    %p65 = scmp.ne.s32.totalorder %s57, %s59
    %p66 = scmp.eq.s32.totalorder %s14, 3
    %p67 = por %p65, %p66
    %p68 = scmp.ne.s32.totalorder %s59, %s60
    %p69 = scmp.eq.s32.totalorder %s14, 0
    %p70 = por %p68, %p69
    %p71 = scmp.ne.s32.totalorder %s59, %s60
    %p72 = scmp.eq.s32.totalorder %s15, 3
    %p73 = por %p71, %p72
    %p75 = scmp.ne.s32.totalorder %s60, %s74
    %p76 = scmp.eq.s32.totalorder %s15, 0
    %p77 = por %p75, %p76
    %s79 = sadd.s32 %s78, 1
    %p82 = scmp.eq.s32.totalorder %s9, 3
    %p83 = scmp.ne.s32.totalorder %s78, %s80
    %p84 = scmp.eq.s32.totalorder %s9, 0
    %p85 = por %p83, %p84
    %p86 = scmp.ne.s32.totalorder %s78, %s80
    %p87 = scmp.eq.s32.totalorder %s14, 3
    %p88 = por %p86, %p87
    %p89 = scmp.ne.s32.totalorder %s80, %s81
    %p90 = scmp.eq.s32.totalorder %s14, 0
    %p91 = por %p89, %p90
    %p92 = scmp.ne.s32.totalorder %s80, %s81
    %p93 = scmp.eq.s32.totalorder %s15, 3
    %p94 = por %p92, %p93
    %p96 = scmp.ne.s32.totalorder %s81, %s95
    %p97 = scmp.eq.s32.totalorder %s15, 0
    %p98 = por %p96, %p97
    %s99 = ssub.s32 %s16, %s28
    %s100 = ssub.s32 %s17, %s24
    %s101 = sor.u32 %s99, %s100
    %p102 = scmp.eq.s32.totalorder %s101, 0
    %s104 = sadd.s32 %s103, 1
    %s105 = scalar_select %p102, %s103, %s104
    %p108 = pneg %p102
    %p109 = scmp.eq.s32.totalorder %s9, 3
    %p110 = por %p108, %p109
    %p111 = scmp.ne.s32.totalorder %s103, %s106
    %p112 = scmp.eq.s32.totalorder %s9, 0
    %p113 = por %p111, %p112
    %p114 = scmp.ne.s32.totalorder %s103, %s106
    %p115 = scmp.eq.s32.totalorder %s14, 3
    %p116 = por %p114, %p115
    %p117 = scmp.ne.s32.totalorder %s106, %s107
    %p118 = scmp.eq.s32.totalorder %s14, 0
    %p119 = por %p117, %p118
    %p120 = scmp.ne.s32.totalorder %s106, %s107
    %p121 = scmp.eq.s32.totalorder %s15, 3
    %p122 = por %p120, %p121
    %p124 = scmp.ne.s32.totalorder %s107, %s123
    %p125 = scmp.eq.s32.totalorder %s15, 0
    %p126 = por %p124, %p125
    %p127 = scmp.le.s32.totalorder 1, %s9
    %p128 = scmp.lt.s32.totalorder %s9, 5
    %p129 = pnand %p127, %p128
    %p130 = pneg %p129
    // Predicated region
    $region9: #{unet_up_block_forward.3} parent=5 // pred_check
      _
    $region10: #{unet_up_block_forward.3} parent=5 // pred_check_branch
      %132 = sbr.rel (%p129) target = $region12
    $region11: #{unet_up_block_forward.3} parent=5 // pred_region
      %s133 = ssub.s32 %s9, 1
      // Predicated region
      $region13: #{unet_up_block_forward.3} parent=11 // pred_check
        %p134 = pneg %p70
      $region14: #{unet_up_block_forward.3} parent=11 // pred_check_branch
        %136 = sbr.rel (%p134) target = $region16
      $region15: #{unet_up_block_forward.3} parent=11 // pred_region
        _
      $region16: #{unet_up_block_forward.3} parent=11 // pred_fallthru
        _
      // Predicated region
      $region17: #{unet_up_block_forward.3} parent=11 // pred_check
        %p137 = pneg %p91
      $region18: #{unet_up_block_forward.3} parent=11 // pred_check_branch
        %139 = sbr.rel (%p137) target = $region20
      $region19: #{unet_up_block_forward.3} parent=11 // pred_region
        _
      $region20: #{unet_up_block_forward.3} parent=11 // pred_fallthru
        _
    $region12: #{unet_up_block_forward.3} parent=5 // pred_fallthru
      _
    %p140 = scmp.lt.s32.totalorder %s9, 4
    // Predicated region
    $region21: #{unet_up_block_forward.3} parent=5 // pred_check
      %p141 = pneg %p140
    $region22: #{unet_up_block_forward.3} parent=5 // pred_check_branch
      %143 = sbr.rel (%p141) target = $region24
    $region23: #{unet_up_block_forward.3} parent=5 // pred_region
      // Predicated region
      $region25: #{unet_up_block_forward.3} parent=23 // pred_check
        %p144 = pneg %p43
      $region26: #{unet_up_block_forward.3} parent=23 // pred_check_branch
        %146 = sbr.rel (%p144) target = $region28
      $region27: #{unet_up_block_forward.3} parent=23 // pred_region
        %s147 = smul.u32 4, %s17
        %p148 = scmp.lt.s32.totalorder %s16, 1
        %s149 = scalar_select %p148, %s16, 1
        %p150 = scmp.lt.s32.totalorder %s147, 7
        %s151 = scalar_select %p150, %s147, 7
        %s152 = smul.addr %s149, 8
        %s153 = sadd.s32 %s151, %s152
        %s154 = smul.addr %s153, 8
        %s155 = scalar_lea.vmem %s0, %s154
        %s156 = smul.u32 4, %s17
      $region28: #{unet_up_block_forward.3} parent=23 // pred_fallthru
        _
    $region24: #{unet_up_block_forward.3} parent=5 // pred_fallthru
      _
    %p157 = scmp.le.s32.totalorder 1, %s9
    %p158 = scmp.lt.s32.totalorder %s9, 5
    %p159 = pnand %p157, %p158
    %p160 = pneg %p159
    // Predicated region
    $region29: #{unet_up_block_forward.3} parent=5 // pred_check
      _
    $region30: #{unet_up_block_forward.3} parent=5 // pred_check_branch
      %162 = sbr.rel (%p159) target = $region32
    $region31: #{unet_up_block_forward.3} parent=5 // pred_region
      %s163 = ssub.s32 %s9, 1
      %s164 = smul.u32 4, %s19
      %p165 = scmp.lt.s32.totalorder %s18, 1
      %s166 = scalar_select %p165, %s18, 1
      %p167 = scmp.lt.s32.totalorder %s164, 7
      %s168 = scalar_select %p167, %s164, 7
      %s169 = smul.addr %s166, 8
      %s170 = sadd.s32 %s168, %s169
      %s171 = smul.addr %s170, 8
      %s172 = scalar_lea.vmem %s0, %s171
      %p173 = pneg %p49
      %p174 = pneg %p46
      %p175 = pneg %p70
      %p176 = pneg %p67
      %p177 = pneg %p91
      %p178 = pneg %p88
      %p179 = pneg %p119
      %p180 = pneg %p116
      %s181 = smul.u32 4, %s19
      %p182 = scmp.lt.s32.totalorder %s18, 1
      %s183 = scalar_select %p182, %s18, 1
      %p184 = scmp.lt.s32.totalorder %s181, 7
      %s185 = scalar_select %p184, %s181, 7
      %s186 = smul.addr %s185, 2
      %s187 = smul.addr %s183, 16
      %s188 = sadd.s32 %s186, %s187
      %s189 = smul.addr %s188, 8
      %s190 = scalar_lea.vmem %s3, %s189
      %s191 = smul.u32 4, %s19
      %p192 = scmp.lt.s32.totalorder %s18, 1
      %s193 = scalar_select %p192, %s18, 1
      %p194 = scmp.lt.s32.totalorder %s191, 7
      %s195 = scalar_select %p194, %s191, 7
      %s196 = smul.addr %s193, 8
      %s197 = sadd.s32 %s195, %s196
      %s198 = smul.addr %s197, 8
      %s199 = scalar_lea.vmem %s0, %s198
      %s200 = smul.u32 4, %s19
      %s201 = smul.u32 4, %s19
      %p202 = scmp.lt.s32.totalorder %s18, 1
      %s203 = scalar_select %p202, %s18, 1
      %p204 = scmp.lt.s32.totalorder %s201, 7
      %s205 = scalar_select %p204, %s201, 7
      %s206 = smul.addr %s205, 2
      %s207 = smul.addr %s203, 16
      %s208 = sadd.s32 %s206, %s207
      %s209 = smul.addr %s208, 8
      %s210 = scalar_lea.vmem %s3, %s209
      %s211 = smul.u32 4, %s19
      %v212 = vld [vmem:[%s199] sm:$0xff]
      %v213 = vld [vmem:[%s199 + $0x8] sm:$0xff]
      %v214 = vld [vmem:[%s199 + $0x10] sm:$0xff]
      %v215 = vld [vmem:[%s199 + $0x18] sm:$0xff]
      %v216 = vld [vmem:[%s2] sm:$0x1]
      %v217 = vld [vmem:[%s1] sm:$0xff]
      %v219 = vperm.slane %v216, 0
      %vm221 = vcmask 64512
      %v223 = vsel %vm221, %v212, 0
      %v226 = vsel %vm221, %v213, 0
      %v229 = vsel %vm221, %v214, 0
      %v232 = vsel %vm221, %v215, 0
      %234 = vmatpush.msra.mxu0 0.0
      %235 = vmatpush.msra.mxu0 0.0
      %236 = vmatpush.msra.mxu0 0.0
      %237 = vmatpush.msra.mxu0 0.0
      %238 = vmatpush.msra.mxu0 0.0
      %239 = vmatpush.msra.mxu0 0.0
      %240 = vmatpush.msra.mxu0 0.0
      %241 = vmatpush.msra.mxu0 0.0
      %242 = vmatpush.msra.mxu0 0.0
      %243 = vmatpush.msra.mxu0 0.0
      %244 = vmatpush.msra.mxu0 0.0
      %245 = vmatpush.msra.mxu0 0.0
      %246 = vmatpush.msra.mxu0 0.0
      %247 = vmatpush.msra.mxu0 0.0
      %248 = vmatpush.msra.mxu0 0.0
      %249 = vmatpush.msra.mxu0 %v217
      %250 = vmatmul.f32.gmra.mxu0 %v223
      %v251 = vpop.f32.mrf.mxu0
      %v252 = vadd.f32 %v219, %v251
      %253 = vmatmul.f32.gmra.mxu0 %v226
      %v254 = vpop.f32.mrf.mxu0
      %v255 = vadd.f32 %v219, %v254
      %256 = vmatmul.f32.gmra.mxu0 %v229
      %v257 = vpop.f32.mrf.mxu0
      %v258 = vadd.f32 %v219, %v257
      %259 = vmatmul.f32.gmra.mxu0 %v232
      %v260 = vpop.f32.mrf.mxu0
      %v261 = vadd.f32 %v219, %v260
      %262 = vdwg.mxu0
      %263 = vst.msk [vmem:[%s210] sm:$0xff] %vm221, %v252
      %264 = vst.msk [vmem:[%s210 + $0x10] sm:$0xff] %vm221, %v255
      %265 = vst.msk [vmem:[%s210 + $0x20] sm:$0xff] %vm221, %v258
      %266 = vst.msk [vmem:[%s210 + $0x30] sm:$0xff] %vm221, %v261
      %s267 = scalar_lea.vmem %s1, 8
      %v268 = vld [vmem:[%s267] sm:$0xff]
      %269 = vmatpush.msra.mxu0 0.0
      %270 = vmatpush.msra.mxu0 0.0
      %271 = vmatpush.msra.mxu0 0.0
      %272 = vmatpush.msra.mxu0 0.0
      %273 = vmatpush.msra.mxu0 0.0
      %274 = vmatpush.msra.mxu0 0.0
      %275 = vmatpush.msra.mxu0 0.0
      %276 = vmatpush.msra.mxu0 0.0
      %277 = vmatpush.msra.mxu0 0.0
      %278 = vmatpush.msra.mxu0 0.0
      %279 = vmatpush.msra.mxu0 0.0
      %280 = vmatpush.msra.mxu0 0.0
      %281 = vmatpush.msra.mxu0 0.0
      %282 = vmatpush.msra.mxu0 0.0
      %283 = vmatpush.msra.mxu0 0.0
      %284 = vmatpush.msra.mxu0 %v268
      %285 = vmatmul.f32.gmra.mxu0 %v223
      %v286 = vpop.f32.mrf.mxu0
      %v287 = vadd.f32 %v219, %v286
      %288 = vmatmul.f32.gmra.mxu0 %v226
      %v289 = vpop.f32.mrf.mxu0
      %v290 = vadd.f32 %v219, %v289
      %291 = vmatmul.f32.gmra.mxu0 %v229
      %v292 = vpop.f32.mrf.mxu0
      %v293 = vadd.f32 %v219, %v292
      %294 = vmatmul.f32.gmra.mxu0 %v232
      %v295 = vpop.f32.mrf.mxu0
      %v296 = vadd.f32 %v219, %v295
      %297 = vdwg.mxu0
      %s298 = scalar_lea.vmem %s210, 8
      %299 = vst.msk [vmem:[%s298] sm:$0xff] %vm221, %v287
      %300 = vst.msk [vmem:[%s298 + $0x10] sm:$0xff] %vm221, %v290
      %301 = vst.msk [vmem:[%s298 + $0x20] sm:$0xff] %vm221, %v293
      %302 = vst.msk [vmem:[%s298 + $0x30] sm:$0xff] %vm221, %v296
      %s303 = smul.u32 4, %s19
      %p304 = scmp.lt.s32.totalorder %s18, 1
      %s305 = scalar_select %p304, %s18, 1
      %p306 = scmp.lt.s32.totalorder %s303, 7
      %s307 = scalar_select %p306, %s303, 7
      %s308 = smul.addr %s307, 2
      %s309 = smul.addr %s305, 16
      %s310 = sadd.s32 %s308, %s309
      %s311 = smul.addr %s310, 8
      %s312 = scalar_lea.vmem %s3, %s311
      // Predicated region
      $region33: #{unet_up_block_forward.3} parent=31 // pred_check
        %p313 = pneg %p116
      $region34: #{unet_up_block_forward.3} parent=31 // pred_check_branch
        %315 = sbr.rel (%p313) target = $region36
      $region35: #{unet_up_block_forward.3} parent=31 // pred_region
        %s316 = smul.u32 4, %s19
      $region36: #{unet_up_block_forward.3} parent=31 // pred_fallthru
        _
    $region32: #{unet_up_block_forward.3} parent=5 // pred_fallthru
      _
    %p317 = scmp.le.s32.totalorder 2, %s9
    // Predicated region
    $region37: #{unet_up_block_forward.3} parent=5 // pred_check
      %p318 = pneg %p317
    $region38: #{unet_up_block_forward.3} parent=5 // pred_check_branch
      %320 = sbr.rel (%p318) target = $region40
    $region39: #{unet_up_block_forward.3} parent=5 // pred_region
      %s321 = ssub.s32 %s9, 2
      // Predicated region
      $region41: #{unet_up_block_forward.3} parent=39 // pred_check
        %p322 = pneg %p122
      $region42: #{unet_up_block_forward.3} parent=39 // pred_check_branch
        %324 = sbr.rel (%p322) target = $region44
      $region43: #{unet_up_block_forward.3} parent=39 // pred_region
        %s325 = smul.u32 4, %s21
        %p326 = scmp.lt.s32.totalorder %s20, 1
        %s327 = scalar_select %p326, %s20, 1
        %p328 = scmp.lt.s32.totalorder %s325, 7
        %s329 = scalar_select %p328, %s325, 7
        %s330 = smul.addr %s329, 2
        %s331 = smul.addr %s327, 16
        %s332 = sadd.s32 %s330, %s331
        %s333 = smul.addr %s332, 8
        %s334 = scalar_lea.vmem %s3, %s333
      $region44: #{unet_up_block_forward.3} parent=39 // pred_fallthru
        _
    $region40: #{unet_up_block_forward.3} parent=5 // pred_fallthru
      _
  $region6: #{unet_up_block_forward.3} parent=0 // loop_footer
    %s13 = sadd.s32 1, %s9
  $region7: #{unet_up_block_forward.3} parent=0 // loop_footer_branch
    %8 = sbr.rel target = $region3
  $region8: #{unet_up_block_forward.3} parent=0 // loop_exit
    _

// kernel: unet_up_block_forward.5
$region0: #{unet_up_block_forward.5}
  #allocation0 [shape = 'u32[]', space=smem, size = 0x4, offset = 0x4, fixed_abs, tag = 'smem constant byte address 0x4 - core index']
  #allocation1 [shape = 'u32[72,128]{1,0:T(1,128)}', space=vmem, size = 0x9000, scoped, tag = 'internal scratch']
  %s0 = inlined_call_operand.vmem [shape: f32[2,16,16,4], index: 0, kind: input, shape index: {}, may-alias: {0,1,2}]
  %s1 = inlined_call_operand.vmem [shape: f32[2,16,16,4], index: 1, kind: input, shape index: {}, may-alias: {0,1,2}]
  %s2 = inlined_call_operand.vmem [shape: f32[2,16,16,4], index: 2, kind: input, shape index: {}, may-alias: {0,1,2}]
  %s3 = inlined_call_operand.vmem [shape: f32[36,4], index: 3, kind: input, shape index: {}]
  %s4 = inlined_call_operand.vmem [shape: f32[1,4], index: 4, kind: input, shape index: {}]
  %s5 = inlined_call_operand.vmem [shape: f32[2,16,16,4], index: 5, kind: output, shape index: {}]
  %s6 = sld [smem:[#allocation0]]
  $region53: #{unet_up_block_forward.5} parent=0
    _
  %s8 = ssub.s32 1, %s6
  %s9 = scalar_select 0, %s8, %s6
  loop: start=0, step=1, limit=10
  $region2: #{unet_up_block_forward.5} parent=0 // loop_pre_header
    _
  $region3: #{unet_up_block_forward.5} parent=0 // loop_header
    %s11 = sphi 0, %s15
    %p12 = scmp.ge.s32.totalorder %s11, 10
    %s18 = sphi 0, %s30
    %s19 = sphi 0, %s26
    %s20 = sphi 0, %s18
    %s21 = sphi 0, %s19
    %s22 = sphi 0, %s20
    %s23 = sphi 0, %s21
    %s35 = sphi 0, %s37
    %s38 = sphi 0, %s35
    %s39 = sphi 0, %s38
    %s55 = sphi 0, %s39
    %s71 = sphi 0, %s73
    %s74 = sphi 0, %s71
    %s75 = sphi 0, %s74
    %s91 = sphi 0, %s75
    %s107 = sphi 0, %s109
    %s110 = sphi 0, %s107
    %s111 = sphi 0, %s110
    %s127 = sphi 0, %s111
    %s131 = sphi 0, %s131
    %s133 = sphi 0, %s131
    %s134 = sphi 0, %s133
    %s148 = sphi 0, %s134
    %s152 = sphi 0, %s152
    %s154 = sphi 0, %s152
    %s155 = sphi 0, %s154
    %s169 = sphi 0, %s155
    %s177 = sphi 0, %s179
    %s180 = sphi 0, %s177
    %s181 = sphi 0, %s180
    %s197 = sphi 0, %s181
  $region4: #{unet_up_block_forward.5} parent=0 // loop_header_branch
    %14 = sbr.rel (%p12) target = $region8
  $region5: #{unet_up_block_forward.5} parent=0 // loop_body
    %s16 = ssub.s32 %s11, 1
    %s17 = ssub.s32 %s11, 2
    %s24 = sadd.s32 1, %s19
    %p25 = scmp.ge.s32.totalorder %s24, 4
    %s26 = scalar_select %p25, 0, %s24
    %s27 = sadd.s32 1, %s18
    %s28 = scalar_select %p25, %s27, %s18
    %p29 = scmp.ge.s32.totalorder %s28, 2
    %s30 = scalar_select %p29, 0, %s28
    %s31 = ssub.s32 %s18, %s30
    %s32 = ssub.s32 %s19, %s26
    %s33 = sor.u32 %s31, %s32
    %p34 = scmp.eq.s32.totalorder %s33, 0
    %s36 = sadd.s32 %s35, 1
    %s37 = scalar_select %p34, %s35, %s36
    %p40 = pneg %p34
    %p41 = scmp.eq.s32.totalorder %s11, 7
    %p42 = por %p40, %p41
    %p43 = scmp.ne.s32.totalorder %s35, %s38
    %p44 = scmp.eq.s32.totalorder %s11, 0
    %p45 = por %p43, %p44
    %p46 = scmp.ne.s32.totalorder %s35, %s38
    %p47 = scmp.eq.s32.totalorder %s16, 7
    %p48 = por %p46, %p47
    %p49 = scmp.ne.s32.totalorder %s38, %s39
    %p50 = scmp.eq.s32.totalorder %s16, 0
    %p51 = por %p49, %p50
    %p52 = scmp.ne.s32.totalorder %s38, %s39
    %p53 = scmp.eq.s32.totalorder %s17, 7
    %p54 = por %p52, %p53
    %p56 = scmp.ne.s32.totalorder %s39, %s55
    %p57 = scmp.eq.s32.totalorder %s17, 0
    %p58 = por %p56, %p57
    %s59 = smul.u32 %s19, 4
    %s60 = ssub.s32 %s59, 1
    %p61 = scmp.gt.s32.totalorder %s60, 0
    %s62 = scalar_select %p61, %s60, 0
    %s63 = smul.u32 %s26, 4
    %s64 = ssub.s32 %s63, 1
    %p65 = scmp.gt.s32.totalorder %s64, 0
    %s66 = scalar_select %p65, %s64, 0
    %s67 = ssub.s32 %s18, %s30
    %s68 = ssub.s32 %s62, %s66
    %s69 = sor.u32 %s67, %s68
    %p70 = scmp.eq.s32.totalorder %s69, 0
    %s72 = sadd.s32 %s71, 1
    %s73 = scalar_select %p70, %s71, %s72
    %p76 = pneg %p70
    %p77 = scmp.eq.s32.totalorder %s11, 7
    %p78 = por %p76, %p77
    %p79 = scmp.ne.s32.totalorder %s71, %s74
    %p80 = scmp.eq.s32.totalorder %s11, 0
    %p81 = por %p79, %p80
    %p82 = scmp.ne.s32.totalorder %s71, %s74
    %p83 = scmp.eq.s32.totalorder %s16, 7
    %p84 = por %p82, %p83
    %p85 = scmp.ne.s32.totalorder %s74, %s75
    %p86 = scmp.eq.s32.totalorder %s16, 0
    %p87 = por %p85, %p86
    %p88 = scmp.ne.s32.totalorder %s74, %s75
    %p89 = scmp.eq.s32.totalorder %s17, 7
    %p90 = por %p88, %p89
    %p92 = scmp.ne.s32.totalorder %s75, %s91
    %p93 = scmp.eq.s32.totalorder %s17, 0
    %p94 = por %p92, %p93
    %s95 = smul.u32 %s19, 4
    %s96 = sadd.s32 %s95, 4
    %p97 = scmp.lt.s32.totalorder %s96, 15
    %s98 = scalar_select %p97, %s96, 15
    %s99 = smul.u32 %s26, 4
    %s100 = sadd.s32 %s99, 4
    %p101 = scmp.lt.s32.totalorder %s100, 15
    %s102 = scalar_select %p101, %s100, 15
    %s103 = ssub.s32 %s18, %s30
    %s104 = ssub.s32 %s98, %s102
    %s105 = sor.u32 %s103, %s104
    %p106 = scmp.eq.s32.totalorder %s105, 0
    %s108 = sadd.s32 %s107, 1
    %s109 = scalar_select %p106, %s107, %s108
    %p112 = pneg %p106
    %p113 = scmp.eq.s32.totalorder %s11, 7
    %p114 = por %p112, %p113
    %p115 = scmp.ne.s32.totalorder %s107, %s110
    %p116 = scmp.eq.s32.totalorder %s11, 0
    %p117 = por %p115, %p116
    %p118 = scmp.ne.s32.totalorder %s107, %s110
    %p119 = scmp.eq.s32.totalorder %s16, 7
    %p120 = por %p118, %p119
    %p121 = scmp.ne.s32.totalorder %s110, %s111
    %p122 = scmp.eq.s32.totalorder %s16, 0
    %p123 = por %p121, %p122
    %p124 = scmp.ne.s32.totalorder %s110, %s111
    %p125 = scmp.eq.s32.totalorder %s17, 7
    %p126 = por %p124, %p125
    %p128 = scmp.ne.s32.totalorder %s111, %s127
    %p129 = scmp.eq.s32.totalorder %s17, 0
    %p130 = por %p128, %p129
    %s132 = sadd.s32 %s131, 1
    %p135 = scmp.eq.s32.totalorder %s11, 7
    %p136 = scmp.ne.s32.totalorder %s131, %s133
    %p137 = scmp.eq.s32.totalorder %s11, 0
    %p138 = por %p136, %p137
    %p139 = scmp.ne.s32.totalorder %s131, %s133
    %p140 = scmp.eq.s32.totalorder %s16, 7
    %p141 = por %p139, %p140
    %p142 = scmp.ne.s32.totalorder %s133, %s134
    %p143 = scmp.eq.s32.totalorder %s16, 0
    %p144 = por %p142, %p143
    %p145 = scmp.ne.s32.totalorder %s133, %s134
    %p146 = scmp.eq.s32.totalorder %s17, 7
    %p147 = por %p145, %p146
    %p149 = scmp.ne.s32.totalorder %s134, %s148
    %p150 = scmp.eq.s32.totalorder %s17, 0
    %p151 = por %p149, %p150
    %s153 = sadd.s32 %s152, 1
    %p156 = scmp.eq.s32.totalorder %s11, 7
    %p157 = scmp.ne.s32.totalorder %s152, %s154
    %p158 = scmp.eq.s32.totalorder %s11, 0
    %p159 = por %p157, %p158
    %p160 = scmp.ne.s32.totalorder %s152, %s154
    %p161 = scmp.eq.s32.totalorder %s16, 7
    %p162 = por %p160, %p161
    %p163 = scmp.ne.s32.totalorder %s154, %s155
    %p164 = scmp.eq.s32.totalorder %s16, 0
    %p165 = por %p163, %p164
    %p166 = scmp.ne.s32.totalorder %s154, %s155
    %p167 = scmp.eq.s32.totalorder %s17, 7
    %p168 = por %p166, %p167
    %p170 = scmp.ne.s32.totalorder %s155, %s169
    %p171 = scmp.eq.s32.totalorder %s17, 0
    %p172 = por %p170, %p171
    %s173 = ssub.s32 %s18, %s30
    %s174 = ssub.s32 %s19, %s26
    %s175 = sor.u32 %s173, %s174
    %p176 = scmp.eq.s32.totalorder %s175, 0
    %s178 = sadd.s32 %s177, 1
    %s179 = scalar_select %p176, %s177, %s178
    %p182 = pneg %p176
    %p183 = scmp.eq.s32.totalorder %s11, 7
    %p184 = por %p182, %p183
    %p185 = scmp.ne.s32.totalorder %s177, %s180
    %p186 = scmp.eq.s32.totalorder %s11, 0
    %p187 = por %p185, %p186
    %p188 = scmp.ne.s32.totalorder %s177, %s180
    %p189 = scmp.eq.s32.totalorder %s16, 7
    %p190 = por %p188, %p189
    %p191 = scmp.ne.s32.totalorder %s180, %s181
    %p192 = scmp.eq.s32.totalorder %s16, 0
    %p193 = por %p191, %p192
    %p194 = scmp.ne.s32.totalorder %s180, %s181
    %p195 = scmp.eq.s32.totalorder %s17, 7
    %p196 = por %p194, %p195
    %p198 = scmp.ne.s32.totalorder %s181, %s197
    %p199 = scmp.eq.s32.totalorder %s17, 0
    %p200 = por %p198, %p199
    %p201 = scmp.le.s32.totalorder 1, %s11
    %p202 = scmp.lt.s32.totalorder %s11, 9
    %p203 = pnand %p201, %p202
    %p204 = pneg %p203
    // Predicated region
    $region9: #{unet_up_block_forward.5} parent=5 // pred_check
      _
    $region10: #{unet_up_block_forward.5} parent=5 // pred_check_branch
      %206 = sbr.rel (%p203) target = $region12
    $region11: #{unet_up_block_forward.5} parent=5 // pred_region
      %s207 = ssub.s32 %s11, 1
      // Predicated region
      $region13: #{unet_up_block_forward.5} parent=11 // pred_check
        %p208 = pneg %p144
      $region14: #{unet_up_block_forward.5} parent=11 // pred_check_branch
        %210 = sbr.rel (%p208) target = $region16
      $region15: #{unet_up_block_forward.5} parent=11 // pred_region
        _
      $region16: #{unet_up_block_forward.5} parent=11 // pred_fallthru
        _
      // Predicated region
      $region17: #{unet_up_block_forward.5} parent=11 // pred_check
        %p211 = pneg %p165
      $region18: #{unet_up_block_forward.5} parent=11 // pred_check_branch
        %213 = sbr.rel (%p211) target = $region20
      $region19: #{unet_up_block_forward.5} parent=11 // pred_region
        _
      $region20: #{unet_up_block_forward.5} parent=11 // pred_fallthru
        _
    $region12: #{unet_up_block_forward.5} parent=5 // pred_fallthru
      _
    %p214 = scmp.lt.s32.totalorder %s11, 8
    // Predicated region
    $region21: #{unet_up_block_forward.5} parent=5 // pred_check
      %p215 = pneg %p214
    $region22: #{unet_up_block_forward.5} parent=5 // pred_check_branch
      %217 = sbr.rel (%p215) target = $region24
    $region23: #{unet_up_block_forward.5} parent=5 // pred_region
      // Predicated region
      $region25: #{unet_up_block_forward.5} parent=23 // pred_check
        %p218 = pneg %p45
      $region26: #{unet_up_block_forward.5} parent=23 // pred_check_branch
        %220 = sbr.rel (%p218) target = $region28
      $region27: #{unet_up_block_forward.5} parent=23 // pred_region
        %s221 = smul.u32 4, %s19
        %p222 = scmp.lt.s32.totalorder %s18, 1
        %s223 = scalar_select %p222, %s18, 1
        %p224 = scmp.lt.s32.totalorder %s221, 15
        %s225 = scalar_select %p224, %s221, 15
        %s226 = smul.addr %s225, 2
        %s227 = smul.addr %s223, 32
        %s228 = sadd.s32 %s226, %s227
        %s229 = smul.addr %s228, 8
        %s230 = scalar_lea.vmem %s0, %s229
        %s231 = smul.u32 4, %s19
      $region28: #{unet_up_block_forward.5} parent=23 // pred_fallthru
        _
      // Predicated region
      $region29: #{unet_up_block_forward.5} parent=23 // pred_check
        %p232 = pneg %p81
      $region30: #{unet_up_block_forward.5} parent=23 // pred_check_branch
        %234 = sbr.rel (%p232) target = $region32
      $region31: #{unet_up_block_forward.5} parent=23 // pred_region
        %s235 = smul.u32 %s19, 4
        %s236 = ssub.s32 %s235, 1
        %p237 = scmp.gt.s32.totalorder %s236, 0
        %s238 = scalar_select %p237, %s236, 0
        %p239 = scmp.lt.s32.totalorder %s18, 1
        %s240 = scalar_select %p239, %s18, 1
        %p241 = scmp.lt.s32.totalorder %s238, 15
        %s242 = scalar_select %p241, %s238, 15
        %s243 = smul.addr %s242, 2
        %s244 = smul.addr %s240, 32
        %s245 = sadd.s32 %s243, %s244
        %s246 = smul.addr %s245, 8
        %s247 = scalar_lea.vmem %s1, %s246
        %s248 = smul.u32 %s19, 4
        %s249 = ssub.s32 %s248, 1
        %p250 = scmp.gt.s32.totalorder %s249, 0
        %s251 = scalar_select %p250, %s249, 0
      $region32: #{unet_up_block_forward.5} parent=23 // pred_fallthru
        _
      // Predicated region
      $region33: #{unet_up_block_forward.5} parent=23 // pred_check
        %p252 = pneg %p117
      $region34: #{unet_up_block_forward.5} parent=23 // pred_check_branch
        %254 = sbr.rel (%p252) target = $region36
      $region35: #{unet_up_block_forward.5} parent=23 // pred_region
        %s255 = smul.u32 %s19, 4
        %s256 = sadd.s32 %s255, 4
        %p257 = scmp.lt.s32.totalorder %s256, 15
        %s258 = scalar_select %p257, %s256, 15
        %p259 = scmp.lt.s32.totalorder %s18, 1
        %s260 = scalar_select %p259, %s18, 1
        %p261 = scmp.lt.s32.totalorder %s258, 15
        %s262 = scalar_select %p261, %s258, 15
        %s263 = smul.addr %s262, 2
        %s264 = smul.addr %s260, 32
        %s265 = sadd.s32 %s263, %s264
        %s266 = smul.addr %s265, 8
        %s267 = scalar_lea.vmem %s2, %s266
        %s268 = smul.u32 %s19, 4
        %s269 = sadd.s32 %s268, 4
        %p270 = scmp.lt.s32.totalorder %s269, 15
        %s271 = scalar_select %p270, %s269, 15
      $region36: #{unet_up_block_forward.5} parent=23 // pred_fallthru
        _
    $region24: #{unet_up_block_forward.5} parent=5 // pred_fallthru
      _
    %p272 = scmp.le.s32.totalorder 1, %s11
    %p273 = scmp.lt.s32.totalorder %s11, 9
    %p274 = pnand %p272, %p273
    %p275 = pneg %p274
    // Predicated region
    $region37: #{unet_up_block_forward.5} parent=5 // pred_check
      _
    $region38: #{unet_up_block_forward.5} parent=5 // pred_check_branch
      %277 = sbr.rel (%p274) target = $region40
    $region39: #{unet_up_block_forward.5} parent=5 // pred_region
      %s278 = ssub.s32 %s11, 1
      %s279 = smul.u32 4, %s21
      %p280 = scmp.lt.s32.totalorder %s20, 1
      %s281 = scalar_select %p280, %s20, 1
      %p282 = scmp.lt.s32.totalorder %s279, 15
      %s283 = scalar_select %p282, %s279, 15
      %s284 = smul.addr %s283, 2
      %s285 = smul.addr %s281, 32
      %s286 = sadd.s32 %s284, %s285
      %s287 = smul.addr %s286, 8
      %s288 = scalar_lea.vmem %s0, %s287
      %p289 = pneg %p51
      %p290 = pneg %p48
      %s291 = smul.u32 %s21, 4
      %s292 = ssub.s32 %s291, 1
      %p293 = scmp.gt.s32.totalorder %s292, 0
      %s294 = scalar_select %p293, %s292, 0
      %p295 = scmp.lt.s32.totalorder %s20, 1
      %s296 = scalar_select %p295, %s20, 1
      %p297 = scmp.lt.s32.totalorder %s294, 15
      %s298 = scalar_select %p297, %s294, 15
      %s299 = smul.addr %s298, 2
      %s300 = smul.addr %s296, 32
      %s301 = sadd.s32 %s299, %s300
      %s302 = smul.addr %s301, 8
      %s303 = scalar_lea.vmem %s1, %s302
      %p304 = pneg %p87
      %p305 = pneg %p84
      %s306 = smul.u32 %s21, 4
      %s307 = sadd.s32 %s306, 4
      %p308 = scmp.lt.s32.totalorder %s307, 15
      %s309 = scalar_select %p308, %s307, 15
      %p310 = scmp.lt.s32.totalorder %s20, 1
      %s311 = scalar_select %p310, %s20, 1
      %p312 = scmp.lt.s32.totalorder %s309, 15
      %s313 = scalar_select %p312, %s309, 15
      %s314 = smul.addr %s313, 2
      %s315 = smul.addr %s311, 32
      %s316 = sadd.s32 %s314, %s315
      %s317 = smul.addr %s316, 8
      %s318 = scalar_lea.vmem %s2, %s317
      %p319 = pneg %p123
      %p320 = pneg %p120
      %p321 = pneg %p144
      %p322 = pneg %p141
      %p323 = pneg %p165
      %p324 = pneg %p162
      %p325 = pneg %p193
      %p326 = pneg %p190
      %s327 = smul.u32 4, %s21
      %p328 = scmp.lt.s32.totalorder %s20, 1
      %s329 = scalar_select %p328, %s20, 1
      %p330 = scmp.lt.s32.totalorder %s327, 15
      %s331 = scalar_select %p330, %s327, 15
      %s332 = smul.addr %s331, 2
      %s333 = smul.addr %s329, 32
      %s334 = sadd.s32 %s332, %s333
      %s335 = smul.addr %s334, 8
      %s336 = scalar_lea.vmem %s5, %s335
      %s337 = smul.u32 4, %s21
      %p338 = scmp.lt.s32.totalorder %s20, 1
      %s339 = scalar_select %p338, %s20, 1
      %p340 = scmp.lt.s32.totalorder %s337, 15
      %s341 = scalar_select %p340, %s337, 15
      %s342 = smul.addr %s341, 2
      %s343 = smul.addr %s339, 32
      %s344 = sadd.s32 %s342, %s343
      %s345 = smul.addr %s344, 8
      %s346 = scalar_lea.vmem %s0, %s345
      %s347 = smul.u32 4, %s21
      %s348 = smul.u32 %s21, 4
      %s349 = ssub.s32 %s348, 1
      %p350 = scmp.gt.s32.totalorder %s349, 0
      %s351 = scalar_select %p350, %s349, 0
      %p352 = scmp.lt.s32.totalorder %s20, 1
      %s353 = scalar_select %p352, %s20, 1
      %p354 = scmp.lt.s32.totalorder %s351, 15
      %s355 = scalar_select %p354, %s351, 15
      %s356 = smul.addr %s355, 2
      %s357 = smul.addr %s353, 32
      %s358 = sadd.s32 %s356, %s357
      %s359 = smul.addr %s358, 8
      %s360 = scalar_lea.vmem %s1, %s359
      %s361 = smul.u32 %s21, 4
      %s362 = ssub.s32 %s361, 1
      %p363 = scmp.gt.s32.totalorder %s362, 0
      %s364 = scalar_select %p363, %s362, 0
      %s365 = smul.u32 %s21, 4
      %s366 = sadd.s32 %s365, 4
      %p367 = scmp.lt.s32.totalorder %s366, 15
      %s368 = scalar_select %p367, %s366, 15
      %p369 = scmp.lt.s32.totalorder %s20, 1
      %s370 = scalar_select %p369, %s20, 1
      %p371 = scmp.lt.s32.totalorder %s368, 15
      %s372 = scalar_select %p371, %s368, 15
      %s373 = smul.addr %s372, 2
      %s374 = smul.addr %s370, 32
      %s375 = sadd.s32 %s373, %s374
      %s376 = smul.addr %s375, 8
      %s377 = scalar_lea.vmem %s2, %s376
      %s378 = smul.u32 %s21, 4
      %s379 = sadd.s32 %s378, 4
      %p380 = scmp.lt.s32.totalorder %s379, 15
      %s381 = scalar_select %p380, %s379, 15
      %s382 = smul.u32 4, %s21
      %p383 = scmp.lt.s32.totalorder %s20, 1
      %s384 = scalar_select %p383, %s20, 1
      %p385 = scmp.lt.s32.totalorder %s382, 15
      %s386 = scalar_select %p385, %s382, 15
      %s387 = smul.addr %s386, 2
      %s388 = smul.addr %s384, 32
      %s389 = sadd.s32 %s387, %s388
      %s390 = smul.addr %s389, 8
      %s391 = scalar_lea.vmem %s5, %s390
      %s392 = smul.u32 4, %s21
      %p393 = scmp.eq.s32.totalorder %s21, 0
      %p394 = scmp.eq.s32.totalorder %s21, 3
      %v395 = vld [vmem:[%s346] sm:$0xff]
      %v396 = vld [vmem:[%s346 + $0x8] sm:$0xff]
      %v397 = vld [vmem:[%s346 + $0x10] sm:$0xff]
      %v398 = vld [vmem:[%s346 + $0x18] sm:$0xff]
      %v399 = vld [vmem:[%s346 + $0x20] sm:$0xff]
      %v400 = vld [vmem:[%s346 + $0x28] sm:$0xff]
      %v401 = vld [vmem:[%s346 + $0x30] sm:$0xff]
      %v402 = vld [vmem:[%s346 + $0x38] sm:$0xff]
      %v403 = vld [vmem:[%s360] sm:$0xff]
      %v404 = vld [vmem:[%s360 + $0x8] sm:$0xff]
      %v405 = vld [vmem:[%s377] sm:$0xff]
      %v406 = vld [vmem:[%s377 + $0x8] sm:$0xff]
      %s407 = scalar_select %p393, 1, 0
      %v408 = vstv %s407
      %vm409 = vcmp.eq.s32.totalorder %v408, 1
      %v410 = vsel %vm409, 0.0, %v403
      %v411 = vsel %vm409, 0.0, %v404
      %s412 = scalar_select %p394, 1, 0
      %v413 = vstv %s412
      %vm414 = vcmp.eq.s32.totalorder %v413, 1
      %v415 = vsel %vm414, 0.0, %v405
      %v416 = vsel %vm414, 0.0, %v406
      %vm429 = vcmask 1040384
      %v430 = vrot.slane %v410, 7
      %v431 = vrot.slane %v411, 7
      %v432 = vsel %vm429, %v430, %v431
      %v433 = vrot.slane %v395, 7
      %v434 = vrot.slane %v396, 7
      %v435 = vsel %vm429, %v433, %v434
      %v436 = vrot.slane %v397, 7
      %v437 = vrot.slane %v398, 7
      %v438 = vsel %vm429, %v436, %v437
      %v439 = vrot.slane %v399, 7
      %v440 = vrot.slane %v400, 7
      %v441 = vsel %vm429, %v439, %v440
      %v442 = vrot.slane %v401, 7
      %v443 = vrot.slane %v402, 7
      %v444 = vsel %vm429, %v442, %v443
      %v445 = vrot.slane %v415, 7
      %v446 = vrot.slane %v416, 7
      %v447 = vsel %vm429, %v445, %v446
      %v460 = vsel %vm429, 0.0, %v430
      %v461 = vsel %vm429, 0.0, %v433
      %v462 = vsel %vm429, 0.0, %v436
      %v463 = vsel %vm429, 0.0, %v439
      %v464 = vsel %vm429, 0.0, %v442
      %v465 = vsel %vm429, 0.0, %v445
      %v466 = vsel %vm429, %v431, 0.0
      %v467 = vsel %vm429, %v434, 0.0
      %v468 = vsel %vm429, %v437, 0.0
      %v469 = vsel %vm429, %v440, 0.0
      %v470 = vsel %vm429, %v443, 0.0
      %v471 = vsel %vm429, %v446, 0.0
      %v472 = vld [vmem:[%s3] sm:$0xf]
      %vm481 = vcmask 1046528
      %v482 = vrot.slane %v460, 1
      %v483 = vrot.slane %v432, 1
      %v484 = vsel %vm481, %v482, %v483
      %v485 = vrot.slane %v466, 1
      %v486 = vsel %vm481, %v483, %v485
      %v487 = vrot.slane %v461, 1
      %v488 = vrot.slane %v435, 1
      %v489 = vsel %vm481, %v487, %v488
      %v490 = vrot.slane %v467, 1
      %v491 = vsel %vm481, %v488, %v490
      %v492 = vrot.slane %v462, 1
      %v493 = vrot.slane %v438, 1
      %v494 = vsel %vm481, %v492, %v493
      %v495 = vrot.slane %v468, 1
      %v496 = vsel %vm481, %v493, %v495
      %v497 = vrot.slane %v463, 1
      %v498 = vrot.slane %v441, 1
      %v499 = vsel %vm481, %v497, %v498
      %v500 = vrot.slane %v469, 1
      %v501 = vsel %vm481, %v498, %v500
      %v502 = vld [vmem:[%s3 + $0x4] sm:$0xf]
      %vm503 = vcmask 31744
      %v504 = vsel %vm503, %v484, 0
      %v506 = vsel %vm503, %v486, 0
      %v508 = vsel %vm503, %v489, 0
      %v510 = vsel %vm503, %v491, 0
      %v512 = vsel %vm503, %v494, 0
      %v514 = vsel %vm503, %v496, 0
      %v516 = vsel %vm503, %v499, 0
      %v518 = vsel %vm503, %v501, 0
      %vm520 = vcmask 1043456
      %v522 = vsel %vm520, %v502, 0
      %524 = vmatpush.msra.mxu0 0.0
      %525 = vmatpush.msra.mxu0 0.0
      %526 = vmatpush.msra.mxu0 0.0
      %527 = vmatpush.msra.mxu0 0.0
      %528 = vmatpush.msra.mxu0 0.0
      %529 = vmatpush.msra.mxu0 0.0
      %530 = vmatpush.msra.mxu0 0.0
      %531 = vmatpush.msra.mxu0 0.0
      %532 = vmatpush.msra.mxu0 0.0
      %533 = vmatpush.msra.mxu0 0.0
      %534 = vmatpush.msra.mxu0 0.0
      %535 = vmatpush.msra.mxu0 0.0
      %536 = vmatpush.msra.mxu0 0.0
      %537 = vmatpush.msra.mxu0 0.0
      %538 = vmatpush.msra.mxu0 0.0
      %539 = vmatpush.msra.mxu0 %v522
      %540 = vmatmul.f32.gmra.mxu0 %v504
      %v541 = vpop.f32.mrf.mxu0
      %v542 = vadd.f32 0.0, %v541
      %543 = vmatmul.f32.gmra.mxu0 %v506
      %v544 = vpop.f32.mrf.mxu0
      %v545 = vadd.f32 0.0, %v544
      %546 = vmatmul.f32.gmra.mxu0 %v508
      %v547 = vpop.f32.mrf.mxu0
      %v548 = vadd.f32 0.0, %v547
      %549 = vmatmul.f32.gmra.mxu0 %v510
      %v550 = vpop.f32.mrf.mxu0
      %v551 = vadd.f32 0.0, %v550
      %552 = vmatmul.f32.gmra.mxu0 %v512
      %v553 = vpop.f32.mrf.mxu0
      %v554 = vadd.f32 0.0, %v553
      %555 = vmatmul.f32.gmra.mxu0 %v514
      %v556 = vpop.f32.mrf.mxu0
      %v557 = vadd.f32 0.0, %v556
      %558 = vmatmul.f32.gmra.mxu0 %v516
      %v559 = vpop.f32.mrf.mxu0
      %v560 = vadd.f32 0.0, %v559
      %561 = vmatmul.f32.gmra.mxu0 %v518
      %v562 = vpop.f32.mrf.mxu0
      %v563 = vadd.f32 0.0, %v562
      %564 = vdwg.mxu0
      %v565 = vsel %vm503, %v460, 0
      %v567 = vsel %vm503, %v432, 0
      %v569 = vsel %vm503, %v461, 0
      %v571 = vsel %vm503, %v435, 0
      %v573 = vsel %vm503, %v462, 0
      %v575 = vsel %vm503, %v438, 0
      %v577 = vsel %vm503, %v463, 0
      %v579 = vsel %vm503, %v441, 0
      %v582 = vsel %vm520, %v472, 0
      %584 = vmatpush.msra.mxu0 0.0
      %585 = vmatpush.msra.mxu0 0.0
      %586 = vmatpush.msra.mxu0 0.0
      %587 = vmatpush.msra.mxu0 0.0
      %588 = vmatpush.msra.mxu0 0.0
      %589 = vmatpush.msra.mxu0 0.0
      %590 = vmatpush.msra.mxu0 0.0
      %591 = vmatpush.msra.mxu0 0.0
      %592 = vmatpush.msra.mxu0 0.0
      %593 = vmatpush.msra.mxu0 0.0
      %594 = vmatpush.msra.mxu0 0.0
      %595 = vmatpush.msra.mxu0 0.0
      %596 = vmatpush.msra.mxu0 0.0
      %597 = vmatpush.msra.mxu0 0.0
      %598 = vmatpush.msra.mxu0 0.0
      %599 = vmatpush.msra.mxu0 %v582
      %600 = vmatmul.f32.gmra.mxu0 %v565
      %v601 = vpop.f32.mrf.mxu0
      %v602 = vadd.f32 %v542, %v601
      %603 = vmatmul.f32.gmra.mxu0 %v567
      %v604 = vpop.f32.mrf.mxu0
      %v605 = vadd.f32 %v545, %v604
      %606 = vmatmul.f32.gmra.mxu0 %v569
      %v607 = vpop.f32.mrf.mxu0
      %v608 = vadd.f32 %v548, %v607
      %609 = vmatmul.f32.gmra.mxu0 %v571
      %v610 = vpop.f32.mrf.mxu0
      %v611 = vadd.f32 %v551, %v610
      %612 = vmatmul.f32.gmra.mxu0 %v573
      %v613 = vpop.f32.mrf.mxu0
      %v614 = vadd.f32 %v554, %v613
      %615 = vmatmul.f32.gmra.mxu0 %v575
      %v616 = vpop.f32.mrf.mxu0
      %v617 = vadd.f32 %v557, %v616
      %618 = vmatmul.f32.gmra.mxu0 %v577
      %v619 = vpop.f32.mrf.mxu0
      %v620 = vadd.f32 %v560, %v619
      %621 = vmatmul.f32.gmra.mxu0 %v579
      %v622 = vpop.f32.mrf.mxu0
      %v623 = vadd.f32 %v563, %v622
      %624 = vdwg.mxu0
      %vm625 = vcmask 1045504
      %v626 = vrot.slane %v460, 2
      %v627 = vrot.slane %v432, 2
      %v628 = vsel %vm625, %v626, %v627
      %v629 = vrot.slane %v466, 2
      %v630 = vsel %vm625, %v627, %v629
      %v631 = vrot.slane %v461, 2
      %v632 = vrot.slane %v435, 2
      %v633 = vsel %vm625, %v631, %v632
      %v634 = vrot.slane %v467, 2
      %v635 = vsel %vm625, %v632, %v634
      %v636 = vrot.slane %v462, 2
      %v637 = vrot.slane %v438, 2
      %v638 = vsel %vm625, %v636, %v637
      %v639 = vrot.slane %v468, 2
      %v640 = vsel %vm625, %v637, %v639
      %v641 = vrot.slane %v463, 2
      %v642 = vrot.slane %v441, 2
      %v643 = vsel %vm625, %v641, %v642
      %v644 = vrot.slane %v469, 2
      %v645 = vsel %vm625, %v642, %v644
      %v646 = vld [vmem:[%s3 + $0x8] sm:$0xf]
      %v647 = vsel %vm503, %v628, 0
      %v649 = vsel %vm503, %v630, 0
      %v651 = vsel %vm503, %v633, 0
      %v653 = vsel %vm503, %v635, 0
      %v655 = vsel %vm503, %v638, 0
      %v657 = vsel %vm503, %v640, 0
      %v659 = vsel %vm503, %v643, 0
      %v661 = vsel %vm503, %v645, 0
      %v664 = vsel %vm520, %v646, 0
      %666 = vmatpush.msra.mxu0 0.0
      %667 = vmatpush.msra.mxu0 0.0
      %668 = vmatpush.msra.mxu0 0.0
      %669 = vmatpush.msra.mxu0 0.0
      %670 = vmatpush.msra.mxu0 0.0
      %671 = vmatpush.msra.mxu0 0.0
      %672 = vmatpush.msra.mxu0 0.0
      %673 = vmatpush.msra.mxu0 0.0
      %674 = vmatpush.msra.mxu0 0.0
      %675 = vmatpush.msra.mxu0 0.0
      %676 = vmatpush.msra.mxu0 0.0
      %677 = vmatpush.msra.mxu0 0.0
      %678 = vmatpush.msra.mxu0 0.0
      %679 = vmatpush.msra.mxu0 0.0
      %680 = vmatpush.msra.mxu0 0.0
      %681 = vmatpush.msra.mxu0 %v664
      %682 = vmatmul.f32.gmra.mxu0 %v647
      %v683 = vpop.f32.mrf.mxu0
      %v684 = vadd.f32 0.0, %v683
      %685 = vmatmul.f32.gmra.mxu0 %v649
      %v686 = vpop.f32.mrf.mxu0
      %v687 = vadd.f32 0.0, %v686
      %688 = vmatmul.f32.gmra.mxu0 %v651
      %v689 = vpop.f32.mrf.mxu0
      %v690 = vadd.f32 0.0, %v689
      %691 = vmatmul.f32.gmra.mxu0 %v653
      %v692 = vpop.f32.mrf.mxu0
      %v693 = vadd.f32 0.0, %v692
      %694 = vmatmul.f32.gmra.mxu0 %v655
      %v695 = vpop.f32.mrf.mxu0
      %v696 = vadd.f32 0.0, %v695
      %697 = vmatmul.f32.gmra.mxu0 %v657
      %v698 = vpop.f32.mrf.mxu0
      %v699 = vadd.f32 0.0, %v698
      %700 = vmatmul.f32.gmra.mxu0 %v659
      %v701 = vpop.f32.mrf.mxu0
      %v702 = vadd.f32 0.0, %v701
      %703 = vmatmul.f32.gmra.mxu0 %v661
      %v704 = vpop.f32.mrf.mxu0
      %v705 = vadd.f32 0.0, %v704
      %706 = vdwg.mxu0
      %v707 = vadd.f32 %v602, %v684
      %v708 = vadd.f32 %v605, %v687
      %v709 = vadd.f32 %v608, %v690
      %v710 = vadd.f32 %v611, %v693
      %v711 = vadd.f32 %v614, %v696
      %v712 = vadd.f32 %v617, %v699
      %v713 = vadd.f32 %v620, %v702
      %v714 = vadd.f32 %v623, %v705
      %v715 = vld [vmem:[%s3 + $0xc] sm:$0xf]
      %v717 = vsel %vm503, %v464, 0
      %v719 = vsel %vm503, %v444, 0
      %v722 = vsel %vm520, %v715, 0
      %724 = vmatpush.msra.mxu0 0.0
      %725 = vmatpush.msra.mxu0 0.0
      %726 = vmatpush.msra.mxu0 0.0
      %727 = vmatpush.msra.mxu0 0.0
      %728 = vmatpush.msra.mxu0 0.0
      %729 = vmatpush.msra.mxu0 0.0
      %730 = vmatpush.msra.mxu0 0.0
      %731 = vmatpush.msra.mxu0 0.0
      %732 = vmatpush.msra.mxu0 0.0
      %733 = vmatpush.msra.mxu0 0.0
      %734 = vmatpush.msra.mxu0 0.0
      %735 = vmatpush.msra.mxu0 0.0
      %736 = vmatpush.msra.mxu0 0.0
      %737 = vmatpush.msra.mxu0 0.0
      %738 = vmatpush.msra.mxu0 0.0
      %739 = vmatpush.msra.mxu0 %v722
      %740 = vmatmul.f32.gmra.mxu0 %v569
      %v741 = vpop.f32.mrf.mxu0
      %v742 = vadd.f32 0.0, %v741
      %743 = vmatmul.f32.gmra.mxu0 %v571
      %v744 = vpop.f32.mrf.mxu0
      %v745 = vadd.f32 0.0, %v744
      %746 = vmatmul.f32.gmra.mxu0 %v573
      %v747 = vpop.f32.mrf.mxu0
      %v748 = vadd.f32 0.0, %v747
      %749 = vmatmul.f32.gmra.mxu0 %v575
      %v750 = vpop.f32.mrf.mxu0
      %v751 = vadd.f32 0.0, %v750
      %752 = vmatmul.f32.gmra.mxu0 %v577
      %v753 = vpop.f32.mrf.mxu0
      %v754 = vadd.f32 0.0, %v753
      %755 = vmatmul.f32.gmra.mxu0 %v579
      %v756 = vpop.f32.mrf.mxu0
      %v757 = vadd.f32 0.0, %v756
      %758 = vmatmul.f32.gmra.mxu0 %v717
      %v759 = vpop.f32.mrf.mxu0
      %v760 = vadd.f32 0.0, %v759
      %761 = vmatmul.f32.gmra.mxu0 %v719
      %v762 = vpop.f32.mrf.mxu0
      %v763 = vadd.f32 0.0, %v762
      %764 = vdwg.mxu0
      %v765 = vadd.f32 %v707, %v742
      %v766 = vadd.f32 %v708, %v745
      %v767 = vadd.f32 %v709, %v748
      %v768 = vadd.f32 %v710, %v751
      %v769 = vadd.f32 %v711, %v754
      %v770 = vadd.f32 %v712, %v757
      %v771 = vadd.f32 %v713, %v760
      %v772 = vadd.f32 %v714, %v763
      %v774 = vrot.slane %v464, 1
      %v775 = vrot.slane %v444, 1
      %v776 = vsel %vm481, %v774, %v775
      %v777 = vrot.slane %v470, 1
      %v778 = vsel %vm481, %v775, %v777
      %v779 = vld [vmem:[%s3 + $0x10] sm:$0xf]
      %v780 = vsel %vm503, %v776, 0
      %v782 = vsel %vm503, %v778, 0
      %v785 = vsel %vm520, %v779, 0
      %787 = vmatpush.msra.mxu0 0.0
      %788 = vmatpush.msra.mxu0 0.0
      %789 = vmatpush.msra.mxu0 0.0
      %790 = vmatpush.msra.mxu0 0.0
      %791 = vmatpush.msra.mxu0 0.0
      %792 = vmatpush.msra.mxu0 0.0
      %793 = vmatpush.msra.mxu0 0.0
      %794 = vmatpush.msra.mxu0 0.0
      %795 = vmatpush.msra.mxu0 0.0
      %796 = vmatpush.msra.mxu0 0.0
      %797 = vmatpush.msra.mxu0 0.0
      %798 = vmatpush.msra.mxu0 0.0
      %799 = vmatpush.msra.mxu0 0.0
      %800 = vmatpush.msra.mxu0 0.0
      %801 = vmatpush.msra.mxu0 0.0
      %802 = vmatpush.msra.mxu0 %v785
      %803 = vmatmul.f32.gmra.mxu0 %v508
      %v804 = vpop.f32.mrf.mxu0
      %v805 = vadd.f32 0.0, %v804
      %806 = vmatmul.f32.gmra.mxu0 %v510
      %v807 = vpop.f32.mrf.mxu0
      %v808 = vadd.f32 0.0, %v807
      %809 = vmatmul.f32.gmra.mxu0 %v512
      %v810 = vpop.f32.mrf.mxu0
      %v811 = vadd.f32 0.0, %v810
      %812 = vmatmul.f32.gmra.mxu0 %v514
      %v813 = vpop.f32.mrf.mxu0
      %v814 = vadd.f32 0.0, %v813
      %815 = vmatmul.f32.gmra.mxu0 %v516
      %v816 = vpop.f32.mrf.mxu0
      %v817 = vadd.f32 0.0, %v816
      %818 = vmatmul.f32.gmra.mxu0 %v518
      %v819 = vpop.f32.mrf.mxu0
      %v820 = vadd.f32 0.0, %v819
      %821 = vmatmul.f32.gmra.mxu0 %v780
      %v822 = vpop.f32.mrf.mxu0
      %v823 = vadd.f32 0.0, %v822
      %824 = vmatmul.f32.gmra.mxu0 %v782
      %v825 = vpop.f32.mrf.mxu0
      %v826 = vadd.f32 0.0, %v825
      %827 = vdwg.mxu0
      %v828 = vadd.f32 %v765, %v805
      %v829 = vadd.f32 %v766, %v808
      %v830 = vadd.f32 %v767, %v811
      %v831 = vadd.f32 %v768, %v814
      %v832 = vadd.f32 %v769, %v817
      %v833 = vadd.f32 %v770, %v820
      %v834 = vadd.f32 %v771, %v823
      %v835 = vadd.f32 %v772, %v826
      %v836 = vrot.slane %v464, 2
      %v837 = vrot.slane %v444, 2
      %v838 = vsel %vm625, %v836, %v837
      %v839 = vrot.slane %v470, 2
      %v840 = vsel %vm625, %v837, %v839
      %v841 = vld [vmem:[%s3 + $0x14] sm:$0xf]
      %v842 = vsel %vm503, %v838, 0
      %v844 = vsel %vm503, %v840, 0
      %v847 = vsel %vm520, %v841, 0
      %849 = vmatpush.msra.mxu0 0.0
      %850 = vmatpush.msra.mxu0 0.0
      %851 = vmatpush.msra.mxu0 0.0
      %852 = vmatpush.msra.mxu0 0.0
      %853 = vmatpush.msra.mxu0 0.0
      %854 = vmatpush.msra.mxu0 0.0
      %855 = vmatpush.msra.mxu0 0.0
      %856 = vmatpush.msra.mxu0 0.0
      %857 = vmatpush.msra.mxu0 0.0
      %858 = vmatpush.msra.mxu0 0.0
      %859 = vmatpush.msra.mxu0 0.0
      %860 = vmatpush.msra.mxu0 0.0
      %861 = vmatpush.msra.mxu0 0.0
      %862 = vmatpush.msra.mxu0 0.0
      %863 = vmatpush.msra.mxu0 0.0
      %864 = vmatpush.msra.mxu0 %v847
      %865 = vmatmul.f32.gmra.mxu0 %v651
      %v866 = vpop.f32.mrf.mxu0
      %v867 = vadd.f32 0.0, %v866
      %868 = vmatmul.f32.gmra.mxu0 %v653
      %v869 = vpop.f32.mrf.mxu0
      %v870 = vadd.f32 0.0, %v869
      %871 = vmatmul.f32.gmra.mxu0 %v655
      %v872 = vpop.f32.mrf.mxu0
      %v873 = vadd.f32 0.0, %v872
      %874 = vmatmul.f32.gmra.mxu0 %v657
      %v875 = vpop.f32.mrf.mxu0
      %v876 = vadd.f32 0.0, %v875
      %877 = vmatmul.f32.gmra.mxu0 %v659
      %v878 = vpop.f32.mrf.mxu0
      %v879 = vadd.f32 0.0, %v878
      %880 = vmatmul.f32.gmra.mxu0 %v661
      %v881 = vpop.f32.mrf.mxu0
      %v882 = vadd.f32 0.0, %v881
      %883 = vmatmul.f32.gmra.mxu0 %v842
      %v884 = vpop.f32.mrf.mxu0
      %v885 = vadd.f32 0.0, %v884
      %886 = vmatmul.f32.gmra.mxu0 %v844
      %v887 = vpop.f32.mrf.mxu0
      %v888 = vadd.f32 0.0, %v887
      %889 = vdwg.mxu0
      %v890 = vadd.f32 %v828, %v867
      %v891 = vadd.f32 %v829, %v870
      %v892 = vadd.f32 %v830, %v873
      %v893 = vadd.f32 %v831, %v876
      %v894 = vadd.f32 %v832, %v879
      %v895 = vadd.f32 %v833, %v882
      %v896 = vadd.f32 %v834, %v885
      %v897 = vadd.f32 %v835, %v888
      %v898 = vld [vmem:[%s3 + $0x18] sm:$0xf]
      %v900 = vsel %vm503, %v465, 0
      %v902 = vsel %vm503, %v447, 0
      %v905 = vsel %vm520, %v898, 0
      %907 = vmatpush.msra.mxu0 0.0
      %908 = vmatpush.msra.mxu0 0.0
      %909 = vmatpush.msra.mxu0 0.0
      %910 = vmatpush.msra.mxu0 0.0
      %911 = vmatpush.msra.mxu0 0.0
      %912 = vmatpush.msra.mxu0 0.0
      %913 = vmatpush.msra.mxu0 0.0
      %914 = vmatpush.msra.mxu0 0.0
      %915 = vmatpush.msra.mxu0 0.0
      %916 = vmatpush.msra.mxu0 0.0
      %917 = vmatpush.msra.mxu0 0.0
      %918 = vmatpush.msra.mxu0 0.0
      %919 = vmatpush.msra.mxu0 0.0
      %920 = vmatpush.msra.mxu0 0.0
      %921 = vmatpush.msra.mxu0 0.0
      %922 = vmatpush.msra.mxu0 %v905
      %923 = vmatmul.f32.gmra.mxu0 %v573
      %v924 = vpop.f32.mrf.mxu0
      %v925 = vadd.f32 0.0, %v924
      %926 = vmatmul.f32.gmra.mxu0 %v575
      %v927 = vpop.f32.mrf.mxu0
      %v928 = vadd.f32 0.0, %v927
      %929 = vmatmul.f32.gmra.mxu0 %v577
      %v930 = vpop.f32.mrf.mxu0
      %v931 = vadd.f32 0.0, %v930
      %932 = vmatmul.f32.gmra.mxu0 %v579
      %v933 = vpop.f32.mrf.mxu0
      %v934 = vadd.f32 0.0, %v933
      %935 = vmatmul.f32.gmra.mxu0 %v717
      %v936 = vpop.f32.mrf.mxu0
      %v937 = vadd.f32 0.0, %v936
      %938 = vmatmul.f32.gmra.mxu0 %v719
      %v939 = vpop.f32.mrf.mxu0
      %v940 = vadd.f32 0.0, %v939
      %941 = vmatmul.f32.gmra.mxu0 %v900
      %v942 = vpop.f32.mrf.mxu0
      %v943 = vadd.f32 0.0, %v942
      %944 = vmatmul.f32.gmra.mxu0 %v902
      %v945 = vpop.f32.mrf.mxu0
      %v946 = vadd.f32 0.0, %v945
      %947 = vdwg.mxu0
      %v948 = vadd.f32 %v890, %v925
      %v949 = vadd.f32 %v891, %v928
      %v950 = vadd.f32 %v892, %v931
      %v951 = vadd.f32 %v893, %v934
      %v952 = vadd.f32 %v894, %v937
      %v953 = vadd.f32 %v895, %v940
      %v954 = vadd.f32 %v896, %v943
      %v955 = vadd.f32 %v897, %v946
      %v957 = vrot.slane %v465, 1
      %v958 = vrot.slane %v447, 1
      %v959 = vsel %vm481, %v957, %v958
      %v960 = vrot.slane %v471, 1
      %v961 = vsel %vm481, %v958, %v960
      %v962 = vld [vmem:[%s3 + $0x1c] sm:$0xf]
      %v963 = vsel %vm503, %v959, 0
      %v965 = vsel %vm503, %v961, 0
      %v968 = vsel %vm520, %v962, 0
      %970 = vmatpush.msra.mxu0 0.0
      %971 = vmatpush.msra.mxu0 0.0
      %972 = vmatpush.msra.mxu0 0.0
      %973 = vmatpush.msra.mxu0 0.0
      %974 = vmatpush.msra.mxu0 0.0
      %975 = vmatpush.msra.mxu0 0.0
      %976 = vmatpush.msra.mxu0 0.0
      %977 = vmatpush.msra.mxu0 0.0
      %978 = vmatpush.msra.mxu0 0.0
      %979 = vmatpush.msra.mxu0 0.0
      %980 = vmatpush.msra.mxu0 0.0
      %981 = vmatpush.msra.mxu0 0.0
      %982 = vmatpush.msra.mxu0 0.0
      %983 = vmatpush.msra.mxu0 0.0
      %984 = vmatpush.msra.mxu0 0.0
      %985 = vmatpush.msra.mxu0 %v968
      %986 = vmatmul.f32.gmra.mxu0 %v512
      %v987 = vpop.f32.mrf.mxu0
      %v988 = vadd.f32 0.0, %v987
      %989 = vmatmul.f32.gmra.mxu0 %v514
      %v990 = vpop.f32.mrf.mxu0
      %v991 = vadd.f32 0.0, %v990
      %992 = vmatmul.f32.gmra.mxu0 %v516
      %v993 = vpop.f32.mrf.mxu0
      %v994 = vadd.f32 0.0, %v993
      %995 = vmatmul.f32.gmra.mxu0 %v518
      %v996 = vpop.f32.mrf.mxu0
      %v997 = vadd.f32 0.0, %v996
      %998 = vmatmul.f32.gmra.mxu0 %v780
      %v999 = vpop.f32.mrf.mxu0
      %v1000 = vadd.f32 0.0, %v999
      %1001 = vmatmul.f32.gmra.mxu0 %v782
      %v1002 = vpop.f32.mrf.mxu0
      %v1003 = vadd.f32 0.0, %v1002
      %1004 = vmatmul.f32.gmra.mxu0 %v963
      %v1005 = vpop.f32.mrf.mxu0
      %v1006 = vadd.f32 0.0, %v1005
      %1007 = vmatmul.f32.gmra.mxu0 %v965
      %v1008 = vpop.f32.mrf.mxu0
      %v1009 = vadd.f32 0.0, %v1008
      %1010 = vdwg.mxu0
      %v1011 = vadd.f32 %v948, %v988
      %v1012 = vadd.f32 %v949, %v991
      %v1013 = vadd.f32 %v950, %v994
      %v1014 = vadd.f32 %v951, %v997
      %v1015 = vadd.f32 %v952, %v1000
      %v1016 = vadd.f32 %v953, %v1003
      %v1017 = vadd.f32 %v954, %v1006
      %v1018 = vadd.f32 %v955, %v1009
      %v1019 = vrot.slane %v465, 2
      %v1020 = vrot.slane %v447, 2
      %v1021 = vsel %vm625, %v1019, %v1020
      %v1022 = vrot.slane %v471, 2
      %v1023 = vsel %vm625, %v1020, %v1022
      %v1024 = vld [vmem:[%s3 + $0x20] sm:$0xf]
      %v1025 = vsel %vm503, %v1021, 0
      %v1027 = vsel %vm503, %v1023, 0
      %v1030 = vsel %vm520, %v1024, 0
      %1032 = vmatpush.msra.mxu0 0.0
      %1033 = vmatpush.msra.mxu0 0.0
      %1034 = vmatpush.msra.mxu0 0.0
      %1035 = vmatpush.msra.mxu0 0.0
      %1036 = vmatpush.msra.mxu0 0.0
      %1037 = vmatpush.msra.mxu0 0.0
      %1038 = vmatpush.msra.mxu0 0.0
      %1039 = vmatpush.msra.mxu0 0.0
      %1040 = vmatpush.msra.mxu0 0.0
      %1041 = vmatpush.msra.mxu0 0.0
      %1042 = vmatpush.msra.mxu0 0.0
      %1043 = vmatpush.msra.mxu0 0.0
      %1044 = vmatpush.msra.mxu0 0.0
      %1045 = vmatpush.msra.mxu0 0.0
      %1046 = vmatpush.msra.mxu0 0.0
      %1047 = vmatpush.msra.mxu0 %v1030
      %1048 = vmatmul.f32.gmra.mxu0 %v655
      %v1049 = vpop.f32.mrf.mxu0
      %v1050 = vadd.f32 0.0, %v1049
      %1051 = vmatmul.f32.gmra.mxu0 %v657
      %v1052 = vpop.f32.mrf.mxu0
      %v1053 = vadd.f32 0.0, %v1052
      %1054 = vmatmul.f32.gmra.mxu0 %v659
      %v1055 = vpop.f32.mrf.mxu0
      %v1056 = vadd.f32 0.0, %v1055
      %1057 = vmatmul.f32.gmra.mxu0 %v661
      %v1058 = vpop.f32.mrf.mxu0
      %v1059 = vadd.f32 0.0, %v1058
      %1060 = vmatmul.f32.gmra.mxu0 %v842
      %v1061 = vpop.f32.mrf.mxu0
      %v1062 = vadd.f32 0.0, %v1061
      %1063 = vmatmul.f32.gmra.mxu0 %v844
      %v1064 = vpop.f32.mrf.mxu0
      %v1065 = vadd.f32 0.0, %v1064
      %1066 = vmatmul.f32.gmra.mxu0 %v1025
      %v1067 = vpop.f32.mrf.mxu0
      %v1068 = vadd.f32 0.0, %v1067
      %1069 = vmatmul.f32.gmra.mxu0 %v1027
      %v1070 = vpop.f32.mrf.mxu0
      %v1071 = vadd.f32 0.0, %v1070
      %1072 = vdwg.mxu0
      %v1073 = vadd.f32 %v1011, %v1050
      %v1074 = vadd.f32 %v1012, %v1053
      %v1075 = vadd.f32 %v1013, %v1056
      %v1076 = vadd.f32 %v1014, %v1059
      %v1077 = vadd.f32 %v1015, %v1062
      %v1078 = vadd.f32 %v1016, %v1065
      %v1079 = vadd.f32 %v1017, %v1068
      %v1080 = vadd.f32 %v1018, %v1071
      %v1081 = vld [vmem:[%s4] sm:$0x1]
      %v1083 = vperm.slane %v1081, 0
      %v1085 = vadd.f32 %v1073, %v1083
      %v1086 = vadd.f32 %v1074, %v1083
      %v1087 = vadd.f32 %v1075, %v1083
      %v1088 = vadd.f32 %v1076, %v1083
      %v1089 = vadd.f32 %v1077, %v1083
      %v1090 = vadd.f32 %v1078, %v1083
      %v1091 = vadd.f32 %v1079, %v1083
      %v1092 = vadd.f32 %v1080, %v1083
      %v1093 = vmax.f32 %v1085, 0.0
      %v1094 = vmax.f32 %v1086, 0.0
      %v1095 = vmax.f32 %v1087, 0.0
      %v1096 = vmax.f32 %v1088, 0.0
      %v1097 = vmax.f32 %v1089, 0.0
      %v1098 = vmax.f32 %v1090, 0.0
      %v1099 = vmax.f32 %v1091, 0.0
      %v1100 = vmax.f32 %v1092, 0.0
      %1101 = vst.msk [vmem:[%s391] sm:$0xff] %vm503, %v1093
      %1102 = vst.msk [vmem:[%s391 + $0x8] sm:$0xff] %vm503, %v1094
      %1103 = vst.msk [vmem:[%s391 + $0x10] sm:$0xff] %vm503, %v1095
      %1104 = vst.msk [vmem:[%s391 + $0x18] sm:$0xff] %vm503, %v1096
      %1105 = vst.msk [vmem:[%s391 + $0x20] sm:$0xff] %vm503, %v1097
      %1106 = vst.msk [vmem:[%s391 + $0x28] sm:$0xff] %vm503, %v1098
      %1107 = vst.msk [vmem:[%s391 + $0x30] sm:$0xff] %vm503, %v1099
      %1108 = vst.msk [vmem:[%s391 + $0x38] sm:$0xff] %vm503, %v1100
      %s1109 = smul.u32 4, %s21
      %p1110 = scmp.lt.s32.totalorder %s20, 1
      %s1111 = scalar_select %p1110, %s20, 1
      %p1112 = scmp.lt.s32.totalorder %s1109, 15
      %s1113 = scalar_select %p1112, %s1109, 15
      %s1114 = smul.addr %s1113, 2
      %s1115 = smul.addr %s1111, 32
      %s1116 = sadd.s32 %s1114, %s1115
      %s1117 = smul.addr %s1116, 8
      %s1118 = scalar_lea.vmem %s5, %s1117
      // Predicated region
      $region41: #{unet_up_block_forward.5} parent=39 // pred_check
        %p1119 = pneg %p190
      $region42: #{unet_up_block_forward.5} parent=39 // pred_check_branch
        %1121 = sbr.rel (%p1119) target = $region44
      $region43: #{unet_up_block_forward.5} parent=39 // pred_region
        %s1122 = smul.u32 4, %s21
      $region44: #{unet_up_block_forward.5} parent=39 // pred_fallthru
        _
    $region40: #{unet_up_block_forward.5} parent=5 // pred_fallthru
      _
    %p1123 = scmp.le.s32.totalorder 2, %s11
    // Predicated region
    $region45: #{unet_up_block_forward.5} parent=5 // pred_check
      %p1124 = pneg %p1123
    $region46: #{unet_up_block_forward.5} parent=5 // pred_check_branch
      %1126 = sbr.rel (%p1124) target = $region48
    $region47: #{unet_up_block_forward.5} parent=5 // pred_region
      %s1127 = ssub.s32 %s11, 2
      // Predicated region
      $region49: #{unet_up_block_forward.5} parent=47 // pred_check
        %p1128 = pneg %p196
      $region50: #{unet_up_block_forward.5} parent=47 // pred_check_branch
        %1130 = sbr.rel (%p1128) target = $region52
      $region51: #{unet_up_block_forward.5} parent=47 // pred_region
        %s1131 = smul.u32 4, %s23
        %p1132 = scmp.lt.s32.totalorder %s22, 1
        %s1133 = scalar_select %p1132, %s22, 1
        %p1134 = scmp.lt.s32.totalorder %s1131, 15
        %s1135 = scalar_select %p1134, %s1131, 15
        %s1136 = smul.addr %s1135, 2
        %s1137 = smul.addr %s1133, 32
        %s1138 = sadd.s32 %s1136, %s1137
        %s1139 = smul.addr %s1138, 8
        %s1140 = scalar_lea.vmem %s5, %s1139
      $region52: #{unet_up_block_forward.5} parent=47 // pred_fallthru
        _
    $region48: #{unet_up_block_forward.5} parent=5 // pred_fallthru
      _
  $region6: #{unet_up_block_forward.5} parent=0 // loop_footer
    %s15 = sadd.s32 1, %s11
  $region7: #{unet_up_block_forward.5} parent=0 // loop_footer_branch
    %10 = sbr.rel target = $region3
  $region8: #{unet_up_block_forward.5} parent=0 // loop_exit
    _

// kernel: unet_up_block_forward.4
$region0: #{unet_up_block_forward.4}
  #allocation0 [shape = 'u32[]', space=smem, size = 0x4, offset = 0x4, fixed_abs, tag = 'smem constant byte address 0x4 - core index']
  #allocation1 [shape = 'u32[72,128]{1,0:T(1,128)}', space=vmem, size = 0x9000, scoped, tag = 'internal scratch']
  %s0 = inlined_call_operand.vmem [shape: f32[2,16,16,4], index: 0, kind: input, shape index: {}, may-alias: {0,1,2}]
  %s1 = inlined_call_operand.vmem [shape: f32[2,16,16,4], index: 1, kind: input, shape index: {}, may-alias: {0,1,2}]
  %s2 = inlined_call_operand.vmem [shape: f32[2,16,16,4], index: 2, kind: input, shape index: {}, may-alias: {0,1,2}]
  %s3 = inlined_call_operand.vmem [shape: f32[2,16,16,4], index: 3, kind: input, shape index: {}, may-alias: {3,4,5}]
  %s4 = inlined_call_operand.vmem [shape: f32[2,16,16,4], index: 4, kind: input, shape index: {}, may-alias: {3,4,5}]
  %s5 = inlined_call_operand.vmem [shape: f32[2,16,16,4], index: 5, kind: input, shape index: {}, may-alias: {3,4,5}]
  %s6 = inlined_call_operand.vmem [shape: f32[72,4], index: 6, kind: input, shape index: {}]
  %s7 = inlined_call_operand.vmem [shape: f32[1,4], index: 7, kind: input, shape index: {}]
  %s8 = inlined_call_operand.vmem [shape: f32[2,16,16,4], index: 8, kind: output, shape index: {}]
  %s9 = sld [smem:[#allocation0]]
  $region65: #{unet_up_block_forward.4} parent=0
    _
  %s11 = ssub.s32 1, %s9
  %s12 = scalar_select 0, %s11, %s9
  loop: start=0, step=1, limit=10
  $region2: #{unet_up_block_forward.4} parent=0 // loop_pre_header
    _
  $region3: #{unet_up_block_forward.4} parent=0 // loop_header
    %s14 = sphi 0, %s18
    %p15 = scmp.ge.s32.totalorder %s14, 10
    %s21 = sphi 0, %s33
    %s22 = sphi 0, %s29
    %s23 = sphi 0, %s21
    %s24 = sphi 0, %s22
    %s25 = sphi 0, %s23
    %s26 = sphi 0, %s24
    %s38 = sphi 0, %s40
    %s41 = sphi 0, %s38
    %s42 = sphi 0, %s41
    %s58 = sphi 0, %s42
    %s74 = sphi 0, %s76
    %s77 = sphi 0, %s74
    %s78 = sphi 0, %s77
    %s94 = sphi 0, %s78
    %s110 = sphi 0, %s112
    %s113 = sphi 0, %s110
    %s114 = sphi 0, %s113
    %s130 = sphi 0, %s114
    %s138 = sphi 0, %s140
    %s141 = sphi 0, %s138
    %s142 = sphi 0, %s141
    %s158 = sphi 0, %s142
    %s174 = sphi 0, %s176
    %s177 = sphi 0, %s174
    %s178 = sphi 0, %s177
    %s194 = sphi 0, %s178
    %s210 = sphi 0, %s212
    %s213 = sphi 0, %s210
    %s214 = sphi 0, %s213
    %s230 = sphi 0, %s214
    %s234 = sphi 0, %s234
    %s236 = sphi 0, %s234
    %s237 = sphi 0, %s236
    %s251 = sphi 0, %s237
    %s255 = sphi 0, %s255
    %s257 = sphi 0, %s255
    %s258 = sphi 0, %s257
    %s272 = sphi 0, %s258
    %s280 = sphi 0, %s282
    %s283 = sphi 0, %s280
    %s284 = sphi 0, %s283
    %s300 = sphi 0, %s284
  $region4: #{unet_up_block_forward.4} parent=0 // loop_header_branch
    %17 = sbr.rel (%p15) target = $region8
  $region5: #{unet_up_block_forward.4} parent=0 // loop_body
    %s19 = ssub.s32 %s14, 1
    %s20 = ssub.s32 %s14, 2
    %s27 = sadd.s32 1, %s22
    %p28 = scmp.ge.s32.totalorder %s27, 4
    %s29 = scalar_select %p28, 0, %s27
    %s30 = sadd.s32 1, %s21
    %s31 = scalar_select %p28, %s30, %s21
    %p32 = scmp.ge.s32.totalorder %s31, 2
    %s33 = scalar_select %p32, 0, %s31
    %s34 = ssub.s32 %s21, %s33
    %s35 = ssub.s32 %s22, %s29
    %s36 = sor.u32 %s34, %s35
    %p37 = scmp.eq.s32.totalorder %s36, 0
    %s39 = sadd.s32 %s38, 1
    %s40 = scalar_select %p37, %s38, %s39
    %p43 = pneg %p37
    %p44 = scmp.eq.s32.totalorder %s14, 7
    %p45 = por %p43, %p44
    %p46 = scmp.ne.s32.totalorder %s38, %s41
    %p47 = scmp.eq.s32.totalorder %s14, 0
    %p48 = por %p46, %p47
    %p49 = scmp.ne.s32.totalorder %s38, %s41
    %p50 = scmp.eq.s32.totalorder %s19, 7
    %p51 = por %p49, %p50
    %p52 = scmp.ne.s32.totalorder %s41, %s42
    %p53 = scmp.eq.s32.totalorder %s19, 0
    %p54 = por %p52, %p53
    %p55 = scmp.ne.s32.totalorder %s41, %s42
    %p56 = scmp.eq.s32.totalorder %s20, 7
    %p57 = por %p55, %p56
    %p59 = scmp.ne.s32.totalorder %s42, %s58
    %p60 = scmp.eq.s32.totalorder %s20, 0
    %p61 = por %p59, %p60
    %s62 = smul.u32 %s22, 4
    %s63 = ssub.s32 %s62, 1
    %p64 = scmp.gt.s32.totalorder %s63, 0
    %s65 = scalar_select %p64, %s63, 0
    %s66 = smul.u32 %s29, 4
    %s67 = ssub.s32 %s66, 1
    %p68 = scmp.gt.s32.totalorder %s67, 0
    %s69 = scalar_select %p68, %s67, 0
    %s70 = ssub.s32 %s21, %s33
    %s71 = ssub.s32 %s65, %s69
    %s72 = sor.u32 %s70, %s71
    %p73 = scmp.eq.s32.totalorder %s72, 0
    %s75 = sadd.s32 %s74, 1
    %s76 = scalar_select %p73, %s74, %s75
    %p79 = pneg %p73
    %p80 = scmp.eq.s32.totalorder %s14, 7
    %p81 = por %p79, %p80
    %p82 = scmp.ne.s32.totalorder %s74, %s77
    %p83 = scmp.eq.s32.totalorder %s14, 0
    %p84 = por %p82, %p83
    %p85 = scmp.ne.s32.totalorder %s74, %s77
    %p86 = scmp.eq.s32.totalorder %s19, 7
    %p87 = por %p85, %p86
    %p88 = scmp.ne.s32.totalorder %s77, %s78
    %p89 = scmp.eq.s32.totalorder %s19, 0
    %p90 = por %p88, %p89
    %p91 = scmp.ne.s32.totalorder %s77, %s78
    %p92 = scmp.eq.s32.totalorder %s20, 7
    %p93 = por %p91, %p92
    %p95 = scmp.ne.s32.totalorder %s78, %s94
    %p96 = scmp.eq.s32.totalorder %s20, 0
    %p97 = por %p95, %p96
    %s98 = smul.u32 %s22, 4
    %s99 = sadd.s32 %s98, 4
    %p100 = scmp.lt.s32.totalorder %s99, 15
    %s101 = scalar_select %p100, %s99, 15
    %s102 = smul.u32 %s29, 4
    %s103 = sadd.s32 %s102, 4
    %p104 = scmp.lt.s32.totalorder %s103, 15
    %s105 = scalar_select %p104, %s103, 15
    %s106 = ssub.s32 %s21, %s33
    %s107 = ssub.s32 %s101, %s105
    %s108 = sor.u32 %s106, %s107
    %p109 = scmp.eq.s32.totalorder %s108, 0
    %s111 = sadd.s32 %s110, 1
    %s112 = scalar_select %p109, %s110, %s111
    %p115 = pneg %p109
    %p116 = scmp.eq.s32.totalorder %s14, 7
    %p117 = por %p115, %p116
    %p118 = scmp.ne.s32.totalorder %s110, %s113
    %p119 = scmp.eq.s32.totalorder %s14, 0
    %p120 = por %p118, %p119
    %p121 = scmp.ne.s32.totalorder %s110, %s113
    %p122 = scmp.eq.s32.totalorder %s19, 7
    %p123 = por %p121, %p122
    %p124 = scmp.ne.s32.totalorder %s113, %s114
    %p125 = scmp.eq.s32.totalorder %s19, 0
    %p126 = por %p124, %p125
    %p127 = scmp.ne.s32.totalorder %s113, %s114
    %p128 = scmp.eq.s32.totalorder %s20, 7
    %p129 = por %p127, %p128
    %p131 = scmp.ne.s32.totalorder %s114, %s130
    %p132 = scmp.eq.s32.totalorder %s20, 0
    %p133 = por %p131, %p132
    %s134 = ssub.s32 %s21, %s33
    %s135 = ssub.s32 %s22, %s29
    %s136 = sor.u32 %s134, %s135
    %p137 = scmp.eq.s32.totalorder %s136, 0
    %s139 = sadd.s32 %s138, 1
    %s140 = scalar_select %p137, %s138, %s139
    %p143 = pneg %p137
    %p144 = scmp.eq.s32.totalorder %s14, 7
    %p145 = por %p143, %p144
    %p146 = scmp.ne.s32.totalorder %s138, %s141
    %p147 = scmp.eq.s32.totalorder %s14, 0
    %p148 = por %p146, %p147
    %p149 = scmp.ne.s32.totalorder %s138, %s141
    %p150 = scmp.eq.s32.totalorder %s19, 7
    %p151 = por %p149, %p150
    %p152 = scmp.ne.s32.totalorder %s141, %s142
    %p153 = scmp.eq.s32.totalorder %s19, 0
    %p154 = por %p152, %p153
    %p155 = scmp.ne.s32.totalorder %s141, %s142
    %p156 = scmp.eq.s32.totalorder %s20, 7
    %p157 = por %p155, %p156
    %p159 = scmp.ne.s32.totalorder %s142, %s158
    %p160 = scmp.eq.s32.totalorder %s20, 0
    %p161 = por %p159, %p160
    %s162 = smul.u32 %s22, 4
    %s163 = ssub.s32 %s162, 1
    %p164 = scmp.gt.s32.totalorder %s163, 0
    %s165 = scalar_select %p164, %s163, 0
    %s166 = smul.u32 %s29, 4
    %s167 = ssub.s32 %s166, 1
    %p168 = scmp.gt.s32.totalorder %s167, 0
    %s169 = scalar_select %p168, %s167, 0
    %s170 = ssub.s32 %s21, %s33
    %s171 = ssub.s32 %s165, %s169
    %s172 = sor.u32 %s170, %s171
    %p173 = scmp.eq.s32.totalorder %s172, 0
    %s175 = sadd.s32 %s174, 1
    %s176 = scalar_select %p173, %s174, %s175
    %p179 = pneg %p173
    %p180 = scmp.eq.s32.totalorder %s14, 7
    %p181 = por %p179, %p180
    %p182 = scmp.ne.s32.totalorder %s174, %s177
    %p183 = scmp.eq.s32.totalorder %s14, 0
    %p184 = por %p182, %p183
    %p185 = scmp.ne.s32.totalorder %s174, %s177
    %p186 = scmp.eq.s32.totalorder %s19, 7
    %p187 = por %p185, %p186
    %p188 = scmp.ne.s32.totalorder %s177, %s178
    %p189 = scmp.eq.s32.totalorder %s19, 0
    %p190 = por %p188, %p189
    %p191 = scmp.ne.s32.totalorder %s177, %s178
    %p192 = scmp.eq.s32.totalorder %s20, 7
    %p193 = por %p191, %p192
    %p195 = scmp.ne.s32.totalorder %s178, %s194
    %p196 = scmp.eq.s32.totalorder %s20, 0
    %p197 = por %p195, %p196
    %s198 = smul.u32 %s22, 4
    %s199 = sadd.s32 %s198, 4
    %p200 = scmp.lt.s32.totalorder %s199, 15
    %s201 = scalar_select %p200, %s199, 15
    %s202 = smul.u32 %s29, 4
    %s203 = sadd.s32 %s202, 4
    %p204 = scmp.lt.s32.totalorder %s203, 15
    %s205 = scalar_select %p204, %s203, 15
    %s206 = ssub.s32 %s21, %s33
    %s207 = ssub.s32 %s201, %s205
    %s208 = sor.u32 %s206, %s207
    %p209 = scmp.eq.s32.totalorder %s208, 0
    %s211 = sadd.s32 %s210, 1
    %s212 = scalar_select %p209, %s210, %s211
    %p215 = pneg %p209
    %p216 = scmp.eq.s32.totalorder %s14, 7
    %p217 = por %p215, %p216
    %p218 = scmp.ne.s32.totalorder %s210, %s213
    %p219 = scmp.eq.s32.totalorder %s14, 0
    %p220 = por %p218, %p219
    %p221 = scmp.ne.s32.totalorder %s210, %s213
    %p222 = scmp.eq.s32.totalorder %s19, 7
    %p223 = por %p221, %p222
    %p224 = scmp.ne.s32.totalorder %s213, %s214
    %p225 = scmp.eq.s32.totalorder %s19, 0
    %p226 = por %p224, %p225
    %p227 = scmp.ne.s32.totalorder %s213, %s214
    %p228 = scmp.eq.s32.totalorder %s20, 7
    %p229 = por %p227, %p228
    %p231 = scmp.ne.s32.totalorder %s214, %s230
    %p232 = scmp.eq.s32.totalorder %s20, 0
    %p233 = por %p231, %p232
    %s235 = sadd.s32 %s234, 1
    %p238 = scmp.eq.s32.totalorder %s14, 7
    %p239 = scmp.ne.s32.totalorder %s234, %s236
    %p240 = scmp.eq.s32.totalorder %s14, 0
    %p241 = por %p239, %p240
    %p242 = scmp.ne.s32.totalorder %s234, %s236
    %p243 = scmp.eq.s32.totalorder %s19, 7
    %p244 = por %p242, %p243
    %p245 = scmp.ne.s32.totalorder %s236, %s237
    %p246 = scmp.eq.s32.totalorder %s19, 0
    %p247 = por %p245, %p246
    %p248 = scmp.ne.s32.totalorder %s236, %s237
    %p249 = scmp.eq.s32.totalorder %s20, 7
    %p250 = por %p248, %p249
    %p252 = scmp.ne.s32.totalorder %s237, %s251
    %p253 = scmp.eq.s32.totalorder %s20, 0
    %p254 = por %p252, %p253
    %s256 = sadd.s32 %s255, 1
    %p259 = scmp.eq.s32.totalorder %s14, 7
    %p260 = scmp.ne.s32.totalorder %s255, %s257
    %p261 = scmp.eq.s32.totalorder %s14, 0
    %p262 = por %p260, %p261
    %p263 = scmp.ne.s32.totalorder %s255, %s257
    %p264 = scmp.eq.s32.totalorder %s19, 7
    %p265 = por %p263, %p264
    %p266 = scmp.ne.s32.totalorder %s257, %s258
    %p267 = scmp.eq.s32.totalorder %s19, 0
    %p268 = por %p266, %p267
    %p269 = scmp.ne.s32.totalorder %s257, %s258
    %p270 = scmp.eq.s32.totalorder %s20, 7
    %p271 = por %p269, %p270
    %p273 = scmp.ne.s32.totalorder %s258, %s272
    %p274 = scmp.eq.s32.totalorder %s20, 0
    %p275 = por %p273, %p274
    %s276 = ssub.s32 %s21, %s33
    %s277 = ssub.s32 %s22, %s29
    %s278 = sor.u32 %s276, %s277
    %p279 = scmp.eq.s32.totalorder %s278, 0
    %s281 = sadd.s32 %s280, 1
    %s282 = scalar_select %p279, %s280, %s281
    %p285 = pneg %p279
    %p286 = scmp.eq.s32.totalorder %s14, 7
    %p287 = por %p285, %p286
    %p288 = scmp.ne.s32.totalorder %s280, %s283
    %p289 = scmp.eq.s32.totalorder %s14, 0
    %p290 = por %p288, %p289
    %p291 = scmp.ne.s32.totalorder %s280, %s283
    %p292 = scmp.eq.s32.totalorder %s19, 7
    %p293 = por %p291, %p292
    %p294 = scmp.ne.s32.totalorder %s283, %s284
    %p295 = scmp.eq.s32.totalorder %s19, 0
    %p296 = por %p294, %p295
    %p297 = scmp.ne.s32.totalorder %s283, %s284
    %p298 = scmp.eq.s32.totalorder %s20, 7
    %p299 = por %p297, %p298
    %p301 = scmp.ne.s32.totalorder %s284, %s300
    %p302 = scmp.eq.s32.totalorder %s20, 0
    %p303 = por %p301, %p302
    %p304 = scmp.le.s32.totalorder 1, %s14
    %p305 = scmp.lt.s32.totalorder %s14, 9
    %p306 = pnand %p304, %p305
    %p307 = pneg %p306
    // Predicated region
    $region9: #{unet_up_block_forward.4} parent=5 // pred_check
      _
    $region10: #{unet_up_block_forward.4} parent=5 // pred_check_branch
      %309 = sbr.rel (%p306) target = $region12
    $region11: #{unet_up_block_forward.4} parent=5 // pred_region
      %s310 = ssub.s32 %s14, 1
      // Predicated region
      $region13: #{unet_up_block_forward.4} parent=11 // pred_check
        %p311 = pneg %p247
      $region14: #{unet_up_block_forward.4} parent=11 // pred_check_branch
        %313 = sbr.rel (%p311) target = $region16
      $region15: #{unet_up_block_forward.4} parent=11 // pred_region
        _
      $region16: #{unet_up_block_forward.4} parent=11 // pred_fallthru
        _
      // Predicated region
      $region17: #{unet_up_block_forward.4} parent=11 // pred_check
        %p314 = pneg %p268
      $region18: #{unet_up_block_forward.4} parent=11 // pred_check_branch
        %316 = sbr.rel (%p314) target = $region20
      $region19: #{unet_up_block_forward.4} parent=11 // pred_region
        _
      $region20: #{unet_up_block_forward.4} parent=11 // pred_fallthru
        _
    $region12: #{unet_up_block_forward.4} parent=5 // pred_fallthru
      _
    %p317 = scmp.lt.s32.totalorder %s14, 8
    // Predicated region
    $region21: #{unet_up_block_forward.4} parent=5 // pred_check
      %p318 = pneg %p317
    $region22: #{unet_up_block_forward.4} parent=5 // pred_check_branch
      %320 = sbr.rel (%p318) target = $region24
    $region23: #{unet_up_block_forward.4} parent=5 // pred_region
      // Predicated region
      $region25: #{unet_up_block_forward.4} parent=23 // pred_check
        %p321 = pneg %p48
      $region26: #{unet_up_block_forward.4} parent=23 // pred_check_branch
        %323 = sbr.rel (%p321) target = $region28
      $region27: #{unet_up_block_forward.4} parent=23 // pred_region
        %s324 = smul.u32 4, %s22
        %p325 = scmp.lt.s32.totalorder %s21, 1
        %s326 = scalar_select %p325, %s21, 1
        %p327 = scmp.lt.s32.totalorder %s324, 15
        %s328 = scalar_select %p327, %s324, 15
        %s329 = smul.addr %s328, 2
        %s330 = smul.addr %s326, 32
        %s331 = sadd.s32 %s329, %s330
        %s332 = smul.addr %s331, 8
        %s333 = scalar_lea.vmem %s0, %s332
        %s334 = smul.u32 4, %s22
      $region28: #{unet_up_block_forward.4} parent=23 // pred_fallthru
        _
      // Predicated region
      $region29: #{unet_up_block_forward.4} parent=23 // pred_check
        %p335 = pneg %p84
      $region30: #{unet_up_block_forward.4} parent=23 // pred_check_branch
        %337 = sbr.rel (%p335) target = $region32
      $region31: #{unet_up_block_forward.4} parent=23 // pred_region
        %s338 = smul.u32 %s22, 4
        %s339 = ssub.s32 %s338, 1
        %p340 = scmp.gt.s32.totalorder %s339, 0
        %s341 = scalar_select %p340, %s339, 0
        %p342 = scmp.lt.s32.totalorder %s21, 1
        %s343 = scalar_select %p342, %s21, 1
        %p344 = scmp.lt.s32.totalorder %s341, 15
        %s345 = scalar_select %p344, %s341, 15
        %s346 = smul.addr %s345, 2
        %s347 = smul.addr %s343, 32
        %s348 = sadd.s32 %s346, %s347
        %s349 = smul.addr %s348, 8
        %s350 = scalar_lea.vmem %s1, %s349
        %s351 = smul.u32 %s22, 4
        %s352 = ssub.s32 %s351, 1
        %p353 = scmp.gt.s32.totalorder %s352, 0
        %s354 = scalar_select %p353, %s352, 0
      $region32: #{unet_up_block_forward.4} parent=23 // pred_fallthru
        _
      // Predicated region
      $region33: #{unet_up_block_forward.4} parent=23 // pred_check
        %p355 = pneg %p120
      $region34: #{unet_up_block_forward.4} parent=23 // pred_check_branch
        %357 = sbr.rel (%p355) target = $region36
      $region35: #{unet_up_block_forward.4} parent=23 // pred_region
        %s358 = smul.u32 %s22, 4
        %s359 = sadd.s32 %s358, 4
        %p360 = scmp.lt.s32.totalorder %s359, 15
        %s361 = scalar_select %p360, %s359, 15
        %p362 = scmp.lt.s32.totalorder %s21, 1
        %s363 = scalar_select %p362, %s21, 1
        %p364 = scmp.lt.s32.totalorder %s361, 15
        %s365 = scalar_select %p364, %s361, 15
        %s366 = smul.addr %s365, 2
        %s367 = smul.addr %s363, 32
        %s368 = sadd.s32 %s366, %s367
        %s369 = smul.addr %s368, 8
        %s370 = scalar_lea.vmem %s2, %s369
        %s371 = smul.u32 %s22, 4
        %s372 = sadd.s32 %s371, 4
        %p373 = scmp.lt.s32.totalorder %s372, 15
        %s374 = scalar_select %p373, %s372, 15
      $region36: #{unet_up_block_forward.4} parent=23 // pred_fallthru
        _
      // Predicated region
      $region37: #{unet_up_block_forward.4} parent=23 // pred_check
        %p375 = pneg %p148
      $region38: #{unet_up_block_forward.4} parent=23 // pred_check_branch
        %377 = sbr.rel (%p375) target = $region40
      $region39: #{unet_up_block_forward.4} parent=23 // pred_region
        %s378 = smul.u32 4, %s22
        %p379 = scmp.lt.s32.totalorder %s21, 1
        %s380 = scalar_select %p379, %s21, 1
        %p381 = scmp.lt.s32.totalorder %s378, 15
        %s382 = scalar_select %p381, %s378, 15
        %s383 = smul.addr %s382, 2
        %s384 = smul.addr %s380, 32
        %s385 = sadd.s32 %s383, %s384
        %s386 = smul.addr %s385, 8
        %s387 = scalar_lea.vmem %s3, %s386
        %s388 = smul.u32 4, %s22
      $region40: #{unet_up_block_forward.4} parent=23 // pred_fallthru
        _
      // Predicated region
      $region41: #{unet_up_block_forward.4} parent=23 // pred_check
        %p389 = pneg %p184
      $region42: #{unet_up_block_forward.4} parent=23 // pred_check_branch
        %391 = sbr.rel (%p389) target = $region44
      $region43: #{unet_up_block_forward.4} parent=23 // pred_region
        %s392 = smul.u32 %s22, 4
        %s393 = ssub.s32 %s392, 1
        %p394 = scmp.gt.s32.totalorder %s393, 0
        %s395 = scalar_select %p394, %s393, 0
        %p396 = scmp.lt.s32.totalorder %s21, 1
        %s397 = scalar_select %p396, %s21, 1
        %p398 = scmp.lt.s32.totalorder %s395, 15
        %s399 = scalar_select %p398, %s395, 15
        %s400 = smul.addr %s399, 2
        %s401 = smul.addr %s397, 32
        %s402 = sadd.s32 %s400, %s401
        %s403 = smul.addr %s402, 8
        %s404 = scalar_lea.vmem %s4, %s403
        %s405 = smul.u32 %s22, 4
        %s406 = ssub.s32 %s405, 1
        %p407 = scmp.gt.s32.totalorder %s406, 0
        %s408 = scalar_select %p407, %s406, 0
      $region44: #{unet_up_block_forward.4} parent=23 // pred_fallthru
        _
      // Predicated region
      $region45: #{unet_up_block_forward.4} parent=23 // pred_check
        %p409 = pneg %p220
      $region46: #{unet_up_block_forward.4} parent=23 // pred_check_branch
        %411 = sbr.rel (%p409) target = $region48
      $region47: #{unet_up_block_forward.4} parent=23 // pred_region
        %s412 = smul.u32 %s22, 4
        %s413 = sadd.s32 %s412, 4
        %p414 = scmp.lt.s32.totalorder %s413, 15
        %s415 = scalar_select %p414, %s413, 15
        %p416 = scmp.lt.s32.totalorder %s21, 1
        %s417 = scalar_select %p416, %s21, 1
        %p418 = scmp.lt.s32.totalorder %s415, 15
        %s419 = scalar_select %p418, %s415, 15
        %s420 = smul.addr %s419, 2
        %s421 = smul.addr %s417, 32
        %s422 = sadd.s32 %s420, %s421
        %s423 = smul.addr %s422, 8
        %s424 = scalar_lea.vmem %s5, %s423
        %s425 = smul.u32 %s22, 4
        %s426 = sadd.s32 %s425, 4
        %p427 = scmp.lt.s32.totalorder %s426, 15
        %s428 = scalar_select %p427, %s426, 15
      $region48: #{unet_up_block_forward.4} parent=23 // pred_fallthru
        _
    $region24: #{unet_up_block_forward.4} parent=5 // pred_fallthru
      _
    %p429 = scmp.le.s32.totalorder 1, %s14
    %p430 = scmp.lt.s32.totalorder %s14, 9
    %p431 = pnand %p429, %p430
    %p432 = pneg %p431
    // Predicated region
    $region49: #{unet_up_block_forward.4} parent=5 // pred_check
      _
    $region50: #{unet_up_block_forward.4} parent=5 // pred_check_branch
      %434 = sbr.rel (%p431) target = $region52
    $region51: #{unet_up_block_forward.4} parent=5 // pred_region
      %s435 = ssub.s32 %s14, 1
      %s436 = smul.u32 4, %s24
      %p437 = scmp.lt.s32.totalorder %s23, 1
      %s438 = scalar_select %p437, %s23, 1
      %p439 = scmp.lt.s32.totalorder %s436, 15
      %s440 = scalar_select %p439, %s436, 15
      %s441 = smul.addr %s440, 2
      %s442 = smul.addr %s438, 32
      %s443 = sadd.s32 %s441, %s442
      %s444 = smul.addr %s443, 8
      %s445 = scalar_lea.vmem %s0, %s444
      %p446 = pneg %p54
      %p447 = pneg %p51
      %s448 = smul.u32 %s24, 4
      %s449 = ssub.s32 %s448, 1
      %p450 = scmp.gt.s32.totalorder %s449, 0
      %s451 = scalar_select %p450, %s449, 0
      %p452 = scmp.lt.s32.totalorder %s23, 1
      %s453 = scalar_select %p452, %s23, 1
      %p454 = scmp.lt.s32.totalorder %s451, 15
      %s455 = scalar_select %p454, %s451, 15
      %s456 = smul.addr %s455, 2
      %s457 = smul.addr %s453, 32
      %s458 = sadd.s32 %s456, %s457
      %s459 = smul.addr %s458, 8
      %s460 = scalar_lea.vmem %s1, %s459
      %p461 = pneg %p90
      %p462 = pneg %p87
      %s463 = smul.u32 %s24, 4
      %s464 = sadd.s32 %s463, 4
      %p465 = scmp.lt.s32.totalorder %s464, 15
      %s466 = scalar_select %p465, %s464, 15
      %p467 = scmp.lt.s32.totalorder %s23, 1
      %s468 = scalar_select %p467, %s23, 1
      %p469 = scmp.lt.s32.totalorder %s466, 15
      %s470 = scalar_select %p469, %s466, 15
      %s471 = smul.addr %s470, 2
      %s472 = smul.addr %s468, 32
      %s473 = sadd.s32 %s471, %s472
      %s474 = smul.addr %s473, 8
      %s475 = scalar_lea.vmem %s2, %s474
      %p476 = pneg %p126
      %p477 = pneg %p123
      %s478 = smul.u32 4, %s24
      %p479 = scmp.lt.s32.totalorder %s23, 1
      %s480 = scalar_select %p479, %s23, 1
      %p481 = scmp.lt.s32.totalorder %s478, 15
      %s482 = scalar_select %p481, %s478, 15
      %s483 = smul.addr %s482, 2
      %s484 = smul.addr %s480, 32
      %s485 = sadd.s32 %s483, %s484
      %s486 = smul.addr %s485, 8
      %s487 = scalar_lea.vmem %s3, %s486
      %p488 = pneg %p154
      %p489 = pneg %p151
      %s490 = smul.u32 %s24, 4
      %s491 = ssub.s32 %s490, 1
      %p492 = scmp.gt.s32.totalorder %s491, 0
      %s493 = scalar_select %p492, %s491, 0
      %p494 = scmp.lt.s32.totalorder %s23, 1
      %s495 = scalar_select %p494, %s23, 1
      %p496 = scmp.lt.s32.totalorder %s493, 15
      %s497 = scalar_select %p496, %s493, 15
      %s498 = smul.addr %s497, 2
      %s499 = smul.addr %s495, 32
      %s500 = sadd.s32 %s498, %s499
      %s501 = smul.addr %s500, 8
      %s502 = scalar_lea.vmem %s4, %s501
      %p503 = pneg %p190
      %p504 = pneg %p187
      %s505 = smul.u32 %s24, 4
      %s506 = sadd.s32 %s505, 4
      %p507 = scmp.lt.s32.totalorder %s506, 15
      %s508 = scalar_select %p507, %s506, 15
      %p509 = scmp.lt.s32.totalorder %s23, 1
      %s510 = scalar_select %p509, %s23, 1
      %p511 = scmp.lt.s32.totalorder %s508, 15
      %s512 = scalar_select %p511, %s508, 15
      %s513 = smul.addr %s512, 2
      %s514 = smul.addr %s510, 32
      %s515 = sadd.s32 %s513, %s514
      %s516 = smul.addr %s515, 8
      %s517 = scalar_lea.vmem %s5, %s516
      %p518 = pneg %p226
      %p519 = pneg %p223
      %p520 = pneg %p247
      %p521 = pneg %p244
      %p522 = pneg %p268
      %p523 = pneg %p265
      %p524 = pneg %p296
      %p525 = pneg %p293
      %s526 = smul.u32 4, %s24
      %p527 = scmp.lt.s32.totalorder %s23, 1
      %s528 = scalar_select %p527, %s23, 1
      %p529 = scmp.lt.s32.totalorder %s526, 15
      %s530 = scalar_select %p529, %s526, 15
      %s531 = smul.addr %s530, 2
      %s532 = smul.addr %s528, 32
      %s533 = sadd.s32 %s531, %s532
      %s534 = smul.addr %s533, 8
      %s535 = scalar_lea.vmem %s8, %s534
      %s536 = smul.u32 4, %s24
      %p537 = scmp.lt.s32.totalorder %s23, 1
      %s538 = scalar_select %p537, %s23, 1
      %p539 = scmp.lt.s32.totalorder %s536, 15
      %s540 = scalar_select %p539, %s536, 15
      %s541 = smul.addr %s540, 2
      %s542 = smul.addr %s538, 32
      %s543 = sadd.s32 %s541, %s542
      %s544 = smul.addr %s543, 8
      %s545 = scalar_lea.vmem %s0, %s544
      %s546 = smul.u32 4, %s24
      %s547 = smul.u32 %s24, 4
      %s548 = ssub.s32 %s547, 1
      %p549 = scmp.gt.s32.totalorder %s548, 0
      %s550 = scalar_select %p549, %s548, 0
      %p551 = scmp.lt.s32.totalorder %s23, 1
      %s552 = scalar_select %p551, %s23, 1
      %p553 = scmp.lt.s32.totalorder %s550, 15
      %s554 = scalar_select %p553, %s550, 15
      %s555 = smul.addr %s554, 2
      %s556 = smul.addr %s552, 32
      %s557 = sadd.s32 %s555, %s556
      %s558 = smul.addr %s557, 8
      %s559 = scalar_lea.vmem %s1, %s558
      %s560 = smul.u32 %s24, 4
      %s561 = ssub.s32 %s560, 1
      %p562 = scmp.gt.s32.totalorder %s561, 0
      %s563 = scalar_select %p562, %s561, 0
      %s564 = smul.u32 %s24, 4
      %s565 = sadd.s32 %s564, 4
      %p566 = scmp.lt.s32.totalorder %s565, 15
      %s567 = scalar_select %p566, %s565, 15
      %p568 = scmp.lt.s32.totalorder %s23, 1
      %s569 = scalar_select %p568, %s23, 1
      %p570 = scmp.lt.s32.totalorder %s567, 15
      %s571 = scalar_select %p570, %s567, 15
      %s572 = smul.addr %s571, 2
      %s573 = smul.addr %s569, 32
      %s574 = sadd.s32 %s572, %s573
      %s575 = smul.addr %s574, 8
      %s576 = scalar_lea.vmem %s2, %s575
      %s577 = smul.u32 %s24, 4
      %s578 = sadd.s32 %s577, 4
      %p579 = scmp.lt.s32.totalorder %s578, 15
      %s580 = scalar_select %p579, %s578, 15
      %s581 = smul.u32 4, %s24
      %p582 = scmp.lt.s32.totalorder %s23, 1
      %s583 = scalar_select %p582, %s23, 1
      %p584 = scmp.lt.s32.totalorder %s581, 15
      %s585 = scalar_select %p584, %s581, 15
      %s586 = smul.addr %s585, 2
      %s587 = smul.addr %s583, 32
      %s588 = sadd.s32 %s586, %s587
      %s589 = smul.addr %s588, 8
      %s590 = scalar_lea.vmem %s3, %s589
      %s591 = smul.u32 4, %s24
      %s592 = smul.u32 %s24, 4
      %s593 = ssub.s32 %s592, 1
      %p594 = scmp.gt.s32.totalorder %s593, 0
      %s595 = scalar_select %p594, %s593, 0
      %p596 = scmp.lt.s32.totalorder %s23, 1
      %s597 = scalar_select %p596, %s23, 1
      %p598 = scmp.lt.s32.totalorder %s595, 15
      %s599 = scalar_select %p598, %s595, 15
      %s600 = smul.addr %s599, 2
      %s601 = smul.addr %s597, 32
      %s602 = sadd.s32 %s600, %s601
      %s603 = smul.addr %s602, 8
      %s604 = scalar_lea.vmem %s4, %s603
      %s605 = smul.u32 %s24, 4
      %s606 = ssub.s32 %s605, 1
      %p607 = scmp.gt.s32.totalorder %s606, 0
      %s608 = scalar_select %p607, %s606, 0
      %s609 = smul.u32 %s24, 4
      %s610 = sadd.s32 %s609, 4
      %p611 = scmp.lt.s32.totalorder %s610, 15
      %s612 = scalar_select %p611, %s610, 15
      %p613 = scmp.lt.s32.totalorder %s23, 1
      %s614 = scalar_select %p613, %s23, 1
      %p615 = scmp.lt.s32.totalorder %s612, 15
      %s616 = scalar_select %p615, %s612, 15
      %s617 = smul.addr %s616, 2
      %s618 = smul.addr %s614, 32
      %s619 = sadd.s32 %s617, %s618
      %s620 = smul.addr %s619, 8
      %s621 = scalar_lea.vmem %s5, %s620
      %s622 = smul.u32 %s24, 4
      %s623 = sadd.s32 %s622, 4
      %p624 = scmp.lt.s32.totalorder %s623, 15
      %s625 = scalar_select %p624, %s623, 15
      %s626 = smul.u32 4, %s24
      %p627 = scmp.lt.s32.totalorder %s23, 1
      %s628 = scalar_select %p627, %s23, 1
      %p629 = scmp.lt.s32.totalorder %s626, 15
      %s630 = scalar_select %p629, %s626, 15
      %s631 = smul.addr %s630, 2
      %s632 = smul.addr %s628, 32
      %s633 = sadd.s32 %s631, %s632
      %s634 = smul.addr %s633, 8
      %s635 = scalar_lea.vmem %s8, %s634
      %s636 = smul.u32 4, %s24
      %p637 = scmp.eq.s32.totalorder %s24, 0
      %p638 = scmp.eq.s32.totalorder %s24, 3
      %v639 = vld [vmem:[%s545] sm:$0xff]
      %v640 = vld [vmem:[%s545 + $0x8] sm:$0xff]
      %v641 = vld [vmem:[%s545 + $0x10] sm:$0xff]
      %v642 = vld [vmem:[%s545 + $0x18] sm:$0xff]
      %v643 = vld [vmem:[%s545 + $0x20] sm:$0xff]
      %v644 = vld [vmem:[%s545 + $0x28] sm:$0xff]
      %v645 = vld [vmem:[%s545 + $0x30] sm:$0xff]
      %v646 = vld [vmem:[%s545 + $0x38] sm:$0xff]
      %v647 = vld [vmem:[%s559] sm:$0xff]
      %v648 = vld [vmem:[%s559 + $0x8] sm:$0xff]
      %v649 = vld [vmem:[%s576] sm:$0xff]
      %v650 = vld [vmem:[%s576 + $0x8] sm:$0xff]
      %s651 = scalar_select %p637, 1, 0
      %v652 = vstv %s651
      %vm653 = vcmp.eq.s32.totalorder %v652, 1
      %v654 = vsel %vm653, 0.0, %v647
      %v655 = vsel %vm653, 0.0, %v648
      %s656 = scalar_select %p638, 1, 0
      %v657 = vstv %s656
      %vm658 = vcmp.eq.s32.totalorder %v657, 1
      %v659 = vsel %vm658, 0.0, %v649
      %v660 = vsel %vm658, 0.0, %v650
      %vm673 = vcmask 1040384
      %v674 = vrot.slane %v654, 7
      %v675 = vrot.slane %v655, 7
      %v676 = vsel %vm673, %v674, %v675
      %v677 = vrot.slane %v639, 7
      %v678 = vrot.slane %v640, 7
      %v679 = vsel %vm673, %v677, %v678
      %v680 = vrot.slane %v641, 7
      %v681 = vrot.slane %v642, 7
      %v682 = vsel %vm673, %v680, %v681
      %v683 = vrot.slane %v643, 7
      %v684 = vrot.slane %v644, 7
      %v685 = vsel %vm673, %v683, %v684
      %v686 = vrot.slane %v645, 7
      %v687 = vrot.slane %v646, 7
      %v688 = vsel %vm673, %v686, %v687
      %v689 = vrot.slane %v659, 7
      %v690 = vrot.slane %v660, 7
      %v691 = vsel %vm673, %v689, %v690
      %v704 = vsel %vm673, 0.0, %v674
      %v705 = vsel %vm673, 0.0, %v677
      %v706 = vsel %vm673, 0.0, %v680
      %v707 = vsel %vm673, 0.0, %v683
      %v708 = vsel %vm673, 0.0, %v686
      %v709 = vsel %vm673, 0.0, %v689
      %v710 = vsel %vm673, %v675, 0.0
      %v711 = vsel %vm673, %v678, 0.0
      %v712 = vsel %vm673, %v681, 0.0
      %v713 = vsel %vm673, %v684, 0.0
      %v714 = vsel %vm673, %v687, 0.0
      %v715 = vsel %vm673, %v690, 0.0
      %v716 = vld [vmem:[%s6] sm:$0xf]
      %vm725 = vcmask 1046528
      %v726 = vrot.slane %v704, 1
      %v727 = vrot.slane %v676, 1
      %v728 = vsel %vm725, %v726, %v727
      %v729 = vrot.slane %v710, 1
      %v730 = vsel %vm725, %v727, %v729
      %v731 = vrot.slane %v705, 1
      %v732 = vrot.slane %v679, 1
      %v733 = vsel %vm725, %v731, %v732
      %v734 = vrot.slane %v711, 1
      %v735 = vsel %vm725, %v732, %v734
      %v736 = vrot.slane %v706, 1
      %v737 = vrot.slane %v682, 1
      %v738 = vsel %vm725, %v736, %v737
      %v739 = vrot.slane %v712, 1
      %v740 = vsel %vm725, %v737, %v739
      %v741 = vrot.slane %v707, 1
      %v742 = vrot.slane %v685, 1
      %v743 = vsel %vm725, %v741, %v742
      %v744 = vrot.slane %v713, 1
      %v745 = vsel %vm725, %v742, %v744
      %v746 = vld [vmem:[%s6 + $0x4] sm:$0xf]
      %vm747 = vcmask 31744
      %v748 = vsel %vm747, %v728, 0
      %v750 = vsel %vm747, %v730, 0
      %v752 = vsel %vm747, %v733, 0
      %v754 = vsel %vm747, %v735, 0
      %v756 = vsel %vm747, %v738, 0
      %v758 = vsel %vm747, %v740, 0
      %v760 = vsel %vm747, %v743, 0
      %v762 = vsel %vm747, %v745, 0
      %vm764 = vcmask 1043456
      %v766 = vsel %vm764, %v746, 0
      %768 = vmatpush.msra.mxu0 0.0
      %769 = vmatpush.msra.mxu0 0.0
      %770 = vmatpush.msra.mxu0 0.0
      %771 = vmatpush.msra.mxu0 0.0
      %772 = vmatpush.msra.mxu0 0.0
      %773 = vmatpush.msra.mxu0 0.0
      %774 = vmatpush.msra.mxu0 0.0
      %775 = vmatpush.msra.mxu0 0.0
      %776 = vmatpush.msra.mxu0 0.0
      %777 = vmatpush.msra.mxu0 0.0
      %778 = vmatpush.msra.mxu0 0.0
      %779 = vmatpush.msra.mxu0 0.0
      %780 = vmatpush.msra.mxu0 0.0
      %781 = vmatpush.msra.mxu0 0.0
      %782 = vmatpush.msra.mxu0 0.0
      %783 = vmatpush.msra.mxu0 %v766
      %784 = vmatmul.f32.gmra.mxu0 %v748
      %v785 = vpop.f32.mrf.mxu0
      %v786 = vadd.f32 0.0, %v785
      %787 = vmatmul.f32.gmra.mxu0 %v750
      %v788 = vpop.f32.mrf.mxu0
      %v789 = vadd.f32 0.0, %v788
      %790 = vmatmul.f32.gmra.mxu0 %v752
      %v791 = vpop.f32.mrf.mxu0
      %v792 = vadd.f32 0.0, %v791
      %793 = vmatmul.f32.gmra.mxu0 %v754
      %v794 = vpop.f32.mrf.mxu0
      %v795 = vadd.f32 0.0, %v794
      %796 = vmatmul.f32.gmra.mxu0 %v756
      %v797 = vpop.f32.mrf.mxu0
      %v798 = vadd.f32 0.0, %v797
      %799 = vmatmul.f32.gmra.mxu0 %v758
      %v800 = vpop.f32.mrf.mxu0
      %v801 = vadd.f32 0.0, %v800
      %802 = vmatmul.f32.gmra.mxu0 %v760
      %v803 = vpop.f32.mrf.mxu0
      %v804 = vadd.f32 0.0, %v803
      %805 = vmatmul.f32.gmra.mxu0 %v762
      %v806 = vpop.f32.mrf.mxu0
      %v807 = vadd.f32 0.0, %v806
      %808 = vdwg.mxu0
      %v809 = vsel %vm747, %v704, 0
      %v811 = vsel %vm747, %v676, 0
      %v813 = vsel %vm747, %v705, 0
      %v815 = vsel %vm747, %v679, 0
      %v817 = vsel %vm747, %v706, 0
      %v819 = vsel %vm747, %v682, 0
      %v821 = vsel %vm747, %v707, 0
      %v823 = vsel %vm747, %v685, 0
      %v826 = vsel %vm764, %v716, 0
      %828 = vmatpush.msra.mxu0 0.0
      %829 = vmatpush.msra.mxu0 0.0
      %830 = vmatpush.msra.mxu0 0.0
      %831 = vmatpush.msra.mxu0 0.0
      %832 = vmatpush.msra.mxu0 0.0
      %833 = vmatpush.msra.mxu0 0.0
      %834 = vmatpush.msra.mxu0 0.0
      %835 = vmatpush.msra.mxu0 0.0
      %836 = vmatpush.msra.mxu0 0.0
      %837 = vmatpush.msra.mxu0 0.0
      %838 = vmatpush.msra.mxu0 0.0
      %839 = vmatpush.msra.mxu0 0.0
      %840 = vmatpush.msra.mxu0 0.0
      %841 = vmatpush.msra.mxu0 0.0
      %842 = vmatpush.msra.mxu0 0.0
      %843 = vmatpush.msra.mxu0 %v826
      %844 = vmatmul.f32.gmra.mxu0 %v809
      %v845 = vpop.f32.mrf.mxu0
      %v846 = vadd.f32 %v786, %v845
      %847 = vmatmul.f32.gmra.mxu0 %v811
      %v848 = vpop.f32.mrf.mxu0
      %v849 = vadd.f32 %v789, %v848
      %850 = vmatmul.f32.gmra.mxu0 %v813
      %v851 = vpop.f32.mrf.mxu0
      %v852 = vadd.f32 %v792, %v851
      %853 = vmatmul.f32.gmra.mxu0 %v815
      %v854 = vpop.f32.mrf.mxu0
      %v855 = vadd.f32 %v795, %v854
      %856 = vmatmul.f32.gmra.mxu0 %v817
      %v857 = vpop.f32.mrf.mxu0
      %v858 = vadd.f32 %v798, %v857
      %859 = vmatmul.f32.gmra.mxu0 %v819
      %v860 = vpop.f32.mrf.mxu0
      %v861 = vadd.f32 %v801, %v860
      %862 = vmatmul.f32.gmra.mxu0 %v821
      %v863 = vpop.f32.mrf.mxu0
      %v864 = vadd.f32 %v804, %v863
      %865 = vmatmul.f32.gmra.mxu0 %v823
      %v866 = vpop.f32.mrf.mxu0
      %v867 = vadd.f32 %v807, %v866
      %868 = vdwg.mxu0
      %vm869 = vcmask 1045504
      %v870 = vrot.slane %v704, 2
      %v871 = vrot.slane %v676, 2
      %v872 = vsel %vm869, %v870, %v871
      %v873 = vrot.slane %v710, 2
      %v874 = vsel %vm869, %v871, %v873
      %v875 = vrot.slane %v705, 2
      %v876 = vrot.slane %v679, 2
      %v877 = vsel %vm869, %v875, %v876
      %v878 = vrot.slane %v711, 2
      %v879 = vsel %vm869, %v876, %v878
      %v880 = vrot.slane %v706, 2
      %v881 = vrot.slane %v682, 2
      %v882 = vsel %vm869, %v880, %v881
      %v883 = vrot.slane %v712, 2
      %v884 = vsel %vm869, %v881, %v883
      %v885 = vrot.slane %v707, 2
      %v886 = vrot.slane %v685, 2
      %v887 = vsel %vm869, %v885, %v886
      %v888 = vrot.slane %v713, 2
      %v889 = vsel %vm869, %v886, %v888
      %v890 = vld [vmem:[%s6 + $0x8] sm:$0xf]
      %v891 = vsel %vm747, %v872, 0
      %v893 = vsel %vm747, %v874, 0
      %v895 = vsel %vm747, %v877, 0
      %v897 = vsel %vm747, %v879, 0
      %v899 = vsel %vm747, %v882, 0
      %v901 = vsel %vm747, %v884, 0
      %v903 = vsel %vm747, %v887, 0
      %v905 = vsel %vm747, %v889, 0
      %v908 = vsel %vm764, %v890, 0
      %910 = vmatpush.msra.mxu0 0.0
      %911 = vmatpush.msra.mxu0 0.0
      %912 = vmatpush.msra.mxu0 0.0
      %913 = vmatpush.msra.mxu0 0.0
      %914 = vmatpush.msra.mxu0 0.0
      %915 = vmatpush.msra.mxu0 0.0
      %916 = vmatpush.msra.mxu0 0.0
      %917 = vmatpush.msra.mxu0 0.0
      %918 = vmatpush.msra.mxu0 0.0
      %919 = vmatpush.msra.mxu0 0.0
      %920 = vmatpush.msra.mxu0 0.0
      %921 = vmatpush.msra.mxu0 0.0
      %922 = vmatpush.msra.mxu0 0.0
      %923 = vmatpush.msra.mxu0 0.0
      %924 = vmatpush.msra.mxu0 0.0
      %925 = vmatpush.msra.mxu0 %v908
      %926 = vmatmul.f32.gmra.mxu0 %v891
      %v927 = vpop.f32.mrf.mxu0
      %v928 = vadd.f32 0.0, %v927
      %929 = vmatmul.f32.gmra.mxu0 %v893
      %v930 = vpop.f32.mrf.mxu0
      %v931 = vadd.f32 0.0, %v930
      %932 = vmatmul.f32.gmra.mxu0 %v895
      %v933 = vpop.f32.mrf.mxu0
      %v934 = vadd.f32 0.0, %v933
      %935 = vmatmul.f32.gmra.mxu0 %v897
      %v936 = vpop.f32.mrf.mxu0
      %v937 = vadd.f32 0.0, %v936
      %938 = vmatmul.f32.gmra.mxu0 %v899
      %v939 = vpop.f32.mrf.mxu0
      %v940 = vadd.f32 0.0, %v939
      %941 = vmatmul.f32.gmra.mxu0 %v901
      %v942 = vpop.f32.mrf.mxu0
      %v943 = vadd.f32 0.0, %v942
      %944 = vmatmul.f32.gmra.mxu0 %v903
      %v945 = vpop.f32.mrf.mxu0
      %v946 = vadd.f32 0.0, %v945
      %947 = vmatmul.f32.gmra.mxu0 %v905
      %v948 = vpop.f32.mrf.mxu0
      %v949 = vadd.f32 0.0, %v948
      %950 = vdwg.mxu0
      %v951 = vadd.f32 %v846, %v928
      %v952 = vadd.f32 %v849, %v931
      %v953 = vadd.f32 %v852, %v934
      %v954 = vadd.f32 %v855, %v937
      %v955 = vadd.f32 %v858, %v940
      %v956 = vadd.f32 %v861, %v943
      %v957 = vadd.f32 %v864, %v946
      %v958 = vadd.f32 %v867, %v949
      %v959 = vld [vmem:[%s6 + $0xc] sm:$0xf]
      %v961 = vsel %vm747, %v708, 0
      %v963 = vsel %vm747, %v688, 0
      %v966 = vsel %vm764, %v959, 0
      %968 = vmatpush.msra.mxu0 0.0
      %969 = vmatpush.msra.mxu0 0.0
      %970 = vmatpush.msra.mxu0 0.0
      %971 = vmatpush.msra.mxu0 0.0
      %972 = vmatpush.msra.mxu0 0.0
      %973 = vmatpush.msra.mxu0 0.0
      %974 = vmatpush.msra.mxu0 0.0
      %975 = vmatpush.msra.mxu0 0.0
      %976 = vmatpush.msra.mxu0 0.0
      %977 = vmatpush.msra.mxu0 0.0
      %978 = vmatpush.msra.mxu0 0.0
      %979 = vmatpush.msra.mxu0 0.0
      %980 = vmatpush.msra.mxu0 0.0
      %981 = vmatpush.msra.mxu0 0.0
      %982 = vmatpush.msra.mxu0 0.0
      %983 = vmatpush.msra.mxu0 %v966
      %984 = vmatmul.f32.gmra.mxu0 %v813
      %v985 = vpop.f32.mrf.mxu0
      %v986 = vadd.f32 0.0, %v985
      %987 = vmatmul.f32.gmra.mxu0 %v815
      %v988 = vpop.f32.mrf.mxu0
      %v989 = vadd.f32 0.0, %v988
      %990 = vmatmul.f32.gmra.mxu0 %v817
      %v991 = vpop.f32.mrf.mxu0
      %v992 = vadd.f32 0.0, %v991
      %993 = vmatmul.f32.gmra.mxu0 %v819
      %v994 = vpop.f32.mrf.mxu0
      %v995 = vadd.f32 0.0, %v994
      %996 = vmatmul.f32.gmra.mxu0 %v821
      %v997 = vpop.f32.mrf.mxu0
      %v998 = vadd.f32 0.0, %v997
      %999 = vmatmul.f32.gmra.mxu0 %v823
      %v1000 = vpop.f32.mrf.mxu0
      %v1001 = vadd.f32 0.0, %v1000
      %1002 = vmatmul.f32.gmra.mxu0 %v961
      %v1003 = vpop.f32.mrf.mxu0
      %v1004 = vadd.f32 0.0, %v1003
      %1005 = vmatmul.f32.gmra.mxu0 %v963
      %v1006 = vpop.f32.mrf.mxu0
      %v1007 = vadd.f32 0.0, %v1006
      %1008 = vdwg.mxu0
      %v1009 = vadd.f32 %v951, %v986
      %v1010 = vadd.f32 %v952, %v989
      %v1011 = vadd.f32 %v953, %v992
      %v1012 = vadd.f32 %v954, %v995
      %v1013 = vadd.f32 %v955, %v998
      %v1014 = vadd.f32 %v956, %v1001
      %v1015 = vadd.f32 %v957, %v1004
      %v1016 = vadd.f32 %v958, %v1007
      %v1018 = vrot.slane %v708, 1
      %v1019 = vrot.slane %v688, 1
      %v1020 = vsel %vm725, %v1018, %v1019
      %v1021 = vrot.slane %v714, 1
      %v1022 = vsel %vm725, %v1019, %v1021
      %v1023 = vld [vmem:[%s6 + $0x10] sm:$0xf]
      %v1024 = vsel %vm747, %v1020, 0
      %v1026 = vsel %vm747, %v1022, 0
      %v1029 = vsel %vm764, %v1023, 0
      %1031 = vmatpush.msra.mxu0 0.0
      %1032 = vmatpush.msra.mxu0 0.0
      %1033 = vmatpush.msra.mxu0 0.0
      %1034 = vmatpush.msra.mxu0 0.0
      %1035 = vmatpush.msra.mxu0 0.0
      %1036 = vmatpush.msra.mxu0 0.0
      %1037 = vmatpush.msra.mxu0 0.0
      %1038 = vmatpush.msra.mxu0 0.0
      %1039 = vmatpush.msra.mxu0 0.0
      %1040 = vmatpush.msra.mxu0 0.0
      %1041 = vmatpush.msra.mxu0 0.0
      %1042 = vmatpush.msra.mxu0 0.0
      %1043 = vmatpush.msra.mxu0 0.0
      %1044 = vmatpush.msra.mxu0 0.0
      %1045 = vmatpush.msra.mxu0 0.0
      %1046 = vmatpush.msra.mxu0 %v1029
      %1047 = vmatmul.f32.gmra.mxu0 %v752
      %v1048 = vpop.f32.mrf.mxu0
      %v1049 = vadd.f32 0.0, %v1048
      %1050 = vmatmul.f32.gmra.mxu0 %v754
      %v1051 = vpop.f32.mrf.mxu0
      %v1052 = vadd.f32 0.0, %v1051
      %1053 = vmatmul.f32.gmra.mxu0 %v756
      %v1054 = vpop.f32.mrf.mxu0
      %v1055 = vadd.f32 0.0, %v1054
      %1056 = vmatmul.f32.gmra.mxu0 %v758
      %v1057 = vpop.f32.mrf.mxu0
      %v1058 = vadd.f32 0.0, %v1057
      %1059 = vmatmul.f32.gmra.mxu0 %v760
      %v1060 = vpop.f32.mrf.mxu0
      %v1061 = vadd.f32 0.0, %v1060
      %1062 = vmatmul.f32.gmra.mxu0 %v762
      %v1063 = vpop.f32.mrf.mxu0
      %v1064 = vadd.f32 0.0, %v1063
      %1065 = vmatmul.f32.gmra.mxu0 %v1024
      %v1066 = vpop.f32.mrf.mxu0
      %v1067 = vadd.f32 0.0, %v1066
      %1068 = vmatmul.f32.gmra.mxu0 %v1026
      %v1069 = vpop.f32.mrf.mxu0
      %v1070 = vadd.f32 0.0, %v1069
      %1071 = vdwg.mxu0
      %v1072 = vadd.f32 %v1009, %v1049
      %v1073 = vadd.f32 %v1010, %v1052
      %v1074 = vadd.f32 %v1011, %v1055
      %v1075 = vadd.f32 %v1012, %v1058
      %v1076 = vadd.f32 %v1013, %v1061
      %v1077 = vadd.f32 %v1014, %v1064
      %v1078 = vadd.f32 %v1015, %v1067
      %v1079 = vadd.f32 %v1016, %v1070
      %v1080 = vrot.slane %v708, 2
      %v1081 = vrot.slane %v688, 2
      %v1082 = vsel %vm869, %v1080, %v1081
      %v1083 = vrot.slane %v714, 2
      %v1084 = vsel %vm869, %v1081, %v1083
      %v1085 = vld [vmem:[%s6 + $0x14] sm:$0xf]
      %v1086 = vsel %vm747, %v1082, 0
      %v1088 = vsel %vm747, %v1084, 0
      %v1091 = vsel %vm764, %v1085, 0
      %1093 = vmatpush.msra.mxu0 0.0
      %1094 = vmatpush.msra.mxu0 0.0
      %1095 = vmatpush.msra.mxu0 0.0
      %1096 = vmatpush.msra.mxu0 0.0
      %1097 = vmatpush.msra.mxu0 0.0
      %1098 = vmatpush.msra.mxu0 0.0
      %1099 = vmatpush.msra.mxu0 0.0
      %1100 = vmatpush.msra.mxu0 0.0
      %1101 = vmatpush.msra.mxu0 0.0
      %1102 = vmatpush.msra.mxu0 0.0
      %1103 = vmatpush.msra.mxu0 0.0
      %1104 = vmatpush.msra.mxu0 0.0
      %1105 = vmatpush.msra.mxu0 0.0
      %1106 = vmatpush.msra.mxu0 0.0
      %1107 = vmatpush.msra.mxu0 0.0
      %1108 = vmatpush.msra.mxu0 %v1091
      %1109 = vmatmul.f32.gmra.mxu0 %v895
      %v1110 = vpop.f32.mrf.mxu0
      %v1111 = vadd.f32 0.0, %v1110
      %1112 = vmatmul.f32.gmra.mxu0 %v897
      %v1113 = vpop.f32.mrf.mxu0
      %v1114 = vadd.f32 0.0, %v1113
      %1115 = vmatmul.f32.gmra.mxu0 %v899
      %v1116 = vpop.f32.mrf.mxu0
      %v1117 = vadd.f32 0.0, %v1116
      %1118 = vmatmul.f32.gmra.mxu0 %v901
      %v1119 = vpop.f32.mrf.mxu0
      %v1120 = vadd.f32 0.0, %v1119
      %1121 = vmatmul.f32.gmra.mxu0 %v903
      %v1122 = vpop.f32.mrf.mxu0
      %v1123 = vadd.f32 0.0, %v1122
      %1124 = vmatmul.f32.gmra.mxu0 %v905
      %v1125 = vpop.f32.mrf.mxu0
      %v1126 = vadd.f32 0.0, %v1125
      %1127 = vmatmul.f32.gmra.mxu0 %v1086
      %v1128 = vpop.f32.mrf.mxu0
      %v1129 = vadd.f32 0.0, %v1128
      %1130 = vmatmul.f32.gmra.mxu0 %v1088
      %v1131 = vpop.f32.mrf.mxu0
      %v1132 = vadd.f32 0.0, %v1131
      %1133 = vdwg.mxu0
      %v1134 = vadd.f32 %v1072, %v1111
      %v1135 = vadd.f32 %v1073, %v1114
      %v1136 = vadd.f32 %v1074, %v1117
      %v1137 = vadd.f32 %v1075, %v1120
      %v1138 = vadd.f32 %v1076, %v1123
      %v1139 = vadd.f32 %v1077, %v1126
      %v1140 = vadd.f32 %v1078, %v1129
      %v1141 = vadd.f32 %v1079, %v1132
      %v1142 = vld [vmem:[%s6 + $0x18] sm:$0xf]
      %v1144 = vsel %vm747, %v709, 0
      %v1146 = vsel %vm747, %v691, 0
      %v1149 = vsel %vm764, %v1142, 0
      %1151 = vmatpush.msra.mxu0 0.0
      %1152 = vmatpush.msra.mxu0 0.0
      %1153 = vmatpush.msra.mxu0 0.0
      %1154 = vmatpush.msra.mxu0 0.0
      %1155 = vmatpush.msra.mxu0 0.0
      %1156 = vmatpush.msra.mxu0 0.0
      %1157 = vmatpush.msra.mxu0 0.0
      %1158 = vmatpush.msra.mxu0 0.0
      %1159 = vmatpush.msra.mxu0 0.0
      %1160 = vmatpush.msra.mxu0 0.0
      %1161 = vmatpush.msra.mxu0 0.0
      %1162 = vmatpush.msra.mxu0 0.0
      %1163 = vmatpush.msra.mxu0 0.0
      %1164 = vmatpush.msra.mxu0 0.0
      %1165 = vmatpush.msra.mxu0 0.0
      %1166 = vmatpush.msra.mxu0 %v1149
      %1167 = vmatmul.f32.gmra.mxu0 %v817
      %v1168 = vpop.f32.mrf.mxu0
      %v1169 = vadd.f32 0.0, %v1168
      %1170 = vmatmul.f32.gmra.mxu0 %v819
      %v1171 = vpop.f32.mrf.mxu0
      %v1172 = vadd.f32 0.0, %v1171
      %1173 = vmatmul.f32.gmra.mxu0 %v821
      %v1174 = vpop.f32.mrf.mxu0
      %v1175 = vadd.f32 0.0, %v1174
      %1176 = vmatmul.f32.gmra.mxu0 %v823
      %v1177 = vpop.f32.mrf.mxu0
      %v1178 = vadd.f32 0.0, %v1177
      %1179 = vmatmul.f32.gmra.mxu0 %v961
      %v1180 = vpop.f32.mrf.mxu0
      %v1181 = vadd.f32 0.0, %v1180
      %1182 = vmatmul.f32.gmra.mxu0 %v963
      %v1183 = vpop.f32.mrf.mxu0
      %v1184 = vadd.f32 0.0, %v1183
      %1185 = vmatmul.f32.gmra.mxu0 %v1144
      %v1186 = vpop.f32.mrf.mxu0
      %v1187 = vadd.f32 0.0, %v1186
      %1188 = vmatmul.f32.gmra.mxu0 %v1146
      %v1189 = vpop.f32.mrf.mxu0
      %v1190 = vadd.f32 0.0, %v1189
      %1191 = vdwg.mxu0
      %v1192 = vadd.f32 %v1134, %v1169
      %v1193 = vadd.f32 %v1135, %v1172
      %v1194 = vadd.f32 %v1136, %v1175
      %v1195 = vadd.f32 %v1137, %v1178
      %v1196 = vadd.f32 %v1138, %v1181
      %v1197 = vadd.f32 %v1139, %v1184
      %v1198 = vadd.f32 %v1140, %v1187
      %v1199 = vadd.f32 %v1141, %v1190
      %v1201 = vrot.slane %v709, 1
      %v1202 = vrot.slane %v691, 1
      %v1203 = vsel %vm725, %v1201, %v1202
      %v1204 = vrot.slane %v715, 1
      %v1205 = vsel %vm725, %v1202, %v1204
      %v1206 = vld [vmem:[%s6 + $0x1c] sm:$0xf]
      %v1207 = vsel %vm747, %v1203, 0
      %v1209 = vsel %vm747, %v1205, 0
      %v1212 = vsel %vm764, %v1206, 0
      %1214 = vmatpush.msra.mxu0 0.0
      %1215 = vmatpush.msra.mxu0 0.0
      %1216 = vmatpush.msra.mxu0 0.0
      %1217 = vmatpush.msra.mxu0 0.0
      %1218 = vmatpush.msra.mxu0 0.0
      %1219 = vmatpush.msra.mxu0 0.0
      %1220 = vmatpush.msra.mxu0 0.0
      %1221 = vmatpush.msra.mxu0 0.0
      %1222 = vmatpush.msra.mxu0 0.0
      %1223 = vmatpush.msra.mxu0 0.0
      %1224 = vmatpush.msra.mxu0 0.0
      %1225 = vmatpush.msra.mxu0 0.0
      %1226 = vmatpush.msra.mxu0 0.0
      %1227 = vmatpush.msra.mxu0 0.0
      %1228 = vmatpush.msra.mxu0 0.0
      %1229 = vmatpush.msra.mxu0 %v1212
      %1230 = vmatmul.f32.gmra.mxu0 %v756
      %v1231 = vpop.f32.mrf.mxu0
      %v1232 = vadd.f32 0.0, %v1231
      %1233 = vmatmul.f32.gmra.mxu0 %v758
      %v1234 = vpop.f32.mrf.mxu0
      %v1235 = vadd.f32 0.0, %v1234
      %1236 = vmatmul.f32.gmra.mxu0 %v760
      %v1237 = vpop.f32.mrf.mxu0
      %v1238 = vadd.f32 0.0, %v1237
      %1239 = vmatmul.f32.gmra.mxu0 %v762
      %v1240 = vpop.f32.mrf.mxu0
      %v1241 = vadd.f32 0.0, %v1240
      %1242 = vmatmul.f32.gmra.mxu0 %v1024
      %v1243 = vpop.f32.mrf.mxu0
      %v1244 = vadd.f32 0.0, %v1243
      %1245 = vmatmul.f32.gmra.mxu0 %v1026
      %v1246 = vpop.f32.mrf.mxu0
      %v1247 = vadd.f32 0.0, %v1246
      %1248 = vmatmul.f32.gmra.mxu0 %v1207
      %v1249 = vpop.f32.mrf.mxu0
      %v1250 = vadd.f32 0.0, %v1249
      %1251 = vmatmul.f32.gmra.mxu0 %v1209
      %v1252 = vpop.f32.mrf.mxu0
      %v1253 = vadd.f32 0.0, %v1252
      %1254 = vdwg.mxu0
      %v1255 = vadd.f32 %v1192, %v1232
      %v1256 = vadd.f32 %v1193, %v1235
      %v1257 = vadd.f32 %v1194, %v1238
      %v1258 = vadd.f32 %v1195, %v1241
      %v1259 = vadd.f32 %v1196, %v1244
      %v1260 = vadd.f32 %v1197, %v1247
      %v1261 = vadd.f32 %v1198, %v1250
      %v1262 = vadd.f32 %v1199, %v1253
      %v1263 = vrot.slane %v709, 2
      %v1264 = vrot.slane %v691, 2
      %v1265 = vsel %vm869, %v1263, %v1264
      %v1266 = vrot.slane %v715, 2
      %v1267 = vsel %vm869, %v1264, %v1266
      %v1268 = vld [vmem:[%s6 + $0x20] sm:$0xf]
      %v1269 = vsel %vm747, %v1265, 0
      %v1271 = vsel %vm747, %v1267, 0
      %v1274 = vsel %vm764, %v1268, 0
      %1276 = vmatpush.msra.mxu0 0.0
      %1277 = vmatpush.msra.mxu0 0.0
      %1278 = vmatpush.msra.mxu0 0.0
      %1279 = vmatpush.msra.mxu0 0.0
      %1280 = vmatpush.msra.mxu0 0.0
      %1281 = vmatpush.msra.mxu0 0.0
      %1282 = vmatpush.msra.mxu0 0.0
      %1283 = vmatpush.msra.mxu0 0.0
      %1284 = vmatpush.msra.mxu0 0.0
      %1285 = vmatpush.msra.mxu0 0.0
      %1286 = vmatpush.msra.mxu0 0.0
      %1287 = vmatpush.msra.mxu0 0.0
      %1288 = vmatpush.msra.mxu0 0.0
      %1289 = vmatpush.msra.mxu0 0.0
      %1290 = vmatpush.msra.mxu0 0.0
      %1291 = vmatpush.msra.mxu0 %v1274
      %1292 = vmatmul.f32.gmra.mxu0 %v899
      %v1293 = vpop.f32.mrf.mxu0
      %v1294 = vadd.f32 0.0, %v1293
      %1295 = vmatmul.f32.gmra.mxu0 %v901
      %v1296 = vpop.f32.mrf.mxu0
      %v1297 = vadd.f32 0.0, %v1296
      %1298 = vmatmul.f32.gmra.mxu0 %v903
      %v1299 = vpop.f32.mrf.mxu0
      %v1300 = vadd.f32 0.0, %v1299
      %1301 = vmatmul.f32.gmra.mxu0 %v905
      %v1302 = vpop.f32.mrf.mxu0
      %v1303 = vadd.f32 0.0, %v1302
      %1304 = vmatmul.f32.gmra.mxu0 %v1086
      %v1305 = vpop.f32.mrf.mxu0
      %v1306 = vadd.f32 0.0, %v1305
      %1307 = vmatmul.f32.gmra.mxu0 %v1088
      %v1308 = vpop.f32.mrf.mxu0
      %v1309 = vadd.f32 0.0, %v1308
      %1310 = vmatmul.f32.gmra.mxu0 %v1269
      %v1311 = vpop.f32.mrf.mxu0
      %v1312 = vadd.f32 0.0, %v1311
      %1313 = vmatmul.f32.gmra.mxu0 %v1271
      %v1314 = vpop.f32.mrf.mxu0
      %v1315 = vadd.f32 0.0, %v1314
      %1316 = vdwg.mxu0
      %v1317 = vadd.f32 %v1255, %v1294
      %v1318 = vadd.f32 %v1256, %v1297
      %v1319 = vadd.f32 %v1257, %v1300
      %v1320 = vadd.f32 %v1258, %v1303
      %v1321 = vadd.f32 %v1259, %v1306
      %v1322 = vadd.f32 %v1260, %v1309
      %v1323 = vadd.f32 %v1261, %v1312
      %v1324 = vadd.f32 %v1262, %v1315
      %v1325 = vld [vmem:[%s590] sm:$0xff]
      %v1326 = vld [vmem:[%s590 + $0x8] sm:$0xff]
      %v1327 = vld [vmem:[%s590 + $0x10] sm:$0xff]
      %v1328 = vld [vmem:[%s590 + $0x18] sm:$0xff]
      %v1329 = vld [vmem:[%s590 + $0x20] sm:$0xff]
      %v1330 = vld [vmem:[%s590 + $0x28] sm:$0xff]
      %v1331 = vld [vmem:[%s590 + $0x30] sm:$0xff]
      %v1332 = vld [vmem:[%s590 + $0x38] sm:$0xff]
      %v1333 = vld [vmem:[%s604] sm:$0xff]
      %v1334 = vld [vmem:[%s604 + $0x8] sm:$0xff]
      %v1335 = vld [vmem:[%s621] sm:$0xff]
      %v1336 = vld [vmem:[%s621 + $0x8] sm:$0xff]
      %v1337 = vsel %vm653, 0.0, %v1333
      %v1338 = vsel %vm653, 0.0, %v1334
      %v1339 = vsel %vm658, 0.0, %v1335
      %v1340 = vsel %vm658, 0.0, %v1336
      %v1353 = vrot.slane %v1337, 7
      %v1354 = vrot.slane %v1338, 7
      %v1355 = vsel %vm673, %v1353, %v1354
      %v1356 = vrot.slane %v1325, 7
      %v1357 = vrot.slane %v1326, 7
      %v1358 = vsel %vm673, %v1356, %v1357
      %v1359 = vrot.slane %v1327, 7
      %v1360 = vrot.slane %v1328, 7
      %v1361 = vsel %vm673, %v1359, %v1360
      %v1362 = vrot.slane %v1329, 7
      %v1363 = vrot.slane %v1330, 7
      %v1364 = vsel %vm673, %v1362, %v1363
      %v1365 = vrot.slane %v1331, 7
      %v1366 = vrot.slane %v1332, 7
      %v1367 = vsel %vm673, %v1365, %v1366
      %v1368 = vrot.slane %v1339, 7
      %v1369 = vrot.slane %v1340, 7
      %v1370 = vsel %vm673, %v1368, %v1369
      %v1383 = vsel %vm673, 0.0, %v1353
      %v1384 = vsel %vm673, 0.0, %v1356
      %v1385 = vsel %vm673, 0.0, %v1359
      %v1386 = vsel %vm673, 0.0, %v1362
      %v1387 = vsel %vm673, 0.0, %v1365
      %v1388 = vsel %vm673, 0.0, %v1368
      %v1389 = vsel %vm673, %v1354, 0.0
      %v1390 = vsel %vm673, %v1357, 0.0
      %v1391 = vsel %vm673, %v1360, 0.0
      %v1392 = vsel %vm673, %v1363, 0.0
      %v1393 = vsel %vm673, %v1366, 0.0
      %v1394 = vsel %vm673, %v1369, 0.0
      %v1395 = vld [vmem:[%s6 + $0x24] sm:$0xf]
      %v1397 = vsel %vm747, %v1383, 0
      %v1399 = vsel %vm747, %v1355, 0
      %v1402 = vsel %vm747, %v1384, 0
      %v1404 = vsel %vm747, %v1358, 0
      %v1407 = vsel %vm747, %v1385, 0
      %v1409 = vsel %vm747, %v1361, 0
      %v1412 = vsel %vm747, %v1386, 0
      %v1414 = vsel %vm747, %v1364, 0
      %v1417 = vsel %vm764, %v1395, 0
      %1419 = vmatpush.msra.mxu0 0.0
      %1420 = vmatpush.msra.mxu0 0.0
      %1421 = vmatpush.msra.mxu0 0.0
      %1422 = vmatpush.msra.mxu0 0.0
      %1423 = vmatpush.msra.mxu0 0.0
      %1424 = vmatpush.msra.mxu0 0.0
      %1425 = vmatpush.msra.mxu0 0.0
      %1426 = vmatpush.msra.mxu0 0.0
      %1427 = vmatpush.msra.mxu0 0.0
      %1428 = vmatpush.msra.mxu0 0.0
      %1429 = vmatpush.msra.mxu0 0.0
      %1430 = vmatpush.msra.mxu0 0.0
      %1431 = vmatpush.msra.mxu0 0.0
      %1432 = vmatpush.msra.mxu0 0.0
      %1433 = vmatpush.msra.mxu0 0.0
      %1434 = vmatpush.msra.mxu0 %v1417
      %1435 = vmatmul.f32.gmra.mxu0 %v1397
      %v1436 = vpop.f32.mrf.mxu0
      %v1437 = vadd.f32 0.0, %v1436
      %1438 = vmatmul.f32.gmra.mxu0 %v1399
      %v1439 = vpop.f32.mrf.mxu0
      %v1440 = vadd.f32 0.0, %v1439
      %1441 = vmatmul.f32.gmra.mxu0 %v1402
      %v1442 = vpop.f32.mrf.mxu0
      %v1443 = vadd.f32 0.0, %v1442
      %1444 = vmatmul.f32.gmra.mxu0 %v1404
      %v1445 = vpop.f32.mrf.mxu0
      %v1446 = vadd.f32 0.0, %v1445
      %1447 = vmatmul.f32.gmra.mxu0 %v1407
      %v1448 = vpop.f32.mrf.mxu0
      %v1449 = vadd.f32 0.0, %v1448
      %1450 = vmatmul.f32.gmra.mxu0 %v1409
      %v1451 = vpop.f32.mrf.mxu0
      %v1452 = vadd.f32 0.0, %v1451
      %1453 = vmatmul.f32.gmra.mxu0 %v1412
      %v1454 = vpop.f32.mrf.mxu0
      %v1455 = vadd.f32 0.0, %v1454
      %1456 = vmatmul.f32.gmra.mxu0 %v1414
      %v1457 = vpop.f32.mrf.mxu0
      %v1458 = vadd.f32 0.0, %v1457
      %1459 = vdwg.mxu0
      %v1460 = vadd.f32 %v1317, %v1437
      %v1461 = vadd.f32 %v1318, %v1440
      %v1462 = vadd.f32 %v1319, %v1443
      %v1463 = vadd.f32 %v1320, %v1446
      %v1464 = vadd.f32 %v1321, %v1449
      %v1465 = vadd.f32 %v1322, %v1452
      %v1466 = vadd.f32 %v1323, %v1455
      %v1467 = vadd.f32 %v1324, %v1458
      %v1472 = vrot.slane %v1383, 1
      %v1473 = vrot.slane %v1355, 1
      %v1474 = vsel %vm725, %v1472, %v1473
      %v1475 = vrot.slane %v1389, 1
      %v1476 = vsel %vm725, %v1473, %v1475
      %v1477 = vrot.slane %v1384, 1
      %v1478 = vrot.slane %v1358, 1
      %v1479 = vsel %vm725, %v1477, %v1478
      %v1480 = vrot.slane %v1390, 1
      %v1481 = vsel %vm725, %v1478, %v1480
      %v1482 = vrot.slane %v1385, 1
      %v1483 = vrot.slane %v1361, 1
      %v1484 = vsel %vm725, %v1482, %v1483
      %v1485 = vrot.slane %v1391, 1
      %v1486 = vsel %vm725, %v1483, %v1485
      %v1487 = vrot.slane %v1386, 1
      %v1488 = vrot.slane %v1364, 1
      %v1489 = vsel %vm725, %v1487, %v1488
      %v1490 = vrot.slane %v1392, 1
      %v1491 = vsel %vm725, %v1488, %v1490
      %v1492 = vld [vmem:[%s6 + $0x28] sm:$0xf]
      %v1493 = vsel %vm747, %v1474, 0
      %v1495 = vsel %vm747, %v1476, 0
      %v1497 = vsel %vm747, %v1479, 0
      %v1499 = vsel %vm747, %v1481, 0
      %v1501 = vsel %vm747, %v1484, 0
      %v1503 = vsel %vm747, %v1486, 0
      %v1505 = vsel %vm747, %v1489, 0
      %v1507 = vsel %vm747, %v1491, 0
      %v1510 = vsel %vm764, %v1492, 0
      %1512 = vmatpush.msra.mxu0 0.0
      %1513 = vmatpush.msra.mxu0 0.0
      %1514 = vmatpush.msra.mxu0 0.0
      %1515 = vmatpush.msra.mxu0 0.0
      %1516 = vmatpush.msra.mxu0 0.0
      %1517 = vmatpush.msra.mxu0 0.0
      %1518 = vmatpush.msra.mxu0 0.0
      %1519 = vmatpush.msra.mxu0 0.0
      %1520 = vmatpush.msra.mxu0 0.0
      %1521 = vmatpush.msra.mxu0 0.0
      %1522 = vmatpush.msra.mxu0 0.0
      %1523 = vmatpush.msra.mxu0 0.0
      %1524 = vmatpush.msra.mxu0 0.0
      %1525 = vmatpush.msra.mxu0 0.0
      %1526 = vmatpush.msra.mxu0 0.0
      %1527 = vmatpush.msra.mxu0 %v1510
      %1528 = vmatmul.f32.gmra.mxu0 %v1493
      %v1529 = vpop.f32.mrf.mxu0
      %v1530 = vadd.f32 0.0, %v1529
      %1531 = vmatmul.f32.gmra.mxu0 %v1495
      %v1532 = vpop.f32.mrf.mxu0
      %v1533 = vadd.f32 0.0, %v1532
      %1534 = vmatmul.f32.gmra.mxu0 %v1497
      %v1535 = vpop.f32.mrf.mxu0
      %v1536 = vadd.f32 0.0, %v1535
      %1537 = vmatmul.f32.gmra.mxu0 %v1499
      %v1538 = vpop.f32.mrf.mxu0
      %v1539 = vadd.f32 0.0, %v1538
      %1540 = vmatmul.f32.gmra.mxu0 %v1501
      %v1541 = vpop.f32.mrf.mxu0
      %v1542 = vadd.f32 0.0, %v1541
      %1543 = vmatmul.f32.gmra.mxu0 %v1503
      %v1544 = vpop.f32.mrf.mxu0
      %v1545 = vadd.f32 0.0, %v1544
      %1546 = vmatmul.f32.gmra.mxu0 %v1505
      %v1547 = vpop.f32.mrf.mxu0
      %v1548 = vadd.f32 0.0, %v1547
      %1549 = vmatmul.f32.gmra.mxu0 %v1507
      %v1550 = vpop.f32.mrf.mxu0
      %v1551 = vadd.f32 0.0, %v1550
      %1552 = vdwg.mxu0
      %v1553 = vadd.f32 %v1460, %v1530
      %v1554 = vadd.f32 %v1461, %v1533
      %v1555 = vadd.f32 %v1462, %v1536
      %v1556 = vadd.f32 %v1463, %v1539
      %v1557 = vadd.f32 %v1464, %v1542
      %v1558 = vadd.f32 %v1465, %v1545
      %v1559 = vadd.f32 %v1466, %v1548
      %v1560 = vadd.f32 %v1467, %v1551
      %v1561 = vrot.slane %v1383, 2
      %v1562 = vrot.slane %v1355, 2
      %v1563 = vsel %vm869, %v1561, %v1562
      %v1564 = vrot.slane %v1389, 2
      %v1565 = vsel %vm869, %v1562, %v1564
      %v1566 = vrot.slane %v1384, 2
      %v1567 = vrot.slane %v1358, 2
      %v1568 = vsel %vm869, %v1566, %v1567
      %v1569 = vrot.slane %v1390, 2
      %v1570 = vsel %vm869, %v1567, %v1569
      %v1571 = vrot.slane %v1385, 2
      %v1572 = vrot.slane %v1361, 2
      %v1573 = vsel %vm869, %v1571, %v1572
      %v1574 = vrot.slane %v1391, 2
      %v1575 = vsel %vm869, %v1572, %v1574
      %v1576 = vrot.slane %v1386, 2
      %v1577 = vrot.slane %v1364, 2
      %v1578 = vsel %vm869, %v1576, %v1577
      %v1579 = vrot.slane %v1392, 2
      %v1580 = vsel %vm869, %v1577, %v1579
      %v1581 = vld [vmem:[%s6 + $0x2c] sm:$0xf]
      %v1582 = vsel %vm747, %v1563, 0
      %v1584 = vsel %vm747, %v1565, 0
      %v1586 = vsel %vm747, %v1568, 0
      %v1588 = vsel %vm747, %v1570, 0
      %v1590 = vsel %vm747, %v1573, 0
      %v1592 = vsel %vm747, %v1575, 0
      %v1594 = vsel %vm747, %v1578, 0
      %v1596 = vsel %vm747, %v1580, 0
      %v1599 = vsel %vm764, %v1581, 0
      %1601 = vmatpush.msra.mxu0 0.0
      %1602 = vmatpush.msra.mxu0 0.0
      %1603 = vmatpush.msra.mxu0 0.0
      %1604 = vmatpush.msra.mxu0 0.0
      %1605 = vmatpush.msra.mxu0 0.0
      %1606 = vmatpush.msra.mxu0 0.0
      %1607 = vmatpush.msra.mxu0 0.0
      %1608 = vmatpush.msra.mxu0 0.0
      %1609 = vmatpush.msra.mxu0 0.0
      %1610 = vmatpush.msra.mxu0 0.0
      %1611 = vmatpush.msra.mxu0 0.0
      %1612 = vmatpush.msra.mxu0 0.0
      %1613 = vmatpush.msra.mxu0 0.0
      %1614 = vmatpush.msra.mxu0 0.0
      %1615 = vmatpush.msra.mxu0 0.0
      %1616 = vmatpush.msra.mxu0 %v1599
      %1617 = vmatmul.f32.gmra.mxu0 %v1582
      %v1618 = vpop.f32.mrf.mxu0
      %v1619 = vadd.f32 0.0, %v1618
      %1620 = vmatmul.f32.gmra.mxu0 %v1584
      %v1621 = vpop.f32.mrf.mxu0
      %v1622 = vadd.f32 0.0, %v1621
      %1623 = vmatmul.f32.gmra.mxu0 %v1586
      %v1624 = vpop.f32.mrf.mxu0
      %v1625 = vadd.f32 0.0, %v1624
      %1626 = vmatmul.f32.gmra.mxu0 %v1588
      %v1627 = vpop.f32.mrf.mxu0
      %v1628 = vadd.f32 0.0, %v1627
      %1629 = vmatmul.f32.gmra.mxu0 %v1590
      %v1630 = vpop.f32.mrf.mxu0
      %v1631 = vadd.f32 0.0, %v1630
      %1632 = vmatmul.f32.gmra.mxu0 %v1592
      %v1633 = vpop.f32.mrf.mxu0
      %v1634 = vadd.f32 0.0, %v1633
      %1635 = vmatmul.f32.gmra.mxu0 %v1594
      %v1636 = vpop.f32.mrf.mxu0
      %v1637 = vadd.f32 0.0, %v1636
      %1638 = vmatmul.f32.gmra.mxu0 %v1596
      %v1639 = vpop.f32.mrf.mxu0
      %v1640 = vadd.f32 0.0, %v1639
      %1641 = vdwg.mxu0
      %v1642 = vadd.f32 %v1553, %v1619
      %v1643 = vadd.f32 %v1554, %v1622
      %v1644 = vadd.f32 %v1555, %v1625
      %v1645 = vadd.f32 %v1556, %v1628
      %v1646 = vadd.f32 %v1557, %v1631
      %v1647 = vadd.f32 %v1558, %v1634
      %v1648 = vadd.f32 %v1559, %v1637
      %v1649 = vadd.f32 %v1560, %v1640
      %v1650 = vld [vmem:[%s6 + $0x30] sm:$0xf]
      %v1652 = vsel %vm747, %v1387, 0
      %v1654 = vsel %vm747, %v1367, 0
      %v1657 = vsel %vm764, %v1650, 0
      %1659 = vmatpush.msra.mxu0 0.0
      %1660 = vmatpush.msra.mxu0 0.0
      %1661 = vmatpush.msra.mxu0 0.0
      %1662 = vmatpush.msra.mxu0 0.0
      %1663 = vmatpush.msra.mxu0 0.0
      %1664 = vmatpush.msra.mxu0 0.0
      %1665 = vmatpush.msra.mxu0 0.0
      %1666 = vmatpush.msra.mxu0 0.0
      %1667 = vmatpush.msra.mxu0 0.0
      %1668 = vmatpush.msra.mxu0 0.0
      %1669 = vmatpush.msra.mxu0 0.0
      %1670 = vmatpush.msra.mxu0 0.0
      %1671 = vmatpush.msra.mxu0 0.0
      %1672 = vmatpush.msra.mxu0 0.0
      %1673 = vmatpush.msra.mxu0 0.0
      %1674 = vmatpush.msra.mxu0 %v1657
      %1675 = vmatmul.f32.gmra.mxu0 %v1402
      %v1676 = vpop.f32.mrf.mxu0
      %v1677 = vadd.f32 0.0, %v1676
      %1678 = vmatmul.f32.gmra.mxu0 %v1404
      %v1679 = vpop.f32.mrf.mxu0
      %v1680 = vadd.f32 0.0, %v1679
      %1681 = vmatmul.f32.gmra.mxu0 %v1407
      %v1682 = vpop.f32.mrf.mxu0
      %v1683 = vadd.f32 0.0, %v1682
      %1684 = vmatmul.f32.gmra.mxu0 %v1409
      %v1685 = vpop.f32.mrf.mxu0
      %v1686 = vadd.f32 0.0, %v1685
      %1687 = vmatmul.f32.gmra.mxu0 %v1412
      %v1688 = vpop.f32.mrf.mxu0
      %v1689 = vadd.f32 0.0, %v1688
      %1690 = vmatmul.f32.gmra.mxu0 %v1414
      %v1691 = vpop.f32.mrf.mxu0
      %v1692 = vadd.f32 0.0, %v1691
      %1693 = vmatmul.f32.gmra.mxu0 %v1652
      %v1694 = vpop.f32.mrf.mxu0
      %v1695 = vadd.f32 0.0, %v1694
      %1696 = vmatmul.f32.gmra.mxu0 %v1654
      %v1697 = vpop.f32.mrf.mxu0
      %v1698 = vadd.f32 0.0, %v1697
      %1699 = vdwg.mxu0
      %v1700 = vadd.f32 %v1642, %v1677
      %v1701 = vadd.f32 %v1643, %v1680
      %v1702 = vadd.f32 %v1644, %v1683
      %v1703 = vadd.f32 %v1645, %v1686
      %v1704 = vadd.f32 %v1646, %v1689
      %v1705 = vadd.f32 %v1647, %v1692
      %v1706 = vadd.f32 %v1648, %v1695
      %v1707 = vadd.f32 %v1649, %v1698
      %v1709 = vrot.slane %v1387, 1
      %v1710 = vrot.slane %v1367, 1
      %v1711 = vsel %vm725, %v1709, %v1710
      %v1712 = vrot.slane %v1393, 1
      %v1713 = vsel %vm725, %v1710, %v1712
      %v1714 = vld [vmem:[%s6 + $0x34] sm:$0xf]
      %v1715 = vsel %vm747, %v1711, 0
      %v1717 = vsel %vm747, %v1713, 0
      %v1720 = vsel %vm764, %v1714, 0
      %1722 = vmatpush.msra.mxu0 0.0
      %1723 = vmatpush.msra.mxu0 0.0
      %1724 = vmatpush.msra.mxu0 0.0
      %1725 = vmatpush.msra.mxu0 0.0
      %1726 = vmatpush.msra.mxu0 0.0
      %1727 = vmatpush.msra.mxu0 0.0
      %1728 = vmatpush.msra.mxu0 0.0
      %1729 = vmatpush.msra.mxu0 0.0
      %1730 = vmatpush.msra.mxu0 0.0
      %1731 = vmatpush.msra.mxu0 0.0
      %1732 = vmatpush.msra.mxu0 0.0
      %1733 = vmatpush.msra.mxu0 0.0
      %1734 = vmatpush.msra.mxu0 0.0
      %1735 = vmatpush.msra.mxu0 0.0
      %1736 = vmatpush.msra.mxu0 0.0
      %1737 = vmatpush.msra.mxu0 %v1720
      %1738 = vmatmul.f32.gmra.mxu0 %v1497
      %v1739 = vpop.f32.mrf.mxu0
      %v1740 = vadd.f32 0.0, %v1739
      %1741 = vmatmul.f32.gmra.mxu0 %v1499
      %v1742 = vpop.f32.mrf.mxu0
      %v1743 = vadd.f32 0.0, %v1742
      %1744 = vmatmul.f32.gmra.mxu0 %v1501
      %v1745 = vpop.f32.mrf.mxu0
      %v1746 = vadd.f32 0.0, %v1745
      %1747 = vmatmul.f32.gmra.mxu0 %v1503
      %v1748 = vpop.f32.mrf.mxu0
      %v1749 = vadd.f32 0.0, %v1748
      %1750 = vmatmul.f32.gmra.mxu0 %v1505
      %v1751 = vpop.f32.mrf.mxu0
      %v1752 = vadd.f32 0.0, %v1751
      %1753 = vmatmul.f32.gmra.mxu0 %v1507
      %v1754 = vpop.f32.mrf.mxu0
      %v1755 = vadd.f32 0.0, %v1754
      %1756 = vmatmul.f32.gmra.mxu0 %v1715
      %v1757 = vpop.f32.mrf.mxu0
      %v1758 = vadd.f32 0.0, %v1757
      %1759 = vmatmul.f32.gmra.mxu0 %v1717
      %v1760 = vpop.f32.mrf.mxu0
      %v1761 = vadd.f32 0.0, %v1760
      %1762 = vdwg.mxu0
      %v1763 = vadd.f32 %v1700, %v1740
      %v1764 = vadd.f32 %v1701, %v1743
      %v1765 = vadd.f32 %v1702, %v1746
      %v1766 = vadd.f32 %v1703, %v1749
      %v1767 = vadd.f32 %v1704, %v1752
      %v1768 = vadd.f32 %v1705, %v1755
      %v1769 = vadd.f32 %v1706, %v1758
      %v1770 = vadd.f32 %v1707, %v1761
      %v1771 = vrot.slane %v1387, 2
      %v1772 = vrot.slane %v1367, 2
      %v1773 = vsel %vm869, %v1771, %v1772
      %v1774 = vrot.slane %v1393, 2
      %v1775 = vsel %vm869, %v1772, %v1774
      %v1776 = vld [vmem:[%s6 + $0x38] sm:$0xf]
      %v1777 = vsel %vm747, %v1773, 0
      %v1779 = vsel %vm747, %v1775, 0
      %v1782 = vsel %vm764, %v1776, 0
      %1784 = vmatpush.msra.mxu0 0.0
      %1785 = vmatpush.msra.mxu0 0.0
      %1786 = vmatpush.msra.mxu0 0.0
      %1787 = vmatpush.msra.mxu0 0.0
      %1788 = vmatpush.msra.mxu0 0.0
      %1789 = vmatpush.msra.mxu0 0.0
      %1790 = vmatpush.msra.mxu0 0.0
      %1791 = vmatpush.msra.mxu0 0.0
      %1792 = vmatpush.msra.mxu0 0.0
      %1793 = vmatpush.msra.mxu0 0.0
      %1794 = vmatpush.msra.mxu0 0.0
      %1795 = vmatpush.msra.mxu0 0.0
      %1796 = vmatpush.msra.mxu0 0.0
      %1797 = vmatpush.msra.mxu0 0.0
      %1798 = vmatpush.msra.mxu0 0.0
      %1799 = vmatpush.msra.mxu0 %v1782
      %1800 = vmatmul.f32.gmra.mxu0 %v1586
      %v1801 = vpop.f32.mrf.mxu0
      %v1802 = vadd.f32 0.0, %v1801
      %1803 = vmatmul.f32.gmra.mxu0 %v1588
      %v1804 = vpop.f32.mrf.mxu0
      %v1805 = vadd.f32 0.0, %v1804
      %1806 = vmatmul.f32.gmra.mxu0 %v1590
      %v1807 = vpop.f32.mrf.mxu0
      %v1808 = vadd.f32 0.0, %v1807
      %1809 = vmatmul.f32.gmra.mxu0 %v1592
      %v1810 = vpop.f32.mrf.mxu0
      %v1811 = vadd.f32 0.0, %v1810
      %1812 = vmatmul.f32.gmra.mxu0 %v1594
      %v1813 = vpop.f32.mrf.mxu0
      %v1814 = vadd.f32 0.0, %v1813
      %1815 = vmatmul.f32.gmra.mxu0 %v1596
      %v1816 = vpop.f32.mrf.mxu0
      %v1817 = vadd.f32 0.0, %v1816
      %1818 = vmatmul.f32.gmra.mxu0 %v1777
      %v1819 = vpop.f32.mrf.mxu0
      %v1820 = vadd.f32 0.0, %v1819
      %1821 = vmatmul.f32.gmra.mxu0 %v1779
      %v1822 = vpop.f32.mrf.mxu0
      %v1823 = vadd.f32 0.0, %v1822
      %1824 = vdwg.mxu0
      %v1825 = vadd.f32 %v1763, %v1802
      %v1826 = vadd.f32 %v1764, %v1805
      %v1827 = vadd.f32 %v1765, %v1808
      %v1828 = vadd.f32 %v1766, %v1811
      %v1829 = vadd.f32 %v1767, %v1814
      %v1830 = vadd.f32 %v1768, %v1817
      %v1831 = vadd.f32 %v1769, %v1820
      %v1832 = vadd.f32 %v1770, %v1823
      %v1833 = vld [vmem:[%s6 + $0x3c] sm:$0xf]
      %v1835 = vsel %vm747, %v1388, 0
      %v1837 = vsel %vm747, %v1370, 0
      %v1840 = vsel %vm764, %v1833, 0
      %1842 = vmatpush.msra.mxu0 0.0
      %1843 = vmatpush.msra.mxu0 0.0
      %1844 = vmatpush.msra.mxu0 0.0
      %1845 = vmatpush.msra.mxu0 0.0
      %1846 = vmatpush.msra.mxu0 0.0
      %1847 = vmatpush.msra.mxu0 0.0
      %1848 = vmatpush.msra.mxu0 0.0
      %1849 = vmatpush.msra.mxu0 0.0
      %1850 = vmatpush.msra.mxu0 0.0
      %1851 = vmatpush.msra.mxu0 0.0
      %1852 = vmatpush.msra.mxu0 0.0
      %1853 = vmatpush.msra.mxu0 0.0
      %1854 = vmatpush.msra.mxu0 0.0
      %1855 = vmatpush.msra.mxu0 0.0
      %1856 = vmatpush.msra.mxu0 0.0
      %1857 = vmatpush.msra.mxu0 %v1840
      %1858 = vmatmul.f32.gmra.mxu0 %v1407
      %v1859 = vpop.f32.mrf.mxu0
      %v1860 = vadd.f32 0.0, %v1859
      %1861 = vmatmul.f32.gmra.mxu0 %v1409
      %v1862 = vpop.f32.mrf.mxu0
      %v1863 = vadd.f32 0.0, %v1862
      %1864 = vmatmul.f32.gmra.mxu0 %v1412
      %v1865 = vpop.f32.mrf.mxu0
      %v1866 = vadd.f32 0.0, %v1865
      %1867 = vmatmul.f32.gmra.mxu0 %v1414
      %v1868 = vpop.f32.mrf.mxu0
      %v1869 = vadd.f32 0.0, %v1868
      %1870 = vmatmul.f32.gmra.mxu0 %v1652
      %v1871 = vpop.f32.mrf.mxu0
      %v1872 = vadd.f32 0.0, %v1871
      %1873 = vmatmul.f32.gmra.mxu0 %v1654
      %v1874 = vpop.f32.mrf.mxu0
      %v1875 = vadd.f32 0.0, %v1874
      %1876 = vmatmul.f32.gmra.mxu0 %v1835
      %v1877 = vpop.f32.mrf.mxu0
      %v1878 = vadd.f32 0.0, %v1877
      %1879 = vmatmul.f32.gmra.mxu0 %v1837
      %v1880 = vpop.f32.mrf.mxu0
      %v1881 = vadd.f32 0.0, %v1880
      %1882 = vdwg.mxu0
      %v1883 = vadd.f32 %v1825, %v1860
      %v1884 = vadd.f32 %v1826, %v1863
      %v1885 = vadd.f32 %v1827, %v1866
      %v1886 = vadd.f32 %v1828, %v1869
      %v1887 = vadd.f32 %v1829, %v1872
      %v1888 = vadd.f32 %v1830, %v1875
      %v1889 = vadd.f32 %v1831, %v1878
      %v1890 = vadd.f32 %v1832, %v1881
      %v1892 = vrot.slane %v1388, 1
      %v1893 = vrot.slane %v1370, 1
      %v1894 = vsel %vm725, %v1892, %v1893
      %v1895 = vrot.slane %v1394, 1
      %v1896 = vsel %vm725, %v1893, %v1895
      %v1897 = vld [vmem:[%s6 + $0x40] sm:$0xf]
      %v1898 = vsel %vm747, %v1894, 0
      %v1900 = vsel %vm747, %v1896, 0
      %v1903 = vsel %vm764, %v1897, 0
      %1905 = vmatpush.msra.mxu0 0.0
      %1906 = vmatpush.msra.mxu0 0.0
      %1907 = vmatpush.msra.mxu0 0.0
      %1908 = vmatpush.msra.mxu0 0.0
      %1909 = vmatpush.msra.mxu0 0.0
      %1910 = vmatpush.msra.mxu0 0.0
      %1911 = vmatpush.msra.mxu0 0.0
      %1912 = vmatpush.msra.mxu0 0.0
      %1913 = vmatpush.msra.mxu0 0.0
      %1914 = vmatpush.msra.mxu0 0.0
      %1915 = vmatpush.msra.mxu0 0.0
      %1916 = vmatpush.msra.mxu0 0.0
      %1917 = vmatpush.msra.mxu0 0.0
      %1918 = vmatpush.msra.mxu0 0.0
      %1919 = vmatpush.msra.mxu0 0.0
      %1920 = vmatpush.msra.mxu0 %v1903
      %1921 = vmatmul.f32.gmra.mxu0 %v1501
      %v1922 = vpop.f32.mrf.mxu0
      %v1923 = vadd.f32 0.0, %v1922
      %1924 = vmatmul.f32.gmra.mxu0 %v1503
      %v1925 = vpop.f32.mrf.mxu0
      %v1926 = vadd.f32 0.0, %v1925
      %1927 = vmatmul.f32.gmra.mxu0 %v1505
      %v1928 = vpop.f32.mrf.mxu0
      %v1929 = vadd.f32 0.0, %v1928
      %1930 = vmatmul.f32.gmra.mxu0 %v1507
      %v1931 = vpop.f32.mrf.mxu0
      %v1932 = vadd.f32 0.0, %v1931
      %1933 = vmatmul.f32.gmra.mxu0 %v1715
      %v1934 = vpop.f32.mrf.mxu0
      %v1935 = vadd.f32 0.0, %v1934
      %1936 = vmatmul.f32.gmra.mxu0 %v1717
      %v1937 = vpop.f32.mrf.mxu0
      %v1938 = vadd.f32 0.0, %v1937
      %1939 = vmatmul.f32.gmra.mxu0 %v1898
      %v1940 = vpop.f32.mrf.mxu0
      %v1941 = vadd.f32 0.0, %v1940
      %1942 = vmatmul.f32.gmra.mxu0 %v1900
      %v1943 = vpop.f32.mrf.mxu0
      %v1944 = vadd.f32 0.0, %v1943
      %1945 = vdwg.mxu0
      %v1946 = vadd.f32 %v1883, %v1923
      %v1947 = vadd.f32 %v1884, %v1926
      %v1948 = vadd.f32 %v1885, %v1929
      %v1949 = vadd.f32 %v1886, %v1932
      %v1950 = vadd.f32 %v1887, %v1935
      %v1951 = vadd.f32 %v1888, %v1938
      %v1952 = vadd.f32 %v1889, %v1941
      %v1953 = vadd.f32 %v1890, %v1944
      %v1954 = vrot.slane %v1388, 2
      %v1955 = vrot.slane %v1370, 2
      %v1956 = vsel %vm869, %v1954, %v1955
      %v1957 = vrot.slane %v1394, 2
      %v1958 = vsel %vm869, %v1955, %v1957
      %v1959 = vld [vmem:[%s6 + $0x44] sm:$0xf]
      %v1960 = vsel %vm747, %v1956, 0
      %v1962 = vsel %vm747, %v1958, 0
      %v1965 = vsel %vm764, %v1959, 0
      %1967 = vmatpush.msra.mxu0 0.0
      %1968 = vmatpush.msra.mxu0 0.0
      %1969 = vmatpush.msra.mxu0 0.0
      %1970 = vmatpush.msra.mxu0 0.0
      %1971 = vmatpush.msra.mxu0 0.0
      %1972 = vmatpush.msra.mxu0 0.0
      %1973 = vmatpush.msra.mxu0 0.0
      %1974 = vmatpush.msra.mxu0 0.0
      %1975 = vmatpush.msra.mxu0 0.0
      %1976 = vmatpush.msra.mxu0 0.0
      %1977 = vmatpush.msra.mxu0 0.0
      %1978 = vmatpush.msra.mxu0 0.0
      %1979 = vmatpush.msra.mxu0 0.0
      %1980 = vmatpush.msra.mxu0 0.0
      %1981 = vmatpush.msra.mxu0 0.0
      %1982 = vmatpush.msra.mxu0 %v1965
      %1983 = vmatmul.f32.gmra.mxu0 %v1590
      %v1984 = vpop.f32.mrf.mxu0
      %v1985 = vadd.f32 0.0, %v1984
      %1986 = vmatmul.f32.gmra.mxu0 %v1592
      %v1987 = vpop.f32.mrf.mxu0
      %v1988 = vadd.f32 0.0, %v1987
      %1989 = vmatmul.f32.gmra.mxu0 %v1594
      %v1990 = vpop.f32.mrf.mxu0
      %v1991 = vadd.f32 0.0, %v1990
      %1992 = vmatmul.f32.gmra.mxu0 %v1596
      %v1993 = vpop.f32.mrf.mxu0
      %v1994 = vadd.f32 0.0, %v1993
      %1995 = vmatmul.f32.gmra.mxu0 %v1777
      %v1996 = vpop.f32.mrf.mxu0
      %v1997 = vadd.f32 0.0, %v1996
      %1998 = vmatmul.f32.gmra.mxu0 %v1779
      %v1999 = vpop.f32.mrf.mxu0
      %v2000 = vadd.f32 0.0, %v1999
      %2001 = vmatmul.f32.gmra.mxu0 %v1960
      %v2002 = vpop.f32.mrf.mxu0
      %v2003 = vadd.f32 0.0, %v2002
      %2004 = vmatmul.f32.gmra.mxu0 %v1962
      %v2005 = vpop.f32.mrf.mxu0
      %v2006 = vadd.f32 0.0, %v2005
      %2007 = vdwg.mxu0
      %v2008 = vadd.f32 %v1946, %v1985
      %v2009 = vadd.f32 %v1947, %v1988
      %v2010 = vadd.f32 %v1948, %v1991
      %v2011 = vadd.f32 %v1949, %v1994
      %v2012 = vadd.f32 %v1950, %v1997
      %v2013 = vadd.f32 %v1951, %v2000
      %v2014 = vadd.f32 %v1952, %v2003
      %v2015 = vadd.f32 %v1953, %v2006
      %v2016 = vld [vmem:[%s7] sm:$0x1]
      %v2018 = vperm.slane %v2016, 0
      %v2020 = vadd.f32 %v2008, %v2018
      %v2021 = vadd.f32 %v2009, %v2018
      %v2022 = vadd.f32 %v2010, %v2018
      %v2023 = vadd.f32 %v2011, %v2018
      %v2024 = vadd.f32 %v2012, %v2018
      %v2025 = vadd.f32 %v2013, %v2018
      %v2026 = vadd.f32 %v2014, %v2018
      %v2027 = vadd.f32 %v2015, %v2018
      %v2028 = vmax.f32 %v2020, 0.0
      %v2029 = vmax.f32 %v2021, 0.0
      %v2030 = vmax.f32 %v2022, 0.0
      %v2031 = vmax.f32 %v2023, 0.0
      %v2032 = vmax.f32 %v2024, 0.0
      %v2033 = vmax.f32 %v2025, 0.0
      %v2034 = vmax.f32 %v2026, 0.0
      %v2035 = vmax.f32 %v2027, 0.0
      %2036 = vst.msk [vmem:[%s635] sm:$0xff] %vm747, %v2028
      %2037 = vst.msk [vmem:[%s635 + $0x8] sm:$0xff] %vm747, %v2029
      %2038 = vst.msk [vmem:[%s635 + $0x10] sm:$0xff] %vm747, %v2030
      %2039 = vst.msk [vmem:[%s635 + $0x18] sm:$0xff] %vm747, %v2031
      %2040 = vst.msk [vmem:[%s635 + $0x20] sm:$0xff] %vm747, %v2032
      %2041 = vst.msk [vmem:[%s635 + $0x28] sm:$0xff] %vm747, %v2033
      %2042 = vst.msk [vmem:[%s635 + $0x30] sm:$0xff] %vm747, %v2034
      %2043 = vst.msk [vmem:[%s635 + $0x38] sm:$0xff] %vm747, %v2035
      %s2044 = smul.u32 4, %s24
      %p2045 = scmp.lt.s32.totalorder %s23, 1
      %s2046 = scalar_select %p2045, %s23, 1
      %p2047 = scmp.lt.s32.totalorder %s2044, 15
      %s2048 = scalar_select %p2047, %s2044, 15
      %s2049 = smul.addr %s2048, 2
      %s2050 = smul.addr %s2046, 32
      %s2051 = sadd.s32 %s2049, %s2050
      %s2052 = smul.addr %s2051, 8
      %s2053 = scalar_lea.vmem %s8, %s2052
      // Predicated region
      $region53: #{unet_up_block_forward.4} parent=51 // pred_check
        %p2054 = pneg %p293
      $region54: #{unet_up_block_forward.4} parent=51 // pred_check_branch
        %2056 = sbr.rel (%p2054) target = $region56
      $region55: #{unet_up_block_forward.4} parent=51 // pred_region
        %s2057 = smul.u32 4, %s24
      $region56: #{unet_up_block_forward.4} parent=51 // pred_fallthru
        _
    $region52: #{unet_up_block_forward.4} parent=5 // pred_fallthru
      _
    %p2058 = scmp.le.s32.totalorder 2, %s14
    // Predicated region
    $region57: #{unet_up_block_forward.4} parent=5 // pred_check
      %p2059 = pneg %p2058
    $region58: #{unet_up_block_forward.4} parent=5 // pred_check_branch
      %2061 = sbr.rel (%p2059) target = $region60
    $region59: #{unet_up_block_forward.4} parent=5 // pred_region
      %s2062 = ssub.s32 %s14, 2
      // Predicated region
      $region61: #{unet_up_block_forward.4} parent=59 // pred_check
        %p2063 = pneg %p299
      $region62: #{unet_up_block_forward.4} parent=59 // pred_check_branch
        %2065 = sbr.rel (%p2063) target = $region64
      $region63: #{unet_up_block_forward.4} parent=59 // pred_region
        %s2066 = smul.u32 4, %s26
        %p2067 = scmp.lt.s32.totalorder %s25, 1
        %s2068 = scalar_select %p2067, %s25, 1
        %p2069 = scmp.lt.s32.totalorder %s2066, 15
        %s2070 = scalar_select %p2069, %s2066, 15
        %s2071 = smul.addr %s2070, 2
        %s2072 = smul.addr %s2068, 32
        %s2073 = sadd.s32 %s2071, %s2072
        %s2074 = smul.addr %s2073, 8
        %s2075 = scalar_lea.vmem %s8, %s2074
      $region64: #{unet_up_block_forward.4} parent=59 // pred_fallthru
        _
    $region60: #{unet_up_block_forward.4} parent=5 // pred_fallthru
      _
  $region6: #{unet_up_block_forward.4} parent=0 // loop_footer
    %s18 = sadd.s32 1, %s14
  $region7: #{unet_up_block_forward.4} parent=0 // loop_footer_branch
    %13 = sbr.rel target = $region3
  $region8: #{unet_up_block_forward.4} parent=0 // loop_exit
    _

</llo_original>
